<compile_context>
chip_gen: v7x
topology: tpu7x:2x2x1
jax: 0.10.0
libtpu: 0.0.40
codegen_flags: <defaults>
</compile_context>

<pallas_src>
import functools
import math

import jax
import jax.numpy as jnp
from jax.experimental import pallas as pl
from jax.experimental.pallas import tpu as pltpu  # noqa: F401  (not needed at this size)


# ----------------------------- config (small) -----------------------------
HIDDEN = 32          # config.hidden_size
N_HEADS = 4          # config.num_attention_heads
N_KV_HEADS = 2       # config.num_key_value_heads
HEAD_DIM = HIDDEN // N_HEADS
FFN = 64             # config.intermediate_size
N_EXPERTS = 4        # config.num_local_experts
TOP_K = 2            # config.num_experts_per_tok
RMS_EPS = 1e-6
ROPE_THETA = 10000.0

BATCH = 2
SEQ = 8


# ------------------------------ Pallas kernels -----------------------------
def _attn_block_kernel(x_ref, ln_w_ref, qkv_w_ref, o_w_ref, cos_ref, sin_ref,
                       out_ref, *, batch, seq, n_heads, n_kv_heads, head_dim,
                       eps, scale):
    """Fused: RMSNorm -> QKV proj -> RoPE -> SDPA (per batch/head) -> o_proj -> +residual."""
    # TODO(synk): no attention_mask / KV-cache / dropout path — matches the reference
    # forward being called with attention_mask=None, past_key_value=None, p=0.0.
    x = x_ref[...].astype(jnp.float32)                               # (T, D)

    # --- RMSNorm prologue (rsqrt -> EUP) ---
    var = jnp.mean(x * x, axis=-1, keepdims=True)
    h = ln_w_ref[...] * (x * jax.lax.rsqrt(var + eps))               # (T, D)

    # --- fused QKV projection: single MXU matmul, lane-dense output ---
    qkv = jnp.dot(h, qkv_w_ref[...], preferred_element_type=jnp.float32)

    cos = cos_ref[...]                                               # (T, Dh)
    sin = sin_ref[...]
    half = head_dim // 2

    def rope(t):                                                     # t: (T, Dh)
        t_rot = jnp.concatenate([-t[:, half:], t[:, :half]], axis=-1)
        return t * cos + t_rot * sin

    n_rep = n_heads // n_kv_heads
    k_off = n_heads * head_dim
    v_off = (n_heads + n_kv_heads) * head_dim

    # KV heads computed once; query heads reuse them in-register (no repeat_kv copy).
    k_heads = [rope(qkv[:, k_off + g * head_dim:k_off + (g + 1) * head_dim])
               for g in range(n_kv_heads)]
    v_heads = [qkv[:, v_off + g * head_dim:v_off + (g + 1) * head_dim]
               for g in range(n_kv_heads)]

    head_outs = []
    for hh in range(n_heads):
        q_h = rope(qkv[:, hh * head_dim:(hh + 1) * head_dim])        # (T, Dh)
        k_h = k_heads[hh // n_rep]
        v_h = v_heads[hh // n_rep]
        per_batch = []
        for b in range(batch):
            rows = slice(b * seq, (b + 1) * seq)
            qb, kb, vb = q_h[rows], k_h[rows], v_h[rows]             # (S, Dh)
            # contract last dims directly: no transpose/relayout materialized
            s = jax.lax.dot_general(qb, kb, (((1,), (1,)), ((), ())),
                                    preferred_element_type=jnp.float32) * scale
            s = s - jnp.max(s, axis=-1, keepdims=True)
            p = jnp.exp(s)
            denom = jnp.sum(p, axis=-1, keepdims=True)
            o = jnp.dot(p, vb, preferred_element_type=jnp.float32)
            per_batch.append(o * pl.reciprocal(denom, approx=True))  # EUP divide
        head_outs.append(jnp.concatenate(per_batch, axis=0))         # (T, Dh)
    attn = jnp.concatenate(head_outs, axis=-1)                       # (T, H*Dh)

    proj = jnp.dot(attn, o_w_ref[...], preferred_element_type=jnp.float32)
    out_ref[...] = (x + proj).astype(out_ref.dtype)                  # fused residual add


def _moe_block_kernel(x_ref, ln_w_ref, gate_w_ref, w1_ref, w3_ref, w2_ref,
                      out_ref, logits_ref, *, n_experts, top_k, eps):
    """Fused: RMSNorm -> router -> top-2 select/normalize -> experts -> weighted combine -> +residual."""
    x = x_ref[...].astype(jnp.float32)                               # (T, D)

    # --- RMSNorm prologue ---
    var = jnp.mean(x * x, axis=-1, keepdims=True)
    h = ln_w_ref[...] * (x * jax.lax.rsqrt(var + eps))               # (T, D)

    # --- router ---
    logits = jnp.dot(h, gate_w_ref[...], preferred_element_type=jnp.float32)  # (T, E)
    logits_ref[...] = logits.astype(logits_ref.dtype)

    z = logits - jnp.max(logits, axis=-1, keepdims=True)
    ez = jnp.exp(z)
    probs = ez / jnp.sum(ez, axis=-1, keepdims=True)                 # (T, E) softmax

    # top-k mask via unrolled rank comparisons (lower index wins ties, like torch.topk)
    cols = [probs[:, e:e + 1] for e in range(n_experts)]
    mask_cols = []
    for e in range(n_experts):
        beaten_by = jnp.zeros_like(cols[e])
        for j in range(n_experts):
            if j == e:
                continue
            cmp = (cols[j] >= cols[e]) if j < e else (cols[j] > cols[e])
            beaten_by = beaten_by + cmp.astype(jnp.float32)
        mask_cols.append((beaten_by < top_k).astype(jnp.float32))
    mask = jnp.concatenate(mask_cols, axis=-1)                       # (T, E)

    gated = probs * mask
    dense_w = gated / jnp.sum(gated, axis=-1, keepdims=True)         # normalized top-k weights

    # --- experts: silu(h@W1) * (h@W3) @ W2, weighted-combined in-register ---
    # (dense top-2: unselected experts get weight 0 — mathematically identical
    #  to the reference's sparse gather/scatter loop.)
    moe_out = None
    for e in range(n_experts):
        h1 = jnp.dot(h, w1_ref[e], preferred_element_type=jnp.float32)   # (T, F)
        h3 = jnp.dot(h, w3_ref[e], preferred_element_type=jnp.float32)   # (T, F)
        inter = (h1 * jax.nn.sigmoid(h1)) * h3
        o_e = jnp.dot(inter, w2_ref[e], preferred_element_type=jnp.float32)  # (T, D)
        term = dense_w[:, e:e + 1] * o_e
        moe_out = term if moe_out is None else moe_out + term

    out_ref[...] = (x + moe_out).astype(out_ref.dtype)               # fused residual add


# ------------------------------- JAX glue ----------------------------------
def rope_cache(seq_len, dim, base=ROPE_THETA):
    inv_freq = 1.0 / (base ** (jnp.arange(0, dim, 2, dtype=jnp.float32) / dim))
    t = jnp.arange(seq_len, dtype=jnp.float32)
    freqs = jnp.outer(t, inv_freq)
    emb = jnp.concatenate([freqs, freqs], axis=-1)
    return jnp.cos(emb), jnp.sin(emb)       # each (S, Dh)


def rotate_half(x):
    half = x.shape[-1] // 2
    return jnp.concatenate([-x[..., half:], x[..., :half]], axis=-1)


def init_params(key):
    ks = jax.random.split(key, 8)
    s = 0.02
    q_w = s * jax.random.normal(ks[0], (N_HEADS * HEAD_DIM, HIDDEN))
    k_w = s * jax.random.normal(ks[1], (N_KV_HEADS * HEAD_DIM, HIDDEN))
    v_w = s * jax.random.normal(ks[2], (N_KV_HEADS * HEAD_DIM, HIDDEN))
    o_w = s * jax.random.normal(ks[3], (HIDDEN, N_HEADS * HEAD_DIM))
    gate_w = s * jax.random.normal(ks[4], (N_EXPERTS, HIDDEN))
    w1 = s * jax.random.normal(ks[5], (N_EXPERTS, FFN, HIDDEN))
    w3 = s * jax.random.normal(ks[6], (N_EXPERTS, FFN, HIDDEN))
    w2 = s * jax.random.normal(ks[7], (N_EXPERTS, HIDDEN, FFN))
    p = {
        "ln1_w": jnp.ones((HIDDEN,), jnp.float32),
        "ln2_w": jnp.ones((HIDDEN,), jnp.float32),
        # nn.Linear stores (out, in); kernels take transposed (in, out).
        # q/k/v weights fused into a single (D, (H + 2*Hkv)*Dh) matrix.
        "qkv_w_t": jnp.concatenate([q_w.T, k_w.T, v_w.T], axis=1),
        "o_w_t": o_w.T,
        "gate_w_t": gate_w.T,
        "w1_t": jnp.transpose(w1, (0, 2, 1)),   # (E, D, F)
        "w3_t": jnp.transpose(w3, (0, 2, 1)),   # (E, D, F)
        "w2_t": jnp.transpose(w2, (0, 2, 1)),   # (E, F, D)
    }
    return jax.tree_util.tree_map(lambda a: a.astype(jnp.float32), p)


def mixtral_decoder_layer(hidden_states, params):
    B, S, D = hidden_states.shape
    T = B * S
    x2d = hidden_states.reshape(T, D)

    cos, sin = rope_cache(S, HEAD_DIM)          # (S, Dh); constant-folded under jit
    cos_tok = jnp.tile(cos, (B, 1))             # (T, Dh), token-major (b, s)
    sin_tok = jnp.tile(sin, (B, 1))

    attn_kernel = functools.partial(
        _attn_block_kernel, batch=B, seq=S, n_heads=N_HEADS,
        n_kv_heads=N_KV_HEADS, head_dim=HEAD_DIM, eps=RMS_EPS,
        scale=1.0 / math.sqrt(HEAD_DIM))
    h_attn = pl.pallas_call(
        attn_kernel,
        out_shape=jax.ShapeDtypeStruct((T, D), hidden_states.dtype),
    )(x2d, params["ln1_w"].reshape(1, -1), params["qkv_w_t"],
      params["o_w_t"], cos_tok, sin_tok)

    moe_kernel = functools.partial(
        _moe_block_kernel, n_experts=N_EXPERTS, top_k=TOP_K, eps=RMS_EPS)
    out2d, router_logits = pl.pallas_call(
        moe_kernel,
        out_shape=(jax.ShapeDtypeStruct((T, D), hidden_states.dtype),
                   jax.ShapeDtypeStruct((T, N_EXPERTS), jnp.float32)),
    )(h_attn, params["ln2_w"].reshape(1, -1), params["gate_w_t"],
      params["w1_t"], params["w3_t"], params["w2_t"])

    return out2d.reshape(B, S, D), router_logits


# ---------------------- pure-JAX reference (for checking) ------------------
def reference_decoder_layer(hidden_states, params):
    B, S, D = hidden_states.shape
    T = B * S
    n_rep = N_HEADS // N_KV_HEADS

    def rms(v, w):
        vf = v.astype(jnp.float32)
        var = jnp.mean(vf * vf, axis=-1, keepdims=True)
        return w * (vf * jax.lax.rsqrt(var + RMS_EPS))

    residual = hidden_states
    h = rms(hidden_states, params["ln1_w"]).reshape(T, D)
    qkv = h @ params["qkv_w_t"]
    q = qkv[:, :N_HEADS * HEAD_DIM].reshape(B, S, N_HEADS, HEAD_DIM).transpose(0, 2, 1, 3)
    k = qkv[:, N_HEADS * HEAD_DIM:(N_HEADS + N_KV_HEADS) * HEAD_DIM] \
        .reshape(B, S, N_KV_HEADS, HEAD_DIM).transpose(0, 2, 1, 3)
    v = qkv[:, (N_HEADS + N_KV_HEADS) * HEAD_DIM:] \
        .reshape(B, S, N_KV_HEADS, HEAD_DIM).transpose(0, 2, 1, 3)

    cos, sin = rope_cache(S, HEAD_DIM)
    cos4, sin4 = cos[None, None], sin[None, None]
    q = q * cos4 + rotate_half(q) * sin4
    k = k * cos4 + rotate_half(k) * sin4

    k = jnp.repeat(k, n_rep, axis=1)
    v = jnp.repeat(v, n_rep, axis=1)
    scores = jnp.einsum("bhqd,bhkd->bhqk", q, k) / math.sqrt(HEAD_DIM)
    probs = jax.nn.softmax(scores, axis=-1)      # attention_mask=None path
    attn = jnp.einsum("bhqk,bhkd->bhqd", probs, v)
    attn = attn.transpose(0, 2, 1, 3).reshape(T, D) @ params["o_w_t"]
    hidden_states = residual + attn.reshape(B, S, D)

    residual = hidden_states
    h = rms(hidden_states, params["ln2_w"]).reshape(T, D)
    logits = h @ params["gate_w_t"]
    routing = jax.nn.softmax(logits, axis=-1)
    top_w, top_idx = jax.lax.top_k(routing, TOP_K)
    top_w = top_w / jnp.sum(top_w, axis=-1, keepdims=True)
    dense_w = jnp.zeros((T, N_EXPERTS), jnp.float32).at[
        jnp.arange(T)[:, None], top_idx].set(top_w)
    moe = jnp.zeros((T, D), jnp.float32)
    for e in range(N_EXPERTS):
        h1 = h @ params["w1_t"][e]
        h3 = h @ params["w3_t"][e]
        o_e = ((h1 * jax.nn.sigmoid(h1)) * h3) @ params["w2_t"][e]
        moe = moe + dense_w[:, e:e + 1] * o_e
    hidden_states = residual + moe.reshape(B, S, D)
    return hidden_states, logits


if __name__ == "__main__":
    key = jax.random.PRNGKey(0)
    pkey, xkey = jax.random.split(key)
    params = init_params(pkey)
    x = jax.random.normal(xkey, (BATCH, SEQ, HIDDEN), dtype=jnp.float32)

    out, router_logits = jax.jit(mixtral_decoder_layer)(x, params)
    jax.block_until_ready(out)
    jax.block_until_ready(router_logits)

    ref_out, ref_logits = jax.jit(reference_decoder_layer)(x, params)
    jax.block_until_ready(ref_out)

    assert out.shape == (BATCH, SEQ, HIDDEN)
    assert router_logits.shape == (BATCH * SEQ, N_EXPERTS)
    assert bool(jnp.all(jnp.isfinite(out)))
    assert bool(jnp.allclose(out, ref_out, atol=5e-3, rtol=5e-3))
    assert bool(jnp.allclose(router_logits, ref_logits, atol=5e-3, rtol=5e-3))
    print("KERNEL_OK")
</pallas_src>

<mosaic_0001>
module attributes {stable_mosaic.version = 11 : i64} {
  func.func @_attn_block_kernel(%arg0: memref<16x32xf32, #tpu.memory_space<vmem>>, %arg1: memref<1x32xf32, #tpu.memory_space<vmem>>, %arg2: memref<32x64xf32, #tpu.memory_space<vmem>>, %arg3: memref<32x32xf32, #tpu.memory_space<vmem>>, %arg4: memref<16x8xf32, #tpu.memory_space<vmem>>, %arg5: memref<16x8xf32, #tpu.memory_space<vmem>>, %arg6: memref<16x32xf32, #tpu.memory_space<vmem>>) attributes {dimension_semantics = [], scalar_prefetch = 0 : i64, scratch_operands = 0 : i64, tpu.core_type = #tpu.core_type<tc>} {
    %c0 = arith.constant 0 : index
    %c0_0 = arith.constant 0 : index
    %0 = vector.load %arg0[%c0, %c0_0] : memref<16x32xf32, #tpu.memory_space<vmem>>, vector<16x32xf32>
    %1 = arith.mulf %0, %0 : vector<16x32xf32>
    %cst = arith.constant dense<0.000000e+00> : vector<16xf32>
    %2 = vector.multi_reduction <add>, %1, %cst [1] : vector<16x32xf32> to vector<16xf32>
    %3 = vector.shape_cast %2 : vector<16xf32> to vector<16x1xf32>
    %cst_1 = arith.constant 3.200000e+01 : f32
    %4 = vector.broadcast %cst_1 : f32 to vector<16x1xf32>
    %5 = arith.divf %3, %4 : vector<16x1xf32>
    %c0_2 = arith.constant 0 : index
    %c0_3 = arith.constant 0 : index
    %6 = vector.load %arg1[%c0_2, %c0_3] : memref<1x32xf32, #tpu.memory_space<vmem>>, vector<1x32xf32>
    %cst_4 = arith.constant 9.99999997E-7 : f32
    %7 = vector.broadcast %cst_4 : f32 to vector<16x1xf32>
    %8 = arith.addf %5, %7 : vector<16x1xf32>
    %9 = math.rsqrt %8 : vector<16x1xf32>
    %10 = vector.broadcast %9 : vector<16x1xf32> to vector<16x32xf32>
    %11 = arith.mulf %0, %10 : vector<16x32xf32>
    %12 = vector.broadcast %6 : vector<1x32xf32> to vector<16x32xf32>
    %13 = arith.mulf %12, %11 : vector<16x32xf32>
    %c0_5 = arith.constant 0 : index
    %c0_6 = arith.constant 0 : index
    %14 = vector.load %arg2[%c0_5, %c0_6] : memref<32x64xf32, #tpu.memory_space<vmem>>, vector<32x64xf32>
    %cst_7 = arith.constant dense<0.000000e+00> : vector<16x64xf32>
    %15 = tpu.matmul %13, %14, %cst_7 {dimension_numbers = #tpu.dot_dimension_numbers<[1], [0], [0], [1], [0, 0, 1, 1], [], []>} : vector<16x32xf32>, vector<32x64xf32>, vector<16x64xf32> -> vector<16x64xf32>
    %c0_8 = arith.constant 0 : index
    %c0_9 = arith.constant 0 : index
    %16 = vector.load %arg4[%c0_8, %c0_9] : memref<16x8xf32, #tpu.memory_space<vmem>>, vector<16x8xf32>
    %c0_10 = arith.constant 0 : index
    %c0_11 = arith.constant 0 : index
    %17 = vector.load %arg5[%c0_10, %c0_11] : memref<16x8xf32, #tpu.memory_space<vmem>>, vector<16x8xf32>
    %18 = vector.extract_strided_slice %15 {offsets = [0, 32], sizes = [16, 8], strides = [1, 1]} : vector<16x64xf32> to vector<16x8xf32>
    %19 = vector.extract_strided_slice %18 {offsets = [0, 4], sizes = [16, 4], strides = [1, 1]} : vector<16x8xf32> to vector<16x4xf32>
    %cst_12 = arith.constant 0.000000e+00 : f32
    %20 = vector.broadcast %cst_12 : f32 to vector<16x4xf32>
    %21 = arith.subf %20, %19 : vector<16x4xf32>
    %22 = vector.extract_strided_slice %18 {offsets = [0, 0], sizes = [16, 4], strides = [1, 1]} : vector<16x8xf32> to vector<16x4xf32>
    %23 = tpu.concatenate %21, %22 in 1 : vector<16x4xf32>, vector<16x4xf32> -> vector<16x8xf32>
    %24 = arith.mulf %18, %16 : vector<16x8xf32>
    %25 = arith.mulf %23, %17 : vector<16x8xf32>
    %26 = arith.addf %24, %25 : vector<16x8xf32>
    %27 = vector.extract_strided_slice %15 {offsets = [0, 40], sizes = [16, 8], strides = [1, 1]} : vector<16x64xf32> to vector<16x8xf32>
    %28 = vector.extract_strided_slice %27 {offsets = [0, 4], sizes = [16, 4], strides = [1, 1]} : vector<16x8xf32> to vector<16x4xf32>
    %cst_13 = arith.constant 0.000000e+00 : f32
    %29 = vector.broadcast %cst_13 : f32 to vector<16x4xf32>
    %30 = arith.subf %29, %28 : vector<16x4xf32>
    %31 = vector.extract_strided_slice %27 {offsets = [0, 0], sizes = [16, 4], strides = [1, 1]} : vector<16x8xf32> to vector<16x4xf32>
    %32 = tpu.concatenate %30, %31 in 1 : vector<16x4xf32>, vector<16x4xf32> -> vector<16x8xf32>
    %33 = arith.mulf %27, %16 : vector<16x8xf32>
    %34 = arith.mulf %32, %17 : vector<16x8xf32>
    %35 = arith.addf %33, %34 : vector<16x8xf32>
    %36 = vector.extract_strided_slice %15 {offsets = [0, 48], sizes = [16, 8], strides = [1, 1]} : vector<16x64xf32> to vector<16x8xf32>
    %37 = vector.extract_strided_slice %15 {offsets = [0, 56], sizes = [16, 8], strides = [1, 1]} : vector<16x64xf32> to vector<16x8xf32>
    %38 = vector.extract_strided_slice %15 {offsets = [0, 0], sizes = [16, 8], strides = [1, 1]} : vector<16x64xf32> to vector<16x8xf32>
    %39 = vector.extract_strided_slice %38 {offsets = [0, 4], sizes = [16, 4], strides = [1, 1]} : vector<16x8xf32> to vector<16x4xf32>
    %cst_14 = arith.constant 0.000000e+00 : f32
    %40 = vector.broadcast %cst_14 : f32 to vector<16x4xf32>
    %41 = arith.subf %40, %39 : vector<16x4xf32>
    %42 = vector.extract_strided_slice %38 {offsets = [0, 0], sizes = [16, 4], strides = [1, 1]} : vector<16x8xf32> to vector<16x4xf32>
    %43 = tpu.concatenate %41, %42 in 1 : vector<16x4xf32>, vector<16x4xf32> -> vector<16x8xf32>
    %44 = arith.mulf %38, %16 : vector<16x8xf32>
    %45 = arith.mulf %43, %17 : vector<16x8xf32>
    %46 = arith.addf %44, %45 : vector<16x8xf32>
    %47 = vector.extract_strided_slice %46 {offsets = [0, 0], sizes = [8, 8], strides = [1, 1]} : vector<16x8xf32> to vector<8x8xf32>
    %48 = vector.extract_strided_slice %26 {offsets = [0, 0], sizes = [8, 8], strides = [1, 1]} : vector<16x8xf32> to vector<8x8xf32>
    %49 = vector.extract_strided_slice %36 {offsets = [0, 0], sizes = [8, 8], strides = [1, 1]} : vector<16x8xf32> to vector<8x8xf32>
    %cst_15 = arith.constant dense<0.000000e+00> : vector<8x8xf32>
    %50 = tpu.matmul %47, %48, %cst_15 {dimension_numbers = #tpu.dot_dimension_numbers<[1], [1], [0], [0], [0, 0, 1, 0], [], []>} : vector<8x8xf32>, vector<8x8xf32>, vector<8x8xf32> -> vector<8x8xf32>
    %cst_16 = arith.constant 0.353553385 : f32
    %51 = vector.broadcast %cst_16 : f32 to vector<8x8xf32>
    %52 = arith.mulf %50, %51 : vector<8x8xf32>
    %cst_17 = arith.constant dense<0xFF800000> : vector<8xf32>
    %53 = vector.multi_reduction <maximumf>, %52, %cst_17 [1] : vector<8x8xf32> to vector<8xf32>
    %54 = vector.shape_cast %53 : vector<8xf32> to vector<8x1xf32>
    %55 = vector.broadcast %54 : vector<8x1xf32> to vector<8x8xf32>
    %56 = arith.subf %52, %55 : vector<8x8xf32>
    %57 = math.exp %56 : vector<8x8xf32>
    %cst_18 = arith.constant dense<0.000000e+00> : vector<8xf32>
    %58 = vector.multi_reduction <add>, %57, %cst_18 [1] : vector<8x8xf32> to vector<8xf32>
    %59 = vector.shape_cast %58 : vector<8xf32> to vector<8x1xf32>
    %cst_19 = arith.constant dense<0.000000e+00> : vector<8x8xf32>
    %60 = tpu.matmul %57, %49, %cst_19 {dimension_numbers = #tpu.dot_dimension_numbers<[1], [0], [0], [1], [0, 0, 1, 1], [], []>} : vector<8x8xf32>, vector<8x8xf32>, vector<8x8xf32> -> vector<8x8xf32>
    %61 = tpu.reciprocal %59 {approx = true} : vector<8x1xf32> -> vector<8x1xf32>
    %62 = vector.broadcast %61 : vector<8x1xf32> to vector<8x8xf32>
    %63 = arith.mulf %60, %62 : vector<8x8xf32>
    %64 = vector.extract_strided_slice %46 {offsets = [8, 0], sizes = [8, 8], strides = [1, 1]} : vector<16x8xf32> to vector<8x8xf32>
    %65 = vector.extract_strided_slice %26 {offsets = [8, 0], sizes = [8, 8], strides = [1, 1]} : vector<16x8xf32> to vector<8x8xf32>
    %66 = vector.extract_strided_slice %36 {offsets = [8, 0], sizes = [8, 8], strides = [1, 1]} : vector<16x8xf32> to vector<8x8xf32>
    %cst_20 = arith.constant dense<0.000000e+00> : vector<8x8xf32>
    %67 = tpu.matmul %64, %65, %cst_20 {dimension_numbers = #tpu.dot_dimension_numbers<[1], [1], [0], [0], [0, 0, 1, 0], [], []>} : vector<8x8xf32>, vector<8x8xf32>, vector<8x8xf32> -> vector<8x8xf32>
    %cst_21 = arith.constant 0.353553385 : f32
    %68 = vector.broadcast %cst_21 : f32 to vector<8x8xf32>
    %69 = arith.mulf %67, %68 : vector<8x8xf32>
    %cst_22 = arith.constant dense<0xFF800000> : vector<8xf32>
    %70 = vector.multi_reduction <maximumf>, %69, %cst_22 [1] : vector<8x8xf32> to vector<8xf32>
    %71 = vector.shape_cast %70 : vector<8xf32> to vector<8x1xf32>
    %72 = vector.broadcast %71 : vector<8x1xf32> to vector<8x8xf32>
    %73 = arith.subf %69, %72 : vector<8x8xf32>
    %74 = math.exp %73 : vector<8x8xf32>
    %cst_23 = arith.constant dense<0.000000e+00> : vector<8xf32>
    %75 = vector.multi_reduction <add>, %74, %cst_23 [1] : vector<8x8xf32> to vector<8xf32>
    %76 = vector.shape_cast %75 : vector<8xf32> to vector<8x1xf32>
    %cst_24 = arith.constant dense<0.000000e+00> : vector<8x8xf32>
    %77 = tpu.matmul %74, %66, %cst_24 {dimension_numbers = #tpu.dot_dimension_numbers<[1], [0], [0], [1], [0, 0, 1, 1], [], []>} : vector<8x8xf32>, vector<8x8xf32>, vector<8x8xf32> -> vector<8x8xf32>
    %78 = tpu.reciprocal %76 {approx = true} : vector<8x1xf32> -> vector<8x1xf32>
    %79 = vector.broadcast %78 : vector<8x1xf32> to vector<8x8xf32>
    %80 = arith.mulf %77, %79 : vector<8x8xf32>
    %81 = tpu.concatenate %63, %80 in 0 : vector<8x8xf32>, vector<8x8xf32> -> vector<16x8xf32>
    %82 = vector.extract_strided_slice %15 {offsets = [0, 8], sizes = [16, 8], strides = [1, 1]} : vector<16x64xf32> to vector<16x8xf32>
    %83 = vector.extract_strided_slice %82 {offsets = [0, 4], sizes = [16, 4], strides = [1, 1]} : vector<16x8xf32> to vector<16x4xf32>
    %cst_25 = arith.constant 0.000000e+00 : f32
    %84 = vector.broadcast %cst_25 : f32 to vector<16x4xf32>
    %85 = arith.subf %84, %83 : vector<16x4xf32>
    %86 = vector.extract_strided_slice %82 {offsets = [0, 0], sizes = [16, 4], strides = [1, 1]} : vector<16x8xf32> to vector<16x4xf32>
    %87 = tpu.concatenate %85, %86 in 1 : vector<16x4xf32>, vector<16x4xf32> -> vector<16x8xf32>
    %88 = arith.mulf %82, %16 : vector<16x8xf32>
    %89 = arith.mulf %87, %17 : vector<16x8xf32>
    %90 = arith.addf %88, %89 : vector<16x8xf32>
    %91 = vector.extract_strided_slice %90 {offsets = [0, 0], sizes = [8, 8], strides = [1, 1]} : vector<16x8xf32> to vector<8x8xf32>
    %92 = vector.extract_strided_slice %26 {offsets = [0, 0], sizes = [8, 8], strides = [1, 1]} : vector<16x8xf32> to vector<8x8xf32>
    %93 = vector.extract_strided_slice %36 {offsets = [0, 0], sizes = [8, 8], strides = [1, 1]} : vector<16x8xf32> to vector<8x8xf32>
    %cst_26 = arith.constant dense<0.000000e+00> : vector<8x8xf32>
    %94 = tpu.matmul %91, %92, %cst_26 {dimension_numbers = #tpu.dot_dimension_numbers<[1], [1], [0], [0], [0, 0, 1, 0], [], []>} : vector<8x8xf32>, vector<8x8xf32>, vector<8x8xf32> -> vector<8x8xf32>
    %cst_27 = arith.constant 0.353553385 : f32
    %95 = vector.broadcast %cst_27 : f32 to vector<8x8xf32>
    %96 = arith.mulf %94, %95 : vector<8x8xf32>
    %cst_28 = arith.constant dense<0xFF800000> : vector<8xf32>
    %97 = vector.multi_reduction <maximumf>, %96, %cst_28 [1] : vector<8x8xf32> to vector<8xf32>
    %98 = vector.shape_cast %97 : vector<8xf32> to vector<8x1xf32>
    %99 = vector.broadcast %98 : vector<8x1xf32> to vector<8x8xf32>
    %100 = arith.subf %96, %99 : vector<8x8xf32>
    %101 = math.exp %100 : vector<8x8xf32>
    %cst_29 = arith.constant dense<0.000000e+00> : vector<8xf32>
    %102 = vector.multi_reduction <add>, %101, %cst_29 [1] : vector<8x8xf32> to vector<8xf32>
    %103 = vector.shape_cast %102 : vector<8xf32> to vector<8x1xf32>
    %cst_30 = arith.constant dense<0.000000e+00> : vector<8x8xf32>
    %104 = tpu.matmul %101, %93, %cst_30 {dimension_numbers = #tpu.dot_dimension_numbers<[1], [0], [0], [1], [0, 0, 1, 1], [], []>} : vector<8x8xf32>, vector<8x8xf32>, vector<8x8xf32> -> vector<8x8xf32>
    %105 = tpu.reciprocal %103 {approx = true} : vector<8x1xf32> -> vector<8x1xf32>
    %106 = vector.broadcast %105 : vector<8x1xf32> to vector<8x8xf32>
    %107 = arith.mulf %104, %106 : vector<8x8xf32>
    %108 = vector.extract_strided_slice %90 {offsets = [8, 0], sizes = [8, 8], strides = [1, 1]} : vector<16x8xf32> to vector<8x8xf32>
    %109 = vector.extract_strided_slice %26 {offsets = [8, 0], sizes = [8, 8], strides = [1, 1]} : vector<16x8xf32> to vector<8x8xf32>
    %110 = vector.extract_strided_slice %36 {offsets = [8, 0], sizes = [8, 8], strides = [1, 1]} : vector<16x8xf32> to vector<8x8xf32>
    %cst_31 = arith.constant dense<0.000000e+00> : vector<8x8xf32>
    %111 = tpu.matmul %108, %109, %cst_31 {dimension_numbers = #tpu.dot_dimension_numbers<[1], [1], [0], [0], [0, 0, 1, 0], [], []>} : vector<8x8xf32>, vector<8x8xf32>, vector<8x8xf32> -> vector<8x8xf32>
    %cst_32 = arith.constant 0.353553385 : f32
    %112 = vector.broadcast %cst_32 : f32 to vector<8x8xf32>
    %113 = arith.mulf %111, %112 : vector<8x8xf32>
    %cst_33 = arith.constant dense<0xFF800000> : vector<8xf32>
    %114 = vector.multi_reduction <maximumf>, %113, %cst_33 [1] : vector<8x8xf32> to vector<8xf32>
    %115 = vector.shape_cast %114 : vector<8xf32> to vector<8x1xf32>
    %116 = vector.broadcast %115 : vector<8x1xf32> to vector<8x8xf32>
    %117 = arith.subf %113, %116 : vector<8x8xf32>
    %118 = math.exp %117 : vector<8x8xf32>
    %cst_34 = arith.constant dense<0.000000e+00> : vector<8xf32>
    %119 = vector.multi_reduction <add>, %118, %cst_34 [1] : vector<8x8xf32> to vector<8xf32>
    %120 = vector.shape_cast %119 : vector<8xf32> to vector<8x1xf32>
    %cst_35 = arith.constant dense<0.000000e+00> : vector<8x8xf32>
    %121 = tpu.matmul %118, %110, %cst_35 {dimension_numbers = #tpu.dot_dimension_numbers<[1], [0], [0], [1], [0, 0, 1, 1], [], []>} : vector<8x8xf32>, vector<8x8xf32>, vector<8x8xf32> -> vector<8x8xf32>
    %122 = tpu.reciprocal %120 {approx = true} : vector<8x1xf32> -> vector<8x1xf32>
    %123 = vector.broadcast %122 : vector<8x1xf32> to vector<8x8xf32>
    %124 = arith.mulf %121, %123 : vector<8x8xf32>
    %125 = tpu.concatenate %107, %124 in 0 : vector<8x8xf32>, vector<8x8xf32> -> vector<16x8xf32>
    %126 = vector.extract_strided_slice %15 {offsets = [0, 16], sizes = [16, 8], strides = [1, 1]} : vector<16x64xf32> to vector<16x8xf32>
    %127 = vector.extract_strided_slice %126 {offsets = [0, 4], sizes = [16, 4], strides = [1, 1]} : vector<16x8xf32> to vector<16x4xf32>
    %cst_36 = arith.constant 0.000000e+00 : f32
    %128 = vector.broadcast %cst_36 : f32 to vector<16x4xf32>
    %129 = arith.subf %128, %127 : vector<16x4xf32>
    %130 = vector.extract_strided_slice %126 {offsets = [0, 0], sizes = [16, 4], strides = [1, 1]} : vector<16x8xf32> to vector<16x4xf32>
    %131 = tpu.concatenate %129, %130 in 1 : vector<16x4xf32>, vector<16x4xf32> -> vector<16x8xf32>
    %132 = arith.mulf %126, %16 : vector<16x8xf32>
    %133 = arith.mulf %131, %17 : vector<16x8xf32>
    %134 = arith.addf %132, %133 : vector<16x8xf32>
    %135 = vector.extract_strided_slice %134 {offsets = [0, 0], sizes = [8, 8], strides = [1, 1]} : vector<16x8xf32> to vector<8x8xf32>
    %136 = vector.extract_strided_slice %35 {offsets = [0, 0], sizes = [8, 8], strides = [1, 1]} : vector<16x8xf32> to vector<8x8xf32>
    %137 = vector.extract_strided_slice %37 {offsets = [0, 0], sizes = [8, 8], strides = [1, 1]} : vector<16x8xf32> to vector<8x8xf32>
    %cst_37 = arith.constant dense<0.000000e+00> : vector<8x8xf32>
    %138 = tpu.matmul %135, %136, %cst_37 {dimension_numbers = #tpu.dot_dimension_numbers<[1], [1], [0], [0], [0, 0, 1, 0], [], []>} : vector<8x8xf32>, vector<8x8xf32>, vector<8x8xf32> -> vector<8x8xf32>
    %cst_38 = arith.constant 0.353553385 : f32
    %139 = vector.broadcast %cst_38 : f32 to vector<8x8xf32>
    %140 = arith.mulf %138, %139 : vector<8x8xf32>
    %cst_39 = arith.constant dense<0xFF800000> : vector<8xf32>
    %141 = vector.multi_reduction <maximumf>, %140, %cst_39 [1] : vector<8x8xf32> to vector<8xf32>
    %142 = vector.shape_cast %141 : vector<8xf32> to vector<8x1xf32>
    %143 = vector.broadcast %142 : vector<8x1xf32> to vector<8x8xf32>
    %144 = arith.subf %140, %143 : vector<8x8xf32>
    %145 = math.exp %144 : vector<8x8xf32>
    %cst_40 = arith.constant dense<0.000000e+00> : vector<8xf32>
    %146 = vector.multi_reduction <add>, %145, %cst_40 [1] : vector<8x8xf32> to vector<8xf32>
    %147 = vector.shape_cast %146 : vector<8xf32> to vector<8x1xf32>
    %cst_41 = arith.constant dense<0.000000e+00> : vector<8x8xf32>
    %148 = tpu.matmul %145, %137, %cst_41 {dimension_numbers = #tpu.dot_dimension_numbers<[1], [0], [0], [1], [0, 0, 1, 1], [], []>} : vector<8x8xf32>, vector<8x8xf32>, vector<8x8xf32> -> vector<8x8xf32>
    %149 = tpu.reciprocal %147 {approx = true} : vector<8x1xf32> -> vector<8x1xf32>
    %150 = vector.broadcast %149 : vector<8x1xf32> to vector<8x8xf32>
    %151 = arith.mulf %148, %150 : vector<8x8xf32>
    %152 = vector.extract_strided_slice %134 {offsets = [8, 0], sizes = [8, 8], strides = [1, 1]} : vector<16x8xf32> to vector<8x8xf32>
    %153 = vector.extract_strided_slice %35 {offsets = [8, 0], sizes = [8, 8], strides = [1, 1]} : vector<16x8xf32> to vector<8x8xf32>
    %154 = vector.extract_strided_slice %37 {offsets = [8, 0], sizes = [8, 8], strides = [1, 1]} : vector<16x8xf32> to vector<8x8xf32>
    %cst_42 = arith.constant dense<0.000000e+00> : vector<8x8xf32>
    %155 = tpu.matmul %152, %153, %cst_42 {dimension_numbers = #tpu.dot_dimension_numbers<[1], [1], [0], [0], [0, 0, 1, 0], [], []>} : vector<8x8xf32>, vector<8x8xf32>, vector<8x8xf32> -> vector<8x8xf32>
    %cst_43 = arith.constant 0.353553385 : f32
    %156 = vector.broadcast %cst_43 : f32 to vector<8x8xf32>
    %157 = arith.mulf %155, %156 : vector<8x8xf32>
    %cst_44 = arith.constant dense<0xFF800000> : vector<8xf32>
    %158 = vector.multi_reduction <maximumf>, %157, %cst_44 [1] : vector<8x8xf32> to vector<8xf32>
    %159 = vector.shape_cast %158 : vector<8xf32> to vector<8x1xf32>
    %160 = vector.broadcast %159 : vector<8x1xf32> to vector<8x8xf32>
    %161 = arith.subf %157, %160 : vector<8x8xf32>
    %162 = math.exp %161 : vector<8x8xf32>
    %cst_45 = arith.constant dense<0.000000e+00> : vector<8xf32>
    %163 = vector.multi_reduction <add>, %162, %cst_45 [1] : vector<8x8xf32> to vector<8xf32>
    %164 = vector.shape_cast %163 : vector<8xf32> to vector<8x1xf32>
    %cst_46 = arith.constant dense<0.000000e+00> : vector<8x8xf32>
    %165 = tpu.matmul %162, %154, %cst_46 {dimension_numbers = #tpu.dot_dimension_numbers<[1], [0], [0], [1], [0, 0, 1, 1], [], []>} : vector<8x8xf32>, vector<8x8xf32>, vector<8x8xf32> -> vector<8x8xf32>
    %166 = tpu.reciprocal %164 {approx = true} : vector<8x1xf32> -> vector<8x1xf32>
    %167 = vector.broadcast %166 : vector<8x1xf32> to vector<8x8xf32>
    %168 = arith.mulf %165, %167 : vector<8x8xf32>
    %169 = tpu.concatenate %151, %168 in 0 : vector<8x8xf32>, vector<8x8xf32> -> vector<16x8xf32>
    %170 = vector.extract_strided_slice %15 {offsets = [0, 24], sizes = [16, 8], strides = [1, 1]} : vector<16x64xf32> to vector<16x8xf32>
    %171 = vector.extract_strided_slice %170 {offsets = [0, 4], sizes = [16, 4], strides = [1, 1]} : vector<16x8xf32> to vector<16x4xf32>
    %cst_47 = arith.constant 0.000000e+00 : f32
    %172 = vector.broadcast %cst_47 : f32 to vector<16x4xf32>
    %173 = arith.subf %172, %171 : vector<16x4xf32>
    %174 = vector.extract_strided_slice %170 {offsets = [0, 0], sizes = [16, 4], strides = [1, 1]} : vector<16x8xf32> to vector<16x4xf32>
    %175 = tpu.concatenate %173, %174 in 1 : vector<16x4xf32>, vector<16x4xf32> -> vector<16x8xf32>
    %176 = arith.mulf %170, %16 : vector<16x8xf32>
    %177 = arith.mulf %175, %17 : vector<16x8xf32>
    %178 = arith.addf %176, %177 : vector<16x8xf32>
    %179 = vector.extract_strided_slice %178 {offsets = [0, 0], sizes = [8, 8], strides = [1, 1]} : vector<16x8xf32> to vector<8x8xf32>
    %180 = vector.extract_strided_slice %35 {offsets = [0, 0], sizes = [8, 8], strides = [1, 1]} : vector<16x8xf32> to vector<8x8xf32>
    %181 = vector.extract_strided_slice %37 {offsets = [0, 0], sizes = [8, 8], strides = [1, 1]} : vector<16x8xf32> to vector<8x8xf32>
    %cst_48 = arith.constant dense<0.000000e+00> : vector<8x8xf32>
    %182 = tpu.matmul %179, %180, %cst_48 {dimension_numbers = #tpu.dot_dimension_numbers<[1], [1], [0], [0], [0, 0, 1, 0], [], []>} : vector<8x8xf32>, vector<8x8xf32>, vector<8x8xf32> -> vector<8x8xf32>
    %cst_49 = arith.constant 0.353553385 : f32
    %183 = vector.broadcast %cst_49 : f32 to vector<8x8xf32>
    %184 = arith.mulf %182, %183 : vector<8x8xf32>
    %cst_50 = arith.constant dense<0xFF800000> : vector<8xf32>
    %185 = vector.multi_reduction <maximumf>, %184, %cst_50 [1] : vector<8x8xf32> to vector<8xf32>
    %186 = vector.shape_cast %185 : vector<8xf32> to vector<8x1xf32>
    %187 = vector.broadcast %186 : vector<8x1xf32> to vector<8x8xf32>
    %188 = arith.subf %184, %187 : vector<8x8xf32>
    %189 = math.exp %188 : vector<8x8xf32>
    %cst_51 = arith.constant dense<0.000000e+00> : vector<8xf32>
    %190 = vector.multi_reduction <add>, %189, %cst_51 [1] : vector<8x8xf32> to vector<8xf32>
    %191 = vector.shape_cast %190 : vector<8xf32> to vector<8x1xf32>
    %cst_52 = arith.constant dense<0.000000e+00> : vector<8x8xf32>
    %192 = tpu.matmul %189, %181, %cst_52 {dimension_numbers = #tpu.dot_dimension_numbers<[1], [0], [0], [1], [0, 0, 1, 1], [], []>} : vector<8x8xf32>, vector<8x8xf32>, vector<8x8xf32> -> vector<8x8xf32>
    %193 = tpu.reciprocal %191 {approx = true} : vector<8x1xf32> -> vector<8x1xf32>
    %194 = vector.broadcast %193 : vector<8x1xf32> to vector<8x8xf32>
    %195 = arith.mulf %192, %194 : vector<8x8xf32>
    %196 = vector.extract_strided_slice %178 {offsets = [8, 0], sizes = [8, 8], strides = [1, 1]} : vector<16x8xf32> to vector<8x8xf32>
    %197 = vector.extract_strided_slice %35 {offsets = [8, 0], sizes = [8, 8], strides = [1, 1]} : vector<16x8xf32> to vector<8x8xf32>
    %198 = vector.extract_strided_slice %37 {offsets = [8, 0], sizes = [8, 8], strides = [1, 1]} : vector<16x8xf32> to vector<8x8xf32>
    %cst_53 = arith.constant dense<0.000000e+00> : vector<8x8xf32>
    %199 = tpu.matmul %196, %197, %cst_53 {dimension_numbers = #tpu.dot_dimension_numbers<[1], [1], [0], [0], [0, 0, 1, 0], [], []>} : vector<8x8xf32>, vector<8x8xf32>, vector<8x8xf32> -> vector<8x8xf32>
    %cst_54 = arith.constant 0.353553385 : f32
    %200 = vector.broadcast %cst_54 : f32 to vector<8x8xf32>
    %201 = arith.mulf %199, %200 : vector<8x8xf32>
    %cst_55 = arith.constant dense<0xFF800000> : vector<8xf32>
    %202 = vector.multi_reduction <maximumf>, %201, %cst_55 [1] : vector<8x8xf32> to vector<8xf32>
    %203 = vector.shape_cast %202 : vector<8xf32> to vector<8x1xf32>
    %204 = vector.broadcast %203 : vector<8x1xf32> to vector<8x8xf32>
    %205 = arith.subf %201, %204 : vector<8x8xf32>
    %206 = math.exp %205 : vector<8x8xf32>
    %cst_56 = arith.constant dense<0.000000e+00> : vector<8xf32>
    %207 = vector.multi_reduction <add>, %206, %cst_56 [1] : vector<8x8xf32> to vector<8xf32>
    %208 = vector.shape_cast %207 : vector<8xf32> to vector<8x1xf32>
    %cst_57 = arith.constant dense<0.000000e+00> : vector<8x8xf32>
    %209 = tpu.matmul %206, %198, %cst_57 {dimension_numbers = #tpu.dot_dimension_numbers<[1], [0], [0], [1], [0, 0, 1, 1], [], []>} : vector<8x8xf32>, vector<8x8xf32>, vector<8x8xf32> -> vector<8x8xf32>
    %210 = tpu.reciprocal %208 {approx = true} : vector<8x1xf32> -> vector<8x1xf32>
    %211 = vector.broadcast %210 : vector<8x1xf32> to vector<8x8xf32>
    %212 = arith.mulf %209, %211 : vector<8x8xf32>
    %213 = tpu.concatenate %195, %212 in 0 : vector<8x8xf32>, vector<8x8xf32> -> vector<16x8xf32>
    %214 = tpu.concatenate %81, %125, %169, %213 in 1 : vector<16x8xf32>, vector<16x8xf32>, vector<16x8xf32>, vector<16x8xf32> -> vector<16x32xf32>
    %c0_58 = arith.constant 0 : index
    %c0_59 = arith.constant 0 : index
    %215 = vector.load %arg3[%c0_58, %c0_59] : memref<32x32xf32, #tpu.memory_space<vmem>>, vector<32x32xf32>
    %cst_60 = arith.constant dense<0.000000e+00> : vector<16x32xf32>
    %216 = tpu.matmul %214, %215, %cst_60 {dimension_numbers = #tpu.dot_dimension_numbers<[1], [0], [0], [1], [0, 0, 1, 1], [], []>} : vector<16x32xf32>, vector<32x32xf32>, vector<16x32xf32> -> vector<16x32xf32>
    %217 = arith.addf %0, %216 : vector<16x32xf32>
    %c0_61 = arith.constant 0 : index
    %c0_62 = arith.constant 0 : index
    %218 = vector.load %arg6[%c0_61, %c0_62] : memref<16x32xf32, #tpu.memory_space<vmem>>, vector<16x32xf32>
    tpu.vector_store %arg6[%c0_61, %c0_62], %217 {strides = array<i32>} : memref<16x32xf32, #tpu.memory_space<vmem>>, vector<16x32xf32>,
    return
  }
}

module attributes {stable_mosaic.version = 11 : i64} {
  func.func @_moe_block_kernel(%arg0: memref<16x32xf32, #tpu.memory_space<vmem>>, %arg1: memref<1x32xf32, #tpu.memory_space<vmem>>, %arg2: memref<32x4xf32, #tpu.memory_space<vmem>>, %arg3: memref<4x32x64xf32, #tpu.memory_space<vmem>>, %arg4: memref<4x32x64xf32, #tpu.memory_space<vmem>>, %arg5: memref<4x64x32xf32, #tpu.memory_space<vmem>>, %arg6: memref<16x32xf32, #tpu.memory_space<vmem>>, %arg7: memref<16x4xf32, #tpu.memory_space<vmem>>) attributes {dimension_semantics = [], scalar_prefetch = 0 : i64, scratch_operands = 0 : i64, tpu.core_type = #tpu.core_type<tc>} {
    %c0 = arith.constant 0 : index
    %c0_0 = arith.constant 0 : index
    %0 = vector.load %arg0[%c0, %c0_0] : memref<16x32xf32, #tpu.memory_space<vmem>>, vector<16x32xf32>
    %1 = arith.mulf %0, %0 : vector<16x32xf32>
    %cst = arith.constant dense<0.000000e+00> : vector<16xf32>
    %2 = vector.multi_reduction <add>, %1, %cst [1] : vector<16x32xf32> to vector<16xf32>
    %3 = vector.shape_cast %2 : vector<16xf32> to vector<16x1xf32>
    %cst_1 = arith.constant 3.200000e+01 : f32
    %4 = vector.broadcast %cst_1 : f32 to vector<16x1xf32>
    %5 = arith.divf %3, %4 : vector<16x1xf32>
    %c0_2 = arith.constant 0 : index
    %c0_3 = arith.constant 0 : index
    %6 = vector.load %arg1[%c0_2, %c0_3] : memref<1x32xf32, #tpu.memory_space<vmem>>, vector<1x32xf32>
    %cst_4 = arith.constant 9.99999997E-7 : f32
    %7 = vector.broadcast %cst_4 : f32 to vector<16x1xf32>
    %8 = arith.addf %5, %7 : vector<16x1xf32>
    %9 = math.rsqrt %8 : vector<16x1xf32>
    %10 = vector.broadcast %9 : vector<16x1xf32> to vector<16x32xf32>
    %11 = arith.mulf %0, %10 : vector<16x32xf32>
    %12 = vector.broadcast %6 : vector<1x32xf32> to vector<16x32xf32>
    %13 = arith.mulf %12, %11 : vector<16x32xf32>
    %c0_5 = arith.constant 0 : index
    %c0_6 = arith.constant 0 : index
    %14 = vector.load %arg2[%c0_5, %c0_6] : memref<32x4xf32, #tpu.memory_space<vmem>>, vector<32x4xf32>
    %cst_7 = arith.constant dense<0.000000e+00> : vector<16x4xf32>
    %15 = tpu.matmul %13, %14, %cst_7 {dimension_numbers = #tpu.dot_dimension_numbers<[1], [0], [0], [1], [0, 0, 1, 1], [], []>} : vector<16x32xf32>, vector<32x4xf32>, vector<16x4xf32> -> vector<16x4xf32>
    %c0_8 = arith.constant 0 : index
    %c0_9 = arith.constant 0 : index
    %16 = vector.load %arg7[%c0_8, %c0_9] : memref<16x4xf32, #tpu.memory_space<vmem>>, vector<16x4xf32>
    tpu.vector_store %arg7[%c0_8, %c0_9], %15 {strides = array<i32>} : memref<16x4xf32, #tpu.memory_space<vmem>>, vector<16x4xf32>,
    %cst_10 = arith.constant dense<0xFF800000> : vector<16xf32>
    %17 = vector.multi_reduction <maximumf>, %15, %cst_10 [1] : vector<16x4xf32> to vector<16xf32>
    %18 = vector.shape_cast %17 : vector<16xf32> to vector<16x1xf32>
    %19 = vector.broadcast %18 : vector<16x1xf32> to vector<16x4xf32>
    %20 = arith.subf %15, %19 : vector<16x4xf32>
    %21 = math.exp %20 : vector<16x4xf32>
    %cst_11 = arith.constant dense<0.000000e+00> : vector<16xf32>
    %22 = vector.multi_reduction <add>, %21, %cst_11 [1] : vector<16x4xf32> to vector<16xf32>
    %23 = vector.shape_cast %22 : vector<16xf32> to vector<16x1xf32>
    %24 = vector.broadcast %23 : vector<16x1xf32> to vector<16x4xf32>
    %25 = arith.divf %21, %24 : vector<16x4xf32>
    %26 = vector.extract_strided_slice %25 {offsets = [0, 0], sizes = [16, 1], strides = [1, 1]} : vector<16x4xf32> to vector<16x1xf32>
    %27 = vector.extract_strided_slice %25 {offsets = [0, 1], sizes = [16, 1], strides = [1, 1]} : vector<16x4xf32> to vector<16x1xf32>
    %28 = vector.extract_strided_slice %25 {offsets = [0, 2], sizes = [16, 1], strides = [1, 1]} : vector<16x4xf32> to vector<16x1xf32>
    %29 = vector.extract_strided_slice %25 {offsets = [0, 3], sizes = [16, 1], strides = [1, 1]} : vector<16x4xf32> to vector<16x1xf32>
    %cst_12 = arith.constant 0.000000e+00 : f32
    %30 = vector.broadcast %cst_12 : f32 to vector<16x1xf32>
    %31 = arith.cmpf ogt, %27, %26 : vector<16x1xf32>
    %32 = arith.extui %31 : vector<16x1xi1> to vector<16x1xi32>
    %33 = arith.sitofp %32 : vector<16x1xi32> to vector<16x1xf32>
    %34 = arith.addf %30, %33 : vector<16x1xf32>
    %35 = arith.cmpf ogt, %28, %26 : vector<16x1xf32>
    %36 = arith.extui %35 : vector<16x1xi1> to vector<16x1xi32>
    %37 = arith.sitofp %36 : vector<16x1xi32> to vector<16x1xf32>
    %38 = arith.addf %34, %37 : vector<16x1xf32>
    %39 = arith.cmpf ogt, %29, %26 : vector<16x1xf32>
    %40 = arith.extui %39 : vector<16x1xi1> to vector<16x1xi32>
    %41 = arith.sitofp %40 : vector<16x1xi32> to vector<16x1xf32>
    %42 = arith.addf %38, %41 : vector<16x1xf32>
    %cst_13 = arith.constant 2.000000e+00 : f32
    %43 = vector.broadcast %cst_13 : f32 to vector<16x1xf32>
    %44 = arith.cmpf olt, %42, %43 : vector<16x1xf32>
    %45 = arith.extui %44 : vector<16x1xi1> to vector<16x1xi32>
    %46 = arith.sitofp %45 : vector<16x1xi32> to vector<16x1xf32>
    %cst_14 = arith.constant 0.000000e+00 : f32
    %47 = vector.broadcast %cst_14 : f32 to vector<16x1xf32>
    %48 = arith.cmpf oge, %26, %27 : vector<16x1xf32>
    %49 = arith.extui %48 : vector<16x1xi1> to vector<16x1xi32>
    %50 = arith.sitofp %49 : vector<16x1xi32> to vector<16x1xf32>
    %51 = arith.addf %47, %50 : vector<16x1xf32>
    %52 = arith.cmpf ogt, %28, %27 : vector<16x1xf32>
    %53 = arith.extui %52 : vector<16x1xi1> to vector<16x1xi32>
    %54 = arith.sitofp %53 : vector<16x1xi32> to vector<16x1xf32>
    %55 = arith.addf %51, %54 : vector<16x1xf32>
    %56 = arith.cmpf ogt, %29, %27 : vector<16x1xf32>
    %57 = arith.extui %56 : vector<16x1xi1> to vector<16x1xi32>
    %58 = arith.sitofp %57 : vector<16x1xi32> to vector<16x1xf32>
    %59 = arith.addf %55, %58 : vector<16x1xf32>
    %cst_15 = arith.constant 2.000000e+00 : f32
    %60 = vector.broadcast %cst_15 : f32 to vector<16x1xf32>
    %61 = arith.cmpf olt, %59, %60 : vector<16x1xf32>
    %62 = arith.extui %61 : vector<16x1xi1> to vector<16x1xi32>
    %63 = arith.sitofp %62 : vector<16x1xi32> to vector<16x1xf32>
    %cst_16 = arith.constant 0.000000e+00 : f32
    %64 = vector.broadcast %cst_16 : f32 to vector<16x1xf32>
    %65 = arith.cmpf oge, %26, %28 : vector<16x1xf32>
    %66 = arith.extui %65 : vector<16x1xi1> to vector<16x1xi32>
    %67 = arith.sitofp %66 : vector<16x1xi32> to vector<16x1xf32>
    %68 = arith.addf %64, %67 : vector<16x1xf32>
    %69 = arith.cmpf oge, %27, %28 : vector<16x1xf32>
    %70 = arith.extui %69 : vector<16x1xi1> to vector<16x1xi32>
    %71 = arith.sitofp %70 : vector<16x1xi32> to vector<16x1xf32>
    %72 = arith.addf %68, %71 : vector<16x1xf32>
    %73 = arith.cmpf ogt, %29, %28 : vector<16x1xf32>
    %74 = arith.extui %73 : vector<16x1xi1> to vector<16x1xi32>
    %75 = arith.sitofp %74 : vector<16x1xi32> to vector<16x1xf32>
    %76 = arith.addf %72, %75 : vector<16x1xf32>
    %cst_17 = arith.constant 2.000000e+00 : f32
    %77 = vector.broadcast %cst_17 : f32 to vector<16x1xf32>
    %78 = arith.cmpf olt, %76, %77 : vector<16x1xf32>
    %79 = arith.extui %78 : vector<16x1xi1> to vector<16x1xi32>
    %80 = arith.sitofp %79 : vector<16x1xi32> to vector<16x1xf32>
    %cst_18 = arith.constant 0.000000e+00 : f32
    %81 = vector.broadcast %cst_18 : f32 to vector<16x1xf32>
    %82 = arith.cmpf oge, %26, %29 : vector<16x1xf32>
    %83 = arith.extui %82 : vector<16x1xi1> to vector<16x1xi32>
    %84 = arith.sitofp %83 : vector<16x1xi32> to vector<16x1xf32>
    %85 = arith.addf %81, %84 : vector<16x1xf32>
    %86 = arith.cmpf oge, %27, %29 : vector<16x1xf32>
    %87 = arith.extui %86 : vector<16x1xi1> to vector<16x1xi32>
    %88 = arith.sitofp %87 : vector<16x1xi32> to vector<16x1xf32>
    %89 = arith.addf %85, %88 : vector<16x1xf32>
    %90 = arith.cmpf oge, %28, %29 : vector<16x1xf32>
    %91 = arith.extui %90 : vector<16x1xi1> to vector<16x1xi32>
    %92 = arith.sitofp %91 : vector<16x1xi32> to vector<16x1xf32>
    %93 = arith.addf %89, %92 : vector<16x1xf32>
    %cst_19 = arith.constant 2.000000e+00 : f32
    %94 = vector.broadcast %cst_19 : f32 to vector<16x1xf32>
    %95 = arith.cmpf olt, %93, %94 : vector<16x1xf32>
    %96 = arith.extui %95 : vector<16x1xi1> to vector<16x1xi32>
    %97 = arith.sitofp %96 : vector<16x1xi32> to vector<16x1xf32>
    %98 = tpu.concatenate %46, %63, %80, %97 in 1 : vector<16x1xf32>, vector<16x1xf32>, vector<16x1xf32>, vector<16x1xf32> -> vector<16x4xf32>
    %99 = arith.mulf %25, %98 : vector<16x4xf32>
    %cst_20 = arith.constant dense<0.000000e+00> : vector<16xf32>
    %100 = vector.multi_reduction <add>, %99, %cst_20 [1] : vector<16x4xf32> to vector<16xf32>
    %101 = vector.shape_cast %100 : vector<16xf32> to vector<16x1xf32>
    %102 = vector.broadcast %101 : vector<16x1xf32> to vector<16x4xf32>
    %103 = arith.divf %99, %102 : vector<16x4xf32>
    %c0_21 = arith.constant 0 : index
    %c0_22 = arith.constant 0 : index
    %c0_23 = arith.constant 0 : index
    %104 = vector.load %arg3[%c0_21, %c0_22, %c0_23] : memref<4x32x64xf32, #tpu.memory_space<vmem>>, vector<1x32x64xf32>
    %105 = vector.shape_cast %104 : vector<1x32x64xf32> to vector<32x64xf32>
    %cst_24 = arith.constant dense<0.000000e+00> : vector<16x64xf32>
    %106 = tpu.matmul %13, %105, %cst_24 {dimension_numbers = #tpu.dot_dimension_numbers<[1], [0], [0], [1], [0, 0, 1, 1], [], []>} : vector<16x32xf32>, vector<32x64xf32>, vector<16x64xf32> -> vector<16x64xf32>
    %c0_25 = arith.constant 0 : index
    %c0_26 = arith.constant 0 : index
    %c0_27 = arith.constant 0 : index
    %107 = vector.load %arg4[%c0_25, %c0_26, %c0_27] : memref<4x32x64xf32, #tpu.memory_space<vmem>>, vector<1x32x64xf32>
    %108 = vector.shape_cast %107 : vector<1x32x64xf32> to vector<32x64xf32>
    %cst_28 = arith.constant dense<0.000000e+00> : vector<16x64xf32>
    %109 = tpu.matmul %13, %108, %cst_28 {dimension_numbers = #tpu.dot_dimension_numbers<[1], [0], [0], [1], [0, 0, 1, 1], [], []>} : vector<16x32xf32>, vector<32x64xf32>, vector<16x64xf32> -> vector<16x64xf32>
    %110 = arith.negf %106 : vector<16x64xf32>
    %111 = math.exp %110 : vector<16x64xf32>
    %cst_29 = arith.constant 1.000000e+00 : f32
    %112 = vector.broadcast %cst_29 : f32 to vector<16x64xf32>
    %113 = arith.addf %112, %111 : vector<16x64xf32>
    %114 = arith.divf %112, %113 : vector<16x64xf32>
    %115 = arith.mulf %106, %114 : vector<16x64xf32>
    %116 = arith.mulf %115, %109 : vector<16x64xf32>
    %c0_30 = arith.constant 0 : index
    %c0_31 = arith.constant 0 : index
    %c0_32 = arith.constant 0 : index
    %117 = vector.load %arg5[%c0_30, %c0_31, %c0_32] : memref<4x64x32xf32, #tpu.memory_space<vmem>>, vector<1x64x32xf32>
    %118 = vector.shape_cast %117 : vector<1x64x32xf32> to vector<64x32xf32>
    %cst_33 = arith.constant dense<0.000000e+00> : vector<16x32xf32>
    %119 = tpu.matmul %116, %118, %cst_33 {dimension_numbers = #tpu.dot_dimension_numbers<[1], [0], [0], [1], [0, 0, 1, 1], [], []>} : vector<16x64xf32>, vector<64x32xf32>, vector<16x32xf32> -> vector<16x32xf32>
    %120 = vector.extract_strided_slice %103 {offsets = [0, 0], sizes = [16, 1], strides = [1, 1]} : vector<16x4xf32> to vector<16x1xf32>
    %121 = vector.broadcast %120 : vector<16x1xf32> to vector<16x32xf32>
    %122 = arith.mulf %121, %119 : vector<16x32xf32>
    %c1 = arith.constant 1 : index
    %c0_34 = arith.constant 0 : index
    %c0_35 = arith.constant 0 : index
    %123 = vector.load %arg3[%c1, %c0_34, %c0_35] : memref<4x32x64xf32, #tpu.memory_space<vmem>>, vector<1x32x64xf32>
    %124 = vector.shape_cast %123 : vector<1x32x64xf32> to vector<32x64xf32>
    %cst_36 = arith.constant dense<0.000000e+00> : vector<16x64xf32>
    %125 = tpu.matmul %13, %124, %cst_36 {dimension_numbers = #tpu.dot_dimension_numbers<[1], [0], [0], [1], [0, 0, 1, 1], [], []>} : vector<16x32xf32>, vector<32x64xf32>, vector<16x64xf32> -> vector<16x64xf32>
    %c1_37 = arith.constant 1 : index
    %c0_38 = arith.constant 0 : index
    %c0_39 = arith.constant 0 : index
    %126 = vector.load %arg4[%c1_37, %c0_38, %c0_39] : memref<4x32x64xf32, #tpu.memory_space<vmem>>, vector<1x32x64xf32>
    %127 = vector.shape_cast %126 : vector<1x32x64xf32> to vector<32x64xf32>
    %cst_40 = arith.constant dense<0.000000e+00> : vector<16x64xf32>
    %128 = tpu.matmul %13, %127, %cst_40 {dimension_numbers = #tpu.dot_dimension_numbers<[1], [0], [0], [1], [0, 0, 1, 1], [], []>} : vector<16x32xf32>, vector<32x64xf32>, vector<16x64xf32> -> vector<16x64xf32>
    %129 = arith.negf %125 : vector<16x64xf32>
    %130 = math.exp %129 : vector<16x64xf32>
    %cst_41 = arith.constant 1.000000e+00 : f32
    %131 = vector.broadcast %cst_41 : f32 to vector<16x64xf32>
    %132 = arith.addf %131, %130 : vector<16x64xf32>
    %133 = arith.divf %131, %132 : vector<16x64xf32>
    %134 = arith.mulf %125, %133 : vector<16x64xf32>
    %135 = arith.mulf %134, %128 : vector<16x64xf32>
    %c1_42 = arith.constant 1 : index
    %c0_43 = arith.constant 0 : index
    %c0_44 = arith.constant 0 : index
    %136 = vector.load %arg5[%c1_42, %c0_43, %c0_44] : memref<4x64x32xf32, #tpu.memory_space<vmem>>, vector<1x64x32xf32>
    %137 = vector.shape_cast %136 : vector<1x64x32xf32> to vector<64x32xf32>
    %cst_45 = arith.constant dense<0.000000e+00> : vector<16x32xf32>
    %138 = tpu.matmul %135, %137, %cst_45 {dimension_numbers = #tpu.dot_dimension_numbers<[1], [0], [0], [1], [0, 0, 1, 1], [], []>} : vector<16x64xf32>, vector<64x32xf32>, vector<16x32xf32> -> vector<16x32xf32>
    %139 = vector.extract_strided_slice %103 {offsets = [0, 1], sizes = [16, 1], strides = [1, 1]} : vector<16x4xf32> to vector<16x1xf32>
    %140 = vector.broadcast %139 : vector<16x1xf32> to vector<16x32xf32>
    %141 = arith.mulf %140, %138 : vector<16x32xf32>
    %142 = arith.addf %122, %141 : vector<16x32xf32>
    %c2 = arith.constant 2 : index
    %c0_46 = arith.constant 0 : index
    %c0_47 = arith.constant 0 : index
    %143 = vector.load %arg3[%c2, %c0_46, %c0_47] : memref<4x32x64xf32, #tpu.memory_space<vmem>>, vector<1x32x64xf32>
    %144 = vector.shape_cast %143 : vector<1x32x64xf32> to vector<32x64xf32>
    %cst_48 = arith.constant dense<0.000000e+00> : vector<16x64xf32>
    %145 = tpu.matmul %13, %144, %cst_48 {dimension_numbers = #tpu.dot_dimension_numbers<[1], [0], [0], [1], [0, 0, 1, 1], [], []>} : vector<16x32xf32>, vector<32x64xf32>, vector<16x64xf32> -> vector<16x64xf32>
    %c2_49 = arith.constant 2 : index
    %c0_50 = arith.constant 0 : index
    %c0_51 = arith.constant 0 : index
    %146 = vector.load %arg4[%c2_49, %c0_50, %c0_51] : memref<4x32x64xf32, #tpu.memory_space<vmem>>, vector<1x32x64xf32>
    %147 = vector.shape_cast %146 : vector<1x32x64xf32> to vector<32x64xf32>
    %cst_52 = arith.constant dense<0.000000e+00> : vector<16x64xf32>
    %148 = tpu.matmul %13, %147, %cst_52 {dimension_numbers = #tpu.dot_dimension_numbers<[1], [0], [0], [1], [0, 0, 1, 1], [], []>} : vector<16x32xf32>, vector<32x64xf32>, vector<16x64xf32> -> vector<16x64xf32>
    %149 = arith.negf %145 : vector<16x64xf32>
    %150 = math.exp %149 : vector<16x64xf32>
    %cst_53 = arith.constant 1.000000e+00 : f32
    %151 = vector.broadcast %cst_53 : f32 to vector<16x64xf32>
    %152 = arith.addf %151, %150 : vector<16x64xf32>
    %153 = arith.divf %151, %152 : vector<16x64xf32>
    %154 = arith.mulf %145, %153 : vector<16x64xf32>
    %155 = arith.mulf %154, %148 : vector<16x64xf32>
    %c2_54 = arith.constant 2 : index
    %c0_55 = arith.constant 0 : index
    %c0_56 = arith.constant 0 : index
    %156 = vector.load %arg5[%c2_54, %c0_55, %c0_56] : memref<4x64x32xf32, #tpu.memory_space<vmem>>, vector<1x64x32xf32>
    %157 = vector.shape_cast %156 : vector<1x64x32xf32> to vector<64x32xf32>
    %cst_57 = arith.constant dense<0.000000e+00> : vector<16x32xf32>
    %158 = tpu.matmul %155, %157, %cst_57 {dimension_numbers = #tpu.dot_dimension_numbers<[1], [0], [0], [1], [0, 0, 1, 1], [], []>} : vector<16x64xf32>, vector<64x32xf32>, vector<16x32xf32> -> vector<16x32xf32>
    %159 = vector.extract_strided_slice %103 {offsets = [0, 2], sizes = [16, 1], strides = [1, 1]} : vector<16x4xf32> to vector<16x1xf32>
    %160 = vector.broadcast %159 : vector<16x1xf32> to vector<16x32xf32>
    %161 = arith.mulf %160, %158 : vector<16x32xf32>
    %162 = arith.addf %142, %161 : vector<16x32xf32>
    %c3 = arith.constant 3 : index
    %c0_58 = arith.constant 0 : index
    %c0_59 = arith.constant 0 : index
    %163 = vector.load %arg3[%c3, %c0_58, %c0_59] : memref<4x32x64xf32, #tpu.memory_space<vmem>>, vector<1x32x64xf32>
    %164 = vector.shape_cast %163 : vector<1x32x64xf32> to vector<32x64xf32>
    %cst_60 = arith.constant dense<0.000000e+00> : vector<16x64xf32>
    %165 = tpu.matmul %13, %164, %cst_60 {dimension_numbers = #tpu.dot_dimension_numbers<[1], [0], [0], [1], [0, 0, 1, 1], [], []>} : vector<16x32xf32>, vector<32x64xf32>, vector<16x64xf32> -> vector<16x64xf32>
    %c3_61 = arith.constant 3 : index
    %c0_62 = arith.constant 0 : index
    %c0_63 = arith.constant 0 : index
    %166 = vector.load %arg4[%c3_61, %c0_62, %c0_63] : memref<4x32x64xf32, #tpu.memory_space<vmem>>, vector<1x32x64xf32>
    %167 = vector.shape_cast %166 : vector<1x32x64xf32> to vector<32x64xf32>
    %cst_64 = arith.constant dense<0.000000e+00> : vector<16x64xf32>
    %168 = tpu.matmul %13, %167, %cst_64 {dimension_numbers = #tpu.dot_dimension_numbers<[1], [0], [0], [1], [0, 0, 1, 1], [], []>} : vector<16x32xf32>, vector<32x64xf32>, vector<16x64xf32> -> vector<16x64xf32>
    %169 = arith.negf %165 : vector<16x64xf32>
    %170 = math.exp %169 : vector<16x64xf32>
    %cst_65 = arith.constant 1.000000e+00 : f32
    %171 = vector.broadcast %cst_65 : f32 to vector<16x64xf32>
    %172 = arith.addf %171, %170 : vector<16x64xf32>
    %173 = arith.divf %171, %172 : vector<16x64xf32>
    %174 = arith.mulf %165, %173 : vector<16x64xf32>
    %175 = arith.mulf %174, %168 : vector<16x64xf32>
    %c3_66 = arith.constant 3 : index
    %c0_67 = arith.constant 0 : index
    %c0_68 = arith.constant 0 : index
    %176 = vector.load %arg5[%c3_66, %c0_67, %c0_68] : memref<4x64x32xf32, #tpu.memory_space<vmem>>, vector<1x64x32xf32>
    %177 = vector.shape_cast %176 : vector<1x64x32xf32> to vector<64x32xf32>
    %cst_69 = arith.constant dense<0.000000e+00> : vector<16x32xf32>
    %178 = tpu.matmul %175, %177, %cst_69 {dimension_numbers = #tpu.dot_dimension_numbers<[1], [0], [0], [1], [0, 0, 1, 1], [], []>} : vector<16x64xf32>, vector<64x32xf32>, vector<16x32xf32> -> vector<16x32xf32>
    %179 = vector.extract_strided_slice %103 {offsets = [0, 3], sizes = [16, 1], strides = [1, 1]} : vector<16x4xf32> to vector<16x1xf32>
    %180 = vector.broadcast %179 : vector<16x1xf32> to vector<16x32xf32>
    %181 = arith.mulf %180, %178 : vector<16x32xf32>
    %182 = arith.addf %162, %181 : vector<16x32xf32>
    %183 = arith.addf %0, %182 : vector<16x32xf32>
    %c0_70 = arith.constant 0 : index
    %c0_71 = arith.constant 0 : index
    %184 = vector.load %arg6[%c0_70, %c0_71] : memref<16x32xf32, #tpu.memory_space<vmem>>, vector<16x32xf32>
    tpu.vector_store %arg6[%c0_70, %c0_71], %183 {strides = array<i32>} : memref<16x32xf32, #tpu.memory_space<vmem>>, vector<16x32xf32>,
    return
  }
}

</mosaic_0001>

<llo_original>
// kernel: mixtral_decoder_layer.2
$region0: #{mixtral_decoder_layer.2}
  #allocation0 [shape = 'u32[]', space=smem, size = 0x4, offset = 0x4, fixed_abs, tag = 'smem constant byte address 0x4 - core index']
  #allocation1 [shape = 'u32[144,128]{1,0:T(1,128)}', space=vmem, size = 0x12000, scoped, tag = 'internal scratch']
  %s0 = inlined_call_operand.vmem [shape: f32[16,32], index: 0, kind: input, shape index: {}]
  %s1 = inlined_call_operand.vmem [shape: f32[1,32], index: 1, kind: input, shape index: {}]
  %s2 = inlined_call_operand.vmem [shape: f32[32,64], index: 2, kind: input, shape index: {}]
  %s3 = inlined_call_operand.vmem [shape: f32[32,32], index: 3, kind: input, shape index: {}]
  %s4 = inlined_call_operand.vmem [shape: f32[16,8], index: 4, kind: input, shape index: {}]
  %s5 = inlined_call_operand.vmem [shape: f32[16,8], index: 5, kind: input, shape index: {}]
  %s6 = inlined_call_operand.vmem [shape: f32[16,32], index: 6, kind: output, shape index: {}]
  %s7 = sld [smem:[#allocation0]]
  $region34: #{mixtral_decoder_layer.2} parent=0
    _
  %s9 = ssub.s32 1, %s7
  %s10 = scalar_select 0, %s9, %s7
  // Predicated region
  $region2: #{mixtral_decoder_layer.2} parent=0 // pred_check
    _
  $region3: #{mixtral_decoder_layer.2} parent=0 // pred_check_branch
    %12 = sbr.rel (0) target = $region5
  $region4: #{mixtral_decoder_layer.2} parent=0 // pred_region
    _
  $region5: #{mixtral_decoder_layer.2} parent=0 // pred_fallthru
    _
  // Predicated region
  $region6: #{mixtral_decoder_layer.2} parent=0 // pred_check
    _
  $region7: #{mixtral_decoder_layer.2} parent=0 // pred_check_branch
    %14 = sbr.rel (0) target = $region9
  $region8: #{mixtral_decoder_layer.2} parent=0 // pred_region
    _
  $region9: #{mixtral_decoder_layer.2} parent=0 // pred_fallthru
    _
  // Predicated region
  $region10: #{mixtral_decoder_layer.2} parent=0 // pred_check
    _
  $region11: #{mixtral_decoder_layer.2} parent=0 // pred_check_branch
    %16 = sbr.rel (0) target = $region13
  $region12: #{mixtral_decoder_layer.2} parent=0 // pred_region
    _
  $region13: #{mixtral_decoder_layer.2} parent=0 // pred_fallthru
    _
  // Predicated region
  $region14: #{mixtral_decoder_layer.2} parent=0 // pred_check
    _
  $region15: #{mixtral_decoder_layer.2} parent=0 // pred_check_branch
    %18 = sbr.rel (0) target = $region17
  $region16: #{mixtral_decoder_layer.2} parent=0 // pred_region
    _
  $region17: #{mixtral_decoder_layer.2} parent=0 // pred_fallthru
    _
  // Predicated region
  $region18: #{mixtral_decoder_layer.2} parent=0 // pred_check
    _
  $region19: #{mixtral_decoder_layer.2} parent=0 // pred_check_branch
    %20 = sbr.rel (0) target = $region21
  $region20: #{mixtral_decoder_layer.2} parent=0 // pred_region
    _
  $region21: #{mixtral_decoder_layer.2} parent=0 // pred_fallthru
    _
  // Predicated region
  $region22: #{mixtral_decoder_layer.2} parent=0 // pred_check
    _
  $region23: #{mixtral_decoder_layer.2} parent=0 // pred_check_branch
    %22 = sbr.rel (0) target = $region25
  $region24: #{mixtral_decoder_layer.2} parent=0 // pred_region
    _
  $region25: #{mixtral_decoder_layer.2} parent=0 // pred_fallthru
    _
  %v23 = vld [vmem:[%s0] sm:$0xff]
  %v24 = vld [vmem:[%s0 + $0x8] sm:$0xff]
  %v25 = vmul.f32 %v23, %v23
  %v26 = vmul.f32 %v24, %v24
  %vm27 = vcmask 261120
  %v28 = vsel %vm27, %v25, 0.0
  %29 = vadd.xlane.f32.xlu0 %v28
  %v30 = vpop.xlane.xlu0 %29
  %v31 = vsel %vm27, %v26, 0.0
  %32 = vadd.xlane.f32.xlu0 %v31
  %v33 = vpop.xlane.xlu0 %32
  %v34 = vrcp.pop 32.0
  %v35 = vmul.f32 %v30, %v34
  %v36 = vmul.f32 %v33, %v34
  %v37 = vld [vmem:[%s1] sm:$0x1]
  %v38 = vadd.f32 %v35, 1e-06
  %v39 = vadd.f32 %v36, 1e-06
  %v40 = vrsqrt.pop %v38
  %v41 = vrsqrt.pop %v39
  %v42 = vmul.f32 %v23, %v40
  %v43 = vmul.f32 %v24, %v41
  %v45 = vlaneseq
  %v46 = vshrl.u32 %v45, 7
  %v47 = vsub.s32 0, %v46
  %v48 = vrot.slane %v37, %v47
  %v50 = vmul.f32 %v48, %v42
  %v51 = vmul.f32 %v48, %v43
  %v52 = vld [vmem:[%s2] sm:$0xff]
  %v53 = vld [vmem:[%s2 + $0x8] sm:$0xff]
  %v54 = vld [vmem:[%s2 + $0x10] sm:$0xff]
  %v55 = vld [vmem:[%s2 + $0x18] sm:$0xff]
  %v57 = vsel %vm27, %v50, 0
  %v60 = vsel %vm27, %v51, 0
  %62 = vmatprep.subr.mxu0 0.0
  %63 = vmatpush1.msra.mxu0 %v52
  %64 = vmatprep.subr.mxu0 0.0
  %65 = vmatpush1.msra.mxu0 %v53
  %66 = vmatprep.subr.mxu0 0.0
  %67 = vmatpush1.msra.mxu0 %v54
  %68 = vmatprep.subr.mxu0 0.0
  %69 = vmatpush1.msra.mxu0 %v55
  %70 = vmatprep.subr.mxu0 0.0
  %71 = vmatpush1.msra.mxu0 0.0
  %72 = vmatprep.subr.mxu0 0.0
  %73 = vmatpush1.msra.mxu0 0.0
  %74 = vmatprep.subr.mxu0 0.0
  %75 = vmatpush1.msra.mxu0 0.0
  %76 = vmatprep.subr.mxu0 0.0
  %77 = vmatpush1.msra.mxu0 0.0
  %78 = vmatprep.subr.mxu0 0.0
  %79 = vmatpush1.msra.mxu0 0.0
  %80 = vmatprep.subr.mxu0 0.0
  %81 = vmatpush1.msra.mxu0 0.0
  %82 = vmatprep.subr.mxu0 0.0
  %83 = vmatpush1.msra.mxu0 0.0
  %84 = vmatprep.subr.mxu0 0.0
  %85 = vmatpush1.msra.mxu0 0.0
  %86 = vmatprep.subr.mxu0 0.0
  %87 = vmatpush1.msra.mxu0 0.0
  %88 = vmatprep.subr.mxu0 0.0
  %89 = vmatpush1.msra.mxu0 0.0
  %90 = vmatprep.subr.mxu0 0.0
  %91 = vmatpush1.msra.mxu0 0.0
  %92 = vmatprep.subr.mxu0 0.0
  %93 = vmatpush1.msra.mxu0 0.0
  %94 = vmatprep.subr.mxu0 0.0
  %95 = vmatpush1.msra.mxu0 0.0
  %96 = vmatprep.subr.mxu0 0.0
  %97 = vmatpush1.msra.mxu0 0.0
  %98 = vmatprep.subr.mxu0 0.0
  %99 = vmatpush1.msra.mxu0 0.0
  %100 = vmatprep.subr.mxu0 0.0
  %101 = vmatpush1.msra.mxu0 0.0
  %102 = vmatprep.subr.mxu0 0.0
  %103 = vmatpush1.msra.mxu0 0.0
  %104 = vmatprep.subr.mxu0 0.0
  %105 = vmatpush1.msra.mxu0 0.0
  %106 = vmatprep.subr.mxu0 0.0
  %107 = vmatpush1.msra.mxu0 0.0
  %108 = vmatprep.subr.mxu0 0.0
  %109 = vmatpush1.msra.mxu0 0.0
  %110 = vmatprep.subr.mxu0 0.0
  %111 = vmatpush1.msra.mxu0 0.0
  %112 = vmatprep.subr.mxu0 0.0
  %113 = vmatpush1.msra.mxu0 0.0
  %114 = vmatprep.subr.mxu0 0.0
  %115 = vmatpush1.msra.mxu0 0.0
  %116 = vmatprep.subr.mxu0 0.0
  %117 = vmatpush1.msra.mxu0 0.0
  %118 = vmatprep.subr.mxu0 0.0
  %119 = vmatpush1.msra.mxu0 0.0
  %120 = vmatprep.subr.mxu0 0.0
  %121 = vmatpush1.msra.mxu0 0.0
  %122 = vmatprep.subr.mxu0 0.0
  %123 = vmatpush1.msra.mxu0 0.0
  %124 = vmatprep.subr.mxu0 0.0
  %125 = vmatpush1.msra.mxu0 0.0
  %126 = vmatprep.mubr.f32.mxu0 0.0
  %127 = vmatmul.mubr.f32.gmra.mrb[0].mxu0 %v57
  %v128 = vpop.f32.mrb[0].mxu0
  %v129 = vadd.f32 0.0, %v128
  %v130 = vpop.f32.mrb[0].mxu0
  %131 = vmatprep.mubr.f32.mxu0 0.0
  %132 = vmatmul.mubr.f32.gmra.mrb[0].mxu0 %v60
  %v133 = vpop.f32.mrb[0].mxu0
  %v134 = vadd.f32 0.0, %v133
  %v135 = vpop.f32.mrb[0].mxu0
  %136 = vdwg.mxu0
  %v137 = vld [vmem:[%s4] sm:$0xff]
  %v138 = vld [vmem:[%s4 + $0x8] sm:$0xff]
  %v139 = vld [vmem:[%s5] sm:$0xff]
  %v140 = vld [vmem:[%s5 + $0x8] sm:$0xff]
  %v141 = vsub.f32 0.0, %v129
  %v142 = vsub.f32 0.0, %v134
  %145 = vrot.lane.b32.xlu0 %v141, 92
  %v146 = vpop.permute.xlu0 %145
  %147 = vrot.lane.b32.xlu0 %v142, 92
  %v148 = vpop.permute.xlu0 %147
  %153 = vrot.lane.b32.xlu0 %v129, 100
  %v154 = vpop.permute.xlu0 %153
  %155 = vrot.lane.b32.xlu0 %v134, 100
  %v156 = vpop.permute.xlu0 %155
  %vm159 = vcmask 31744
  %v160 = vsel %vm159, %v146, %v154
  %v161 = vsel %vm159, %v148, %v156
  %164 = vrot.lane.b32.xlu0 %v137, 32
  %v165 = vpop.permute.xlu0 %164
  %166 = vrot.lane.b32.xlu0 %v138, 32
  %v167 = vpop.permute.xlu0 %166
  %v170 = vmul.f32 %v129, %v165
  %v171 = vmul.f32 %v134, %v167
  %v172 = vmul.f32 %v160, %v139
  %v173 = vmul.f32 %v161, %v140
  %176 = vrot.lane.b32.xlu0 %v172, 32
  %v177 = vpop.permute.xlu0 %176
  %178 = vrot.lane.b32.xlu0 %v173, 32
  %v179 = vpop.permute.xlu0 %178
  %v182 = vadd.f32 %v170, %v177
  %v183 = vadd.f32 %v171, %v179
  %184 = vrot.lane.b32.xlu0 %v141, 84
  %v185 = vpop.permute.xlu0 %184
  %186 = vrot.lane.b32.xlu0 %v142, 84
  %v187 = vpop.permute.xlu0 %186
  %190 = vrot.lane.b32.xlu0 %v129, 92
  %v191 = vpop.permute.xlu0 %190
  %192 = vrot.lane.b32.xlu0 %v134, 92
  %v193 = vpop.permute.xlu0 %192
  %v196 = vsel %vm159, %v185, %v191
  %v197 = vsel %vm159, %v187, %v193
  %198 = vrot.lane.b32.xlu0 %v137, 40
  %v199 = vpop.permute.xlu0 %198
  %200 = vrot.lane.b32.xlu0 %v138, 40
  %v201 = vpop.permute.xlu0 %200
  %v204 = vmul.f32 %v129, %v199
  %v205 = vmul.f32 %v134, %v201
  %v206 = vmul.f32 %v196, %v139
  %v207 = vmul.f32 %v197, %v140
  %210 = vrot.lane.b32.xlu0 %v206, 40
  %v211 = vpop.permute.xlu0 %210
  %212 = vrot.lane.b32.xlu0 %v207, 40
  %v213 = vpop.permute.xlu0 %212
  %v216 = vadd.f32 %v204, %v211
  %v217 = vadd.f32 %v205, %v213
  %218 = vrot.lane.b32.xlu0 %v141, 124
  %v219 = vpop.permute.xlu0 %218
  %220 = vrot.lane.b32.xlu0 %v142, 124
  %v221 = vpop.permute.xlu0 %220
  %224 = vrot.lane.b32.xlu0 %v129, 4
  %v225 = vpop.permute.xlu0 %224
  %226 = vrot.lane.b32.xlu0 %v134, 4
  %v227 = vpop.permute.xlu0 %226
  %v230 = vsel %vm159, %v219, %v225
  %v231 = vsel %vm159, %v221, %v227
  %v232 = vmul.f32 %v129, %v137
  %v233 = vmul.f32 %v134, %v138
  %v234 = vmul.f32 %v230, %v139
  %v235 = vmul.f32 %v231, %v140
  %v236 = vadd.f32 %v232, %v234
  %v237 = vadd.f32 %v233, %v235
  %239 = vrot.lane.b32.xlu0 %v182, 96
  %v240 = vpop.permute.xlu0 %239
  %vm241 = vcmask 64512
  %v243 = vsel %vm241, %v236, 0
  %v245 = vsel %vm241, %v240, 0
  %247 = vmatprep.subr.mxu0 0.0
  %248 = vmatpush1.xpose.msra.mxu0 %v245
  %249 = vmatprep.subr.mxu0 0.0
  %250 = vmatpush1.xpose.msra.mxu0 0.0
  %251 = vmatprep.subr.mxu0 0.0
  %252 = vmatpush1.xpose.msra.mxu0 0.0
  %253 = vmatprep.subr.mxu0 0.0
  %254 = vmatpush1.xpose.msra.mxu0 0.0
  %255 = vmatprep.subr.mxu0 0.0
  %256 = vmatpush1.xpose.msra.mxu0 0.0
  %257 = vmatprep.subr.mxu0 0.0
  %258 = vmatpush1.xpose.msra.mxu0 0.0
  %259 = vmatprep.subr.mxu0 0.0
  %260 = vmatpush1.xpose.msra.mxu0 0.0
  %261 = vmatprep.subr.mxu0 0.0
  %262 = vmatpush1.xpose.msra.mxu0 0.0
  %263 = vmatprep.subr.mxu0 0.0
  %264 = vmatpush1.xpose.msra.mxu0 0.0
  %265 = vmatprep.subr.mxu0 0.0
  %266 = vmatpush1.xpose.msra.mxu0 0.0
  %267 = vmatprep.subr.mxu0 0.0
  %268 = vmatpush1.xpose.msra.mxu0 0.0
  %269 = vmatprep.subr.mxu0 0.0
  %270 = vmatpush1.xpose.msra.mxu0 0.0
  %271 = vmatprep.subr.mxu0 0.0
  %272 = vmatpush1.xpose.msra.mxu0 0.0
  %273 = vmatprep.subr.mxu0 0.0
  %274 = vmatpush1.xpose.msra.mxu0 0.0
  %275 = vmatprep.subr.mxu0 0.0
  %276 = vmatpush1.xpose.msra.mxu0 0.0
  %277 = vmatprep.subr.mxu0 0.0
  %278 = vmatpush1.xpose.msra.mxu0 0.0
  %279 = vmatprep.subr.mxu0 0.0
  %280 = vmatpush1.xpose.msra.mxu0 0.0
  %281 = vmatprep.subr.mxu0 0.0
  %282 = vmatpush1.xpose.msra.mxu0 0.0
  %283 = vmatprep.subr.mxu0 0.0
  %284 = vmatpush1.xpose.msra.mxu0 0.0
  %285 = vmatprep.subr.mxu0 0.0
  %286 = vmatpush1.xpose.msra.mxu0 0.0
  %287 = vmatprep.subr.mxu0 0.0
  %288 = vmatpush1.xpose.msra.mxu0 0.0
  %289 = vmatprep.subr.mxu0 0.0
  %290 = vmatpush1.xpose.msra.mxu0 0.0
  %291 = vmatprep.subr.mxu0 0.0
  %292 = vmatpush1.xpose.msra.mxu0 0.0
  %293 = vmatprep.subr.mxu0 0.0
  %294 = vmatpush1.xpose.msra.mxu0 0.0
  %295 = vmatprep.subr.mxu0 0.0
  %296 = vmatpush1.xpose.msra.mxu0 0.0
  %297 = vmatprep.subr.mxu0 0.0
  %298 = vmatpush1.xpose.msra.mxu0 0.0
  %299 = vmatprep.subr.mxu0 0.0
  %300 = vmatpush1.xpose.msra.mxu0 0.0
  %301 = vmatprep.subr.mxu0 0.0
  %302 = vmatpush1.xpose.msra.mxu0 0.0
  %303 = vmatprep.subr.mxu0 0.0
  %304 = vmatpush1.xpose.msra.mxu0 0.0
  %305 = vmatprep.subr.mxu0 0.0
  %306 = vmatpush1.xpose.msra.mxu0 0.0
  %307 = vmatprep.subr.mxu0 0.0
  %308 = vmatpush1.xpose.msra.mxu0 0.0
  %309 = vmatprep.subr.mxu0 0.0
  %310 = vmatpush1.xpose.msra.mxu0 0.0
  %311 = vmatprep.mubr.f32.mxu0 0.0
  %312 = vmatmul.mubr.f32.gmra.mrb[0].mxu0 %v243
  %v313 = vpop.f32.mrb[0].mxu0
  %v314 = vadd.f32 0.0, %v313
  %v315 = vpop.f32.mrb[0].mxu0
  %316 = vdwg.mxu0
  %v317 = vmul.f32 %v314, 0.35355338
  %v318 = vsel %vm241, %v317, -inf
  %319 = vmax.xlane.f32.xlu0 %v318
  %v320 = vpop.xlane.xlu0 %319
  %v321 = vsub.f32 %v317, %v320
  %v322 = vmul.f32 %v321, 1.442695
  %v323 = vpow.pop %v322
  %v324 = vsel %vm241, %v323, 0.0
  %325 = vadd.xlane.f32.xlu0 %v324
  %v326 = vpop.xlane.xlu0 %325
  %327 = vrot.lane.b32.xlu0 %v129, 80
  %v328 = vpop.permute.xlu0 %327
  %v331 = vsel %vm241, %v323, 0
  %333 = vmatprep.subr.mxu0 0.0
  %334 = vmatpush1.msra.mxu0 %v328
  %335 = vmatprep.subr.mxu0 0.0
  %336 = vmatpush1.msra.mxu0 0.0
  %337 = vmatprep.subr.mxu0 0.0
  %338 = vmatpush1.msra.mxu0 0.0
  %339 = vmatprep.subr.mxu0 0.0
  %340 = vmatpush1.msra.mxu0 0.0
  %341 = vmatprep.subr.mxu0 0.0
  %342 = vmatpush1.msra.mxu0 0.0
  %343 = vmatprep.subr.mxu0 0.0
  %344 = vmatpush1.msra.mxu0 0.0
  %345 = vmatprep.subr.mxu0 0.0
  %346 = vmatpush1.msra.mxu0 0.0
  %347 = vmatprep.subr.mxu0 0.0
  %348 = vmatpush1.msra.mxu0 0.0
  %349 = vmatprep.subr.mxu0 0.0
  %350 = vmatpush1.msra.mxu0 0.0
  %351 = vmatprep.subr.mxu0 0.0
  %352 = vmatpush1.msra.mxu0 0.0
  %353 = vmatprep.subr.mxu0 0.0
  %354 = vmatpush1.msra.mxu0 0.0
  %355 = vmatprep.subr.mxu0 0.0
  %356 = vmatpush1.msra.mxu0 0.0
  %357 = vmatprep.subr.mxu0 0.0
  %358 = vmatpush1.msra.mxu0 0.0
  %359 = vmatprep.subr.mxu0 0.0
  %360 = vmatpush1.msra.mxu0 0.0
  %361 = vmatprep.subr.mxu0 0.0
  %362 = vmatpush1.msra.mxu0 0.0
  %363 = vmatprep.subr.mxu0 0.0
  %364 = vmatpush1.msra.mxu0 0.0
  %365 = vmatprep.subr.mxu0 0.0
  %366 = vmatpush1.msra.mxu0 0.0
  %367 = vmatprep.subr.mxu0 0.0
  %368 = vmatpush1.msra.mxu0 0.0
  %369 = vmatprep.subr.mxu0 0.0
  %370 = vmatpush1.msra.mxu0 0.0
  %371 = vmatprep.subr.mxu0 0.0
  %372 = vmatpush1.msra.mxu0 0.0
  %373 = vmatprep.subr.mxu0 0.0
  %374 = vmatpush1.msra.mxu0 0.0
  %375 = vmatprep.subr.mxu0 0.0
  %376 = vmatpush1.msra.mxu0 0.0
  %377 = vmatprep.subr.mxu0 0.0
  %378 = vmatpush1.msra.mxu0 0.0
  %379 = vmatprep.subr.mxu0 0.0
  %380 = vmatpush1.msra.mxu0 0.0
  %381 = vmatprep.subr.mxu0 0.0
  %382 = vmatpush1.msra.mxu0 0.0
  %383 = vmatprep.subr.mxu0 0.0
  %384 = vmatpush1.msra.mxu0 0.0
  %385 = vmatprep.subr.mxu0 0.0
  %386 = vmatpush1.msra.mxu0 0.0
  %387 = vmatprep.subr.mxu0 0.0
  %388 = vmatpush1.msra.mxu0 0.0
  %389 = vmatprep.subr.mxu0 0.0
  %390 = vmatpush1.msra.mxu0 0.0
  %391 = vmatprep.subr.mxu0 0.0
  %392 = vmatpush1.msra.mxu0 0.0
  %393 = vmatprep.subr.mxu0 0.0
  %394 = vmatpush1.msra.mxu0 0.0
  %395 = vmatprep.subr.mxu0 0.0
  %396 = vmatpush1.msra.mxu0 0.0
  %397 = vmatprep.mubr.f32.mxu0 0.0
  %398 = vmatmul.mubr.f32.gmra.mrb[0].mxu0 %v331
  %v399 = vpop.f32.mrb[0].mxu0
  %v400 = vadd.f32 0.0, %v399
  %v401 = vpop.f32.mrb[0].mxu0
  %402 = vdwg.mxu0
  %v403 = vrcp.pop %v326
  %v404 = vmul.f32 %v400, %v403
  %406 = vrot.lane.b32.xlu0 %v183, 96
  %v407 = vpop.permute.xlu0 %406
  %v409 = vsel %vm241, %v237, 0
  %v411 = vsel %vm241, %v407, 0
  %413 = vmatprep.subr.mxu0 0.0
  %414 = vmatpush1.xpose.msra.mxu0 %v411
  %415 = vmatprep.subr.mxu0 0.0
  %416 = vmatpush1.xpose.msra.mxu0 0.0
  %417 = vmatprep.subr.mxu0 0.0
  %418 = vmatpush1.xpose.msra.mxu0 0.0
  %419 = vmatprep.subr.mxu0 0.0
  %420 = vmatpush1.xpose.msra.mxu0 0.0
  %421 = vmatprep.subr.mxu0 0.0
  %422 = vmatpush1.xpose.msra.mxu0 0.0
  %423 = vmatprep.subr.mxu0 0.0
  %424 = vmatpush1.xpose.msra.mxu0 0.0
  %425 = vmatprep.subr.mxu0 0.0
  %426 = vmatpush1.xpose.msra.mxu0 0.0
  %427 = vmatprep.subr.mxu0 0.0
  %428 = vmatpush1.xpose.msra.mxu0 0.0
  %429 = vmatprep.subr.mxu0 0.0
  %430 = vmatpush1.xpose.msra.mxu0 0.0
  %431 = vmatprep.subr.mxu0 0.0
  %432 = vmatpush1.xpose.msra.mxu0 0.0
  %433 = vmatprep.subr.mxu0 0.0
  %434 = vmatpush1.xpose.msra.mxu0 0.0
  %435 = vmatprep.subr.mxu0 0.0
  %436 = vmatpush1.xpose.msra.mxu0 0.0
  %437 = vmatprep.subr.mxu0 0.0
  %438 = vmatpush1.xpose.msra.mxu0 0.0
  %439 = vmatprep.subr.mxu0 0.0
  %440 = vmatpush1.xpose.msra.mxu0 0.0
  %441 = vmatprep.subr.mxu0 0.0
  %442 = vmatpush1.xpose.msra.mxu0 0.0
  %443 = vmatprep.subr.mxu0 0.0
  %444 = vmatpush1.xpose.msra.mxu0 0.0
  %445 = vmatprep.subr.mxu0 0.0
  %446 = vmatpush1.xpose.msra.mxu0 0.0
  %447 = vmatprep.subr.mxu0 0.0
  %448 = vmatpush1.xpose.msra.mxu0 0.0
  %449 = vmatprep.subr.mxu0 0.0
  %450 = vmatpush1.xpose.msra.mxu0 0.0
  %451 = vmatprep.subr.mxu0 0.0
  %452 = vmatpush1.xpose.msra.mxu0 0.0
  %453 = vmatprep.subr.mxu0 0.0
  %454 = vmatpush1.xpose.msra.mxu0 0.0
  %455 = vmatprep.subr.mxu0 0.0
  %456 = vmatpush1.xpose.msra.mxu0 0.0
  %457 = vmatprep.subr.mxu0 0.0
  %458 = vmatpush1.xpose.msra.mxu0 0.0
  %459 = vmatprep.subr.mxu0 0.0
  %460 = vmatpush1.xpose.msra.mxu0 0.0
  %461 = vmatprep.subr.mxu0 0.0
  %462 = vmatpush1.xpose.msra.mxu0 0.0
  %463 = vmatprep.subr.mxu0 0.0
  %464 = vmatpush1.xpose.msra.mxu0 0.0
  %465 = vmatprep.subr.mxu0 0.0
  %466 = vmatpush1.xpose.msra.mxu0 0.0
  %467 = vmatprep.subr.mxu0 0.0
  %468 = vmatpush1.xpose.msra.mxu0 0.0
  %469 = vmatprep.subr.mxu0 0.0
  %470 = vmatpush1.xpose.msra.mxu0 0.0
  %471 = vmatprep.subr.mxu0 0.0
  %472 = vmatpush1.xpose.msra.mxu0 0.0
  %473 = vmatprep.subr.mxu0 0.0
  %474 = vmatpush1.xpose.msra.mxu0 0.0
  %475 = vmatprep.subr.mxu0 0.0
  %476 = vmatpush1.xpose.msra.mxu0 0.0
  %477 = vmatprep.mubr.f32.mxu0 0.0
  %478 = vmatmul.mubr.f32.gmra.mrb[0].mxu0 %v409
  %v479 = vpop.f32.mrb[0].mxu0
  %v480 = vadd.f32 0.0, %v479
  %v481 = vpop.f32.mrb[0].mxu0
  %482 = vdwg.mxu0
  %v483 = vmul.f32 %v480, 0.35355338
  %v484 = vsel %vm241, %v483, -inf
  %485 = vmax.xlane.f32.xlu0 %v484
  %v486 = vpop.xlane.xlu0 %485
  %v487 = vsub.f32 %v483, %v486
  %v488 = vmul.f32 %v487, 1.442695
  %v489 = vpow.pop %v488
  %v490 = vsel %vm241, %v489, 0.0
  %491 = vadd.xlane.f32.xlu0 %v490
  %v492 = vpop.xlane.xlu0 %491
  %493 = vrot.lane.b32.xlu0 %v134, 80
  %v494 = vpop.permute.xlu0 %493
  %v497 = vsel %vm241, %v489, 0
  %499 = vmatprep.subr.mxu0 0.0
  %500 = vmatpush1.msra.mxu0 %v494
  %501 = vmatprep.subr.mxu0 0.0
  %502 = vmatpush1.msra.mxu0 0.0
  %503 = vmatprep.subr.mxu0 0.0
  %504 = vmatpush1.msra.mxu0 0.0
  %505 = vmatprep.subr.mxu0 0.0
  %506 = vmatpush1.msra.mxu0 0.0
  %507 = vmatprep.subr.mxu0 0.0
  %508 = vmatpush1.msra.mxu0 0.0
  %509 = vmatprep.subr.mxu0 0.0
  %510 = vmatpush1.msra.mxu0 0.0
  %511 = vmatprep.subr.mxu0 0.0
  %512 = vmatpush1.msra.mxu0 0.0
  %513 = vmatprep.subr.mxu0 0.0
  %514 = vmatpush1.msra.mxu0 0.0
  %515 = vmatprep.subr.mxu0 0.0
  %516 = vmatpush1.msra.mxu0 0.0
  %517 = vmatprep.subr.mxu0 0.0
  %518 = vmatpush1.msra.mxu0 0.0
  %519 = vmatprep.subr.mxu0 0.0
  %520 = vmatpush1.msra.mxu0 0.0
  %521 = vmatprep.subr.mxu0 0.0
  %522 = vmatpush1.msra.mxu0 0.0
  %523 = vmatprep.subr.mxu0 0.0
  %524 = vmatpush1.msra.mxu0 0.0
  %525 = vmatprep.subr.mxu0 0.0
  %526 = vmatpush1.msra.mxu0 0.0
  %527 = vmatprep.subr.mxu0 0.0
  %528 = vmatpush1.msra.mxu0 0.0
  %529 = vmatprep.subr.mxu0 0.0
  %530 = vmatpush1.msra.mxu0 0.0
  %531 = vmatprep.subr.mxu0 0.0
  %532 = vmatpush1.msra.mxu0 0.0
  %533 = vmatprep.subr.mxu0 0.0
  %534 = vmatpush1.msra.mxu0 0.0
  %535 = vmatprep.subr.mxu0 0.0
  %536 = vmatpush1.msra.mxu0 0.0
  %537 = vmatprep.subr.mxu0 0.0
  %538 = vmatpush1.msra.mxu0 0.0
  %539 = vmatprep.subr.mxu0 0.0
  %540 = vmatpush1.msra.mxu0 0.0
  %541 = vmatprep.subr.mxu0 0.0
  %542 = vmatpush1.msra.mxu0 0.0
  %543 = vmatprep.subr.mxu0 0.0
  %544 = vmatpush1.msra.mxu0 0.0
  %545 = vmatprep.subr.mxu0 0.0
  %546 = vmatpush1.msra.mxu0 0.0
  %547 = vmatprep.subr.mxu0 0.0
  %548 = vmatpush1.msra.mxu0 0.0
  %549 = vmatprep.subr.mxu0 0.0
  %550 = vmatpush1.msra.mxu0 0.0
  %551 = vmatprep.subr.mxu0 0.0
  %552 = vmatpush1.msra.mxu0 0.0
  %553 = vmatprep.subr.mxu0 0.0
  %554 = vmatpush1.msra.mxu0 0.0
  %555 = vmatprep.subr.mxu0 0.0
  %556 = vmatpush1.msra.mxu0 0.0
  %557 = vmatprep.subr.mxu0 0.0
  %558 = vmatpush1.msra.mxu0 0.0
  %559 = vmatprep.subr.mxu0 0.0
  %560 = vmatpush1.msra.mxu0 0.0
  %561 = vmatprep.subr.mxu0 0.0
  %562 = vmatpush1.msra.mxu0 0.0
  %563 = vmatprep.mubr.f32.mxu0 0.0
  %564 = vmatmul.mubr.f32.gmra.mrb[0].mxu0 %v497
  %v565 = vpop.f32.mrb[0].mxu0
  %v566 = vadd.f32 0.0, %v565
  %v567 = vpop.f32.mrb[0].mxu0
  %568 = vdwg.mxu0
  %v569 = vrcp.pop %v492
  %v570 = vmul.f32 %v566, %v569
  %571 = vrot.lane.b32.xlu0 %v141, 116
  %v572 = vpop.permute.xlu0 %571
  %573 = vrot.lane.b32.xlu0 %v142, 116
  %v574 = vpop.permute.xlu0 %573
  %577 = vrot.lane.b32.xlu0 %v129, 124
  %v578 = vpop.permute.xlu0 %577
  %579 = vrot.lane.b32.xlu0 %v134, 124
  %v580 = vpop.permute.xlu0 %579
  %v583 = vsel %vm159, %v572, %v578
  %v584 = vsel %vm159, %v574, %v580
  %585 = vrot.lane.b32.xlu0 %v137, 8
  %v586 = vpop.permute.xlu0 %585
  %587 = vrot.lane.b32.xlu0 %v138, 8
  %v588 = vpop.permute.xlu0 %587
  %v591 = vmul.f32 %v129, %v586
  %v592 = vmul.f32 %v134, %v588
  %v593 = vmul.f32 %v583, %v139
  %v594 = vmul.f32 %v584, %v140
  %597 = vrot.lane.b32.xlu0 %v593, 8
  %v598 = vpop.permute.xlu0 %597
  %599 = vrot.lane.b32.xlu0 %v594, 8
  %v600 = vpop.permute.xlu0 %599
  %v603 = vadd.f32 %v591, %v598
  %v604 = vadd.f32 %v592, %v600
  %606 = vrot.lane.b32.xlu0 %v603, 120
  %v607 = vpop.permute.xlu0 %606
  %v608 = vsel %vm241, %v607, 0
  %610 = vmatprep.subr.mxu0 0.0
  %611 = vmatpush1.xpose.msra.mxu0 %v245
  %612 = vmatprep.subr.mxu0 0.0
  %613 = vmatpush1.xpose.msra.mxu0 0.0
  %614 = vmatprep.subr.mxu0 0.0
  %615 = vmatpush1.xpose.msra.mxu0 0.0
  %616 = vmatprep.subr.mxu0 0.0
  %617 = vmatpush1.xpose.msra.mxu0 0.0
  %618 = vmatprep.subr.mxu0 0.0
  %619 = vmatpush1.xpose.msra.mxu0 0.0
  %620 = vmatprep.subr.mxu0 0.0
  %621 = vmatpush1.xpose.msra.mxu0 0.0
  %622 = vmatprep.subr.mxu0 0.0
  %623 = vmatpush1.xpose.msra.mxu0 0.0
  %624 = vmatprep.subr.mxu0 0.0
  %625 = vmatpush1.xpose.msra.mxu0 0.0
  %626 = vmatprep.subr.mxu0 0.0
  %627 = vmatpush1.xpose.msra.mxu0 0.0
  %628 = vmatprep.subr.mxu0 0.0
  %629 = vmatpush1.xpose.msra.mxu0 0.0
  %630 = vmatprep.subr.mxu0 0.0
  %631 = vmatpush1.xpose.msra.mxu0 0.0
  %632 = vmatprep.subr.mxu0 0.0
  %633 = vmatpush1.xpose.msra.mxu0 0.0
  %634 = vmatprep.subr.mxu0 0.0
  %635 = vmatpush1.xpose.msra.mxu0 0.0
  %636 = vmatprep.subr.mxu0 0.0
  %637 = vmatpush1.xpose.msra.mxu0 0.0
  %638 = vmatprep.subr.mxu0 0.0
  %639 = vmatpush1.xpose.msra.mxu0 0.0
  %640 = vmatprep.subr.mxu0 0.0
  %641 = vmatpush1.xpose.msra.mxu0 0.0
  %642 = vmatprep.subr.mxu0 0.0
  %643 = vmatpush1.xpose.msra.mxu0 0.0
  %644 = vmatprep.subr.mxu0 0.0
  %645 = vmatpush1.xpose.msra.mxu0 0.0
  %646 = vmatprep.subr.mxu0 0.0
  %647 = vmatpush1.xpose.msra.mxu0 0.0
  %648 = vmatprep.subr.mxu0 0.0
  %649 = vmatpush1.xpose.msra.mxu0 0.0
  %650 = vmatprep.subr.mxu0 0.0
  %651 = vmatpush1.xpose.msra.mxu0 0.0
  %652 = vmatprep.subr.mxu0 0.0
  %653 = vmatpush1.xpose.msra.mxu0 0.0
  %654 = vmatprep.subr.mxu0 0.0
  %655 = vmatpush1.xpose.msra.mxu0 0.0
  %656 = vmatprep.subr.mxu0 0.0
  %657 = vmatpush1.xpose.msra.mxu0 0.0
  %658 = vmatprep.subr.mxu0 0.0
  %659 = vmatpush1.xpose.msra.mxu0 0.0
  %660 = vmatprep.subr.mxu0 0.0
  %661 = vmatpush1.xpose.msra.mxu0 0.0
  %662 = vmatprep.subr.mxu0 0.0
  %663 = vmatpush1.xpose.msra.mxu0 0.0
  %664 = vmatprep.subr.mxu0 0.0
  %665 = vmatpush1.xpose.msra.mxu0 0.0
  %666 = vmatprep.subr.mxu0 0.0
  %667 = vmatpush1.xpose.msra.mxu0 0.0
  %668 = vmatprep.subr.mxu0 0.0
  %669 = vmatpush1.xpose.msra.mxu0 0.0
  %670 = vmatprep.subr.mxu0 0.0
  %671 = vmatpush1.xpose.msra.mxu0 0.0
  %672 = vmatprep.subr.mxu0 0.0
  %673 = vmatpush1.xpose.msra.mxu0 0.0
  %674 = vmatprep.mubr.f32.mxu0 0.0
  %675 = vmatmul.mubr.f32.gmra.mrb[0].mxu0 %v608
  %v676 = vpop.f32.mrb[0].mxu0
  %v677 = vadd.f32 0.0, %v676
  %v678 = vpop.f32.mrb[0].mxu0
  %679 = vdwg.mxu0
  %v680 = vmul.f32 %v677, 0.35355338
  %v681 = vsel %vm241, %v680, -inf
  %682 = vmax.xlane.f32.xlu0 %v681
  %v683 = vpop.xlane.xlu0 %682
  %v684 = vsub.f32 %v680, %v683
  %v685 = vmul.f32 %v684, 1.442695
  %v686 = vpow.pop %v685
  %v687 = vsel %vm241, %v686, 0.0
  %688 = vadd.xlane.f32.xlu0 %v687
  %v689 = vpop.xlane.xlu0 %688
  %v691 = vsel %vm241, %v686, 0
  %693 = vmatprep.subr.mxu0 0.0
  %694 = vmatpush1.msra.mxu0 %v328
  %695 = vmatprep.subr.mxu0 0.0
  %696 = vmatpush1.msra.mxu0 0.0
  %697 = vmatprep.subr.mxu0 0.0
  %698 = vmatpush1.msra.mxu0 0.0
  %699 = vmatprep.subr.mxu0 0.0
  %700 = vmatpush1.msra.mxu0 0.0
  %701 = vmatprep.subr.mxu0 0.0
  %702 = vmatpush1.msra.mxu0 0.0
  %703 = vmatprep.subr.mxu0 0.0
  %704 = vmatpush1.msra.mxu0 0.0
  %705 = vmatprep.subr.mxu0 0.0
  %706 = vmatpush1.msra.mxu0 0.0
  %707 = vmatprep.subr.mxu0 0.0
  %708 = vmatpush1.msra.mxu0 0.0
  %709 = vmatprep.subr.mxu0 0.0
  %710 = vmatpush1.msra.mxu0 0.0
  %711 = vmatprep.subr.mxu0 0.0
  %712 = vmatpush1.msra.mxu0 0.0
  %713 = vmatprep.subr.mxu0 0.0
  %714 = vmatpush1.msra.mxu0 0.0
  %715 = vmatprep.subr.mxu0 0.0
  %716 = vmatpush1.msra.mxu0 0.0
  %717 = vmatprep.subr.mxu0 0.0
  %718 = vmatpush1.msra.mxu0 0.0
  %719 = vmatprep.subr.mxu0 0.0
  %720 = vmatpush1.msra.mxu0 0.0
  %721 = vmatprep.subr.mxu0 0.0
  %722 = vmatpush1.msra.mxu0 0.0
  %723 = vmatprep.subr.mxu0 0.0
  %724 = vmatpush1.msra.mxu0 0.0
  %725 = vmatprep.subr.mxu0 0.0
  %726 = vmatpush1.msra.mxu0 0.0
  %727 = vmatprep.subr.mxu0 0.0
  %728 = vmatpush1.msra.mxu0 0.0
  %729 = vmatprep.subr.mxu0 0.0
  %730 = vmatpush1.msra.mxu0 0.0
  %731 = vmatprep.subr.mxu0 0.0
  %732 = vmatpush1.msra.mxu0 0.0
  %733 = vmatprep.subr.mxu0 0.0
  %734 = vmatpush1.msra.mxu0 0.0
  %735 = vmatprep.subr.mxu0 0.0
  %736 = vmatpush1.msra.mxu0 0.0
  %737 = vmatprep.subr.mxu0 0.0
  %738 = vmatpush1.msra.mxu0 0.0
  %739 = vmatprep.subr.mxu0 0.0
  %740 = vmatpush1.msra.mxu0 0.0
  %741 = vmatprep.subr.mxu0 0.0
  %742 = vmatpush1.msra.mxu0 0.0
  %743 = vmatprep.subr.mxu0 0.0
  %744 = vmatpush1.msra.mxu0 0.0
  %745 = vmatprep.subr.mxu0 0.0
  %746 = vmatpush1.msra.mxu0 0.0
  %747 = vmatprep.subr.mxu0 0.0
  %748 = vmatpush1.msra.mxu0 0.0
  %749 = vmatprep.subr.mxu0 0.0
  %750 = vmatpush1.msra.mxu0 0.0
  %751 = vmatprep.subr.mxu0 0.0
  %752 = vmatpush1.msra.mxu0 0.0
  %753 = vmatprep.subr.mxu0 0.0
  %754 = vmatpush1.msra.mxu0 0.0
  %755 = vmatprep.subr.mxu0 0.0
  %756 = vmatpush1.msra.mxu0 0.0
  %757 = vmatprep.mubr.f32.mxu0 0.0
  %758 = vmatmul.mubr.f32.gmra.mrb[0].mxu0 %v691
  %v759 = vpop.f32.mrb[0].mxu0
  %v760 = vadd.f32 0.0, %v759
  %v761 = vpop.f32.mrb[0].mxu0
  %762 = vdwg.mxu0
  %v763 = vrcp.pop %v689
  %v764 = vmul.f32 %v760, %v763
  %766 = vrot.lane.b32.xlu0 %v604, 120
  %v767 = vpop.permute.xlu0 %766
  %v768 = vsel %vm241, %v767, 0
  %770 = vmatprep.subr.mxu0 0.0
  %771 = vmatpush1.xpose.msra.mxu0 %v411
  %772 = vmatprep.subr.mxu0 0.0
  %773 = vmatpush1.xpose.msra.mxu0 0.0
  %774 = vmatprep.subr.mxu0 0.0
  %775 = vmatpush1.xpose.msra.mxu0 0.0
  %776 = vmatprep.subr.mxu0 0.0
  %777 = vmatpush1.xpose.msra.mxu0 0.0
  %778 = vmatprep.subr.mxu0 0.0
  %779 = vmatpush1.xpose.msra.mxu0 0.0
  %780 = vmatprep.subr.mxu0 0.0
  %781 = vmatpush1.xpose.msra.mxu0 0.0
  %782 = vmatprep.subr.mxu0 0.0
  %783 = vmatpush1.xpose.msra.mxu0 0.0
  %784 = vmatprep.subr.mxu0 0.0
  %785 = vmatpush1.xpose.msra.mxu0 0.0
  %786 = vmatprep.subr.mxu0 0.0
  %787 = vmatpush1.xpose.msra.mxu0 0.0
  %788 = vmatprep.subr.mxu0 0.0
  %789 = vmatpush1.xpose.msra.mxu0 0.0
  %790 = vmatprep.subr.mxu0 0.0
  %791 = vmatpush1.xpose.msra.mxu0 0.0
  %792 = vmatprep.subr.mxu0 0.0
  %793 = vmatpush1.xpose.msra.mxu0 0.0
  %794 = vmatprep.subr.mxu0 0.0
  %795 = vmatpush1.xpose.msra.mxu0 0.0
  %796 = vmatprep.subr.mxu0 0.0
  %797 = vmatpush1.xpose.msra.mxu0 0.0
  %798 = vmatprep.subr.mxu0 0.0
  %799 = vmatpush1.xpose.msra.mxu0 0.0
  %800 = vmatprep.subr.mxu0 0.0
  %801 = vmatpush1.xpose.msra.mxu0 0.0
  %802 = vmatprep.subr.mxu0 0.0
  %803 = vmatpush1.xpose.msra.mxu0 0.0
  %804 = vmatprep.subr.mxu0 0.0
  %805 = vmatpush1.xpose.msra.mxu0 0.0
  %806 = vmatprep.subr.mxu0 0.0
  %807 = vmatpush1.xpose.msra.mxu0 0.0
  %808 = vmatprep.subr.mxu0 0.0
  %809 = vmatpush1.xpose.msra.mxu0 0.0
  %810 = vmatprep.subr.mxu0 0.0
  %811 = vmatpush1.xpose.msra.mxu0 0.0
  %812 = vmatprep.subr.mxu0 0.0
  %813 = vmatpush1.xpose.msra.mxu0 0.0
  %814 = vmatprep.subr.mxu0 0.0
  %815 = vmatpush1.xpose.msra.mxu0 0.0
  %816 = vmatprep.subr.mxu0 0.0
  %817 = vmatpush1.xpose.msra.mxu0 0.0
  %818 = vmatprep.subr.mxu0 0.0
  %819 = vmatpush1.xpose.msra.mxu0 0.0
  %820 = vmatprep.subr.mxu0 0.0
  %821 = vmatpush1.xpose.msra.mxu0 0.0
  %822 = vmatprep.subr.mxu0 0.0
  %823 = vmatpush1.xpose.msra.mxu0 0.0
  %824 = vmatprep.subr.mxu0 0.0
  %825 = vmatpush1.xpose.msra.mxu0 0.0
  %826 = vmatprep.subr.mxu0 0.0
  %827 = vmatpush1.xpose.msra.mxu0 0.0
  %828 = vmatprep.subr.mxu0 0.0
  %829 = vmatpush1.xpose.msra.mxu0 0.0
  %830 = vmatprep.subr.mxu0 0.0
  %831 = vmatpush1.xpose.msra.mxu0 0.0
  %832 = vmatprep.subr.mxu0 0.0
  %833 = vmatpush1.xpose.msra.mxu0 0.0
  %834 = vmatprep.mubr.f32.mxu0 0.0
  %835 = vmatmul.mubr.f32.gmra.mrb[0].mxu0 %v768
  %v836 = vpop.f32.mrb[0].mxu0
  %v837 = vadd.f32 0.0, %v836
  %v838 = vpop.f32.mrb[0].mxu0
  %839 = vdwg.mxu0
  %v840 = vmul.f32 %v837, 0.35355338
  %v841 = vsel %vm241, %v840, -inf
  %842 = vmax.xlane.f32.xlu0 %v841
  %v843 = vpop.xlane.xlu0 %842
  %v844 = vsub.f32 %v840, %v843
  %v845 = vmul.f32 %v844, 1.442695
  %v846 = vpow.pop %v845
  %v847 = vsel %vm241, %v846, 0.0
  %848 = vadd.xlane.f32.xlu0 %v847
  %v849 = vpop.xlane.xlu0 %848
  %v851 = vsel %vm241, %v846, 0
  %853 = vmatprep.subr.mxu0 0.0
  %854 = vmatpush1.msra.mxu0 %v494
  %855 = vmatprep.subr.mxu0 0.0
  %856 = vmatpush1.msra.mxu0 0.0
  %857 = vmatprep.subr.mxu0 0.0
  %858 = vmatpush1.msra.mxu0 0.0
  %859 = vmatprep.subr.mxu0 0.0
  %860 = vmatpush1.msra.mxu0 0.0
  %861 = vmatprep.subr.mxu0 0.0
  %862 = vmatpush1.msra.mxu0 0.0
  %863 = vmatprep.subr.mxu0 0.0
  %864 = vmatpush1.msra.mxu0 0.0
  %865 = vmatprep.subr.mxu0 0.0
  %866 = vmatpush1.msra.mxu0 0.0
  %867 = vmatprep.subr.mxu0 0.0
  %868 = vmatpush1.msra.mxu0 0.0
  %869 = vmatprep.subr.mxu0 0.0
  %870 = vmatpush1.msra.mxu0 0.0
  %871 = vmatprep.subr.mxu0 0.0
  %872 = vmatpush1.msra.mxu0 0.0
  %873 = vmatprep.subr.mxu0 0.0
  %874 = vmatpush1.msra.mxu0 0.0
  %875 = vmatprep.subr.mxu0 0.0
  %876 = vmatpush1.msra.mxu0 0.0
  %877 = vmatprep.subr.mxu0 0.0
  %878 = vmatpush1.msra.mxu0 0.0
  %879 = vmatprep.subr.mxu0 0.0
  %880 = vmatpush1.msra.mxu0 0.0
  %881 = vmatprep.subr.mxu0 0.0
  %882 = vmatpush1.msra.mxu0 0.0
  %883 = vmatprep.subr.mxu0 0.0
  %884 = vmatpush1.msra.mxu0 0.0
  %885 = vmatprep.subr.mxu0 0.0
  %886 = vmatpush1.msra.mxu0 0.0
  %887 = vmatprep.subr.mxu0 0.0
  %888 = vmatpush1.msra.mxu0 0.0
  %889 = vmatprep.subr.mxu0 0.0
  %890 = vmatpush1.msra.mxu0 0.0
  %891 = vmatprep.subr.mxu0 0.0
  %892 = vmatpush1.msra.mxu0 0.0
  %893 = vmatprep.subr.mxu0 0.0
  %894 = vmatpush1.msra.mxu0 0.0
  %895 = vmatprep.subr.mxu0 0.0
  %896 = vmatpush1.msra.mxu0 0.0
  %897 = vmatprep.subr.mxu0 0.0
  %898 = vmatpush1.msra.mxu0 0.0
  %899 = vmatprep.subr.mxu0 0.0
  %900 = vmatpush1.msra.mxu0 0.0
  %901 = vmatprep.subr.mxu0 0.0
  %902 = vmatpush1.msra.mxu0 0.0
  %903 = vmatprep.subr.mxu0 0.0
  %904 = vmatpush1.msra.mxu0 0.0
  %905 = vmatprep.subr.mxu0 0.0
  %906 = vmatpush1.msra.mxu0 0.0
  %907 = vmatprep.subr.mxu0 0.0
  %908 = vmatpush1.msra.mxu0 0.0
  %909 = vmatprep.subr.mxu0 0.0
  %910 = vmatpush1.msra.mxu0 0.0
  %911 = vmatprep.subr.mxu0 0.0
  %912 = vmatpush1.msra.mxu0 0.0
  %913 = vmatprep.subr.mxu0 0.0
  %914 = vmatpush1.msra.mxu0 0.0
  %915 = vmatprep.subr.mxu0 0.0
  %916 = vmatpush1.msra.mxu0 0.0
  %917 = vmatprep.mubr.f32.mxu0 0.0
  %918 = vmatmul.mubr.f32.gmra.mrb[0].mxu0 %v851
  %v919 = vpop.f32.mrb[0].mxu0
  %v920 = vadd.f32 0.0, %v919
  %v921 = vpop.f32.mrb[0].mxu0
  %922 = vdwg.mxu0
  %v923 = vrcp.pop %v849
  %v924 = vmul.f32 %v920, %v923
  %925 = vrot.lane.b32.xlu0 %v141, 108
  %v926 = vpop.permute.xlu0 %925
  %927 = vrot.lane.b32.xlu0 %v142, 108
  %v928 = vpop.permute.xlu0 %927
  %931 = vrot.lane.b32.xlu0 %v129, 116
  %v932 = vpop.permute.xlu0 %931
  %933 = vrot.lane.b32.xlu0 %v134, 116
  %v934 = vpop.permute.xlu0 %933
  %v937 = vsel %vm159, %v926, %v932
  %v938 = vsel %vm159, %v928, %v934
  %939 = vrot.lane.b32.xlu0 %v137, 16
  %v940 = vpop.permute.xlu0 %939
  %941 = vrot.lane.b32.xlu0 %v138, 16
  %v942 = vpop.permute.xlu0 %941
  %v945 = vmul.f32 %v129, %v940
  %v946 = vmul.f32 %v134, %v942
  %v947 = vmul.f32 %v937, %v139
  %v948 = vmul.f32 %v938, %v140
  %951 = vrot.lane.b32.xlu0 %v947, 16
  %v952 = vpop.permute.xlu0 %951
  %953 = vrot.lane.b32.xlu0 %v948, 16
  %v954 = vpop.permute.xlu0 %953
  %v957 = vadd.f32 %v945, %v952
  %v958 = vadd.f32 %v946, %v954
  %960 = vrot.lane.b32.xlu0 %v957, 112
  %v961 = vpop.permute.xlu0 %960
  %963 = vrot.lane.b32.xlu0 %v216, 88
  %v964 = vpop.permute.xlu0 %963
  %v965 = vsel %vm241, %v961, 0
  %v967 = vsel %vm241, %v964, 0
  %969 = vmatprep.subr.mxu0 0.0
  %970 = vmatpush1.xpose.msra.mxu0 %v967
  %971 = vmatprep.subr.mxu0 0.0
  %972 = vmatpush1.xpose.msra.mxu0 0.0
  %973 = vmatprep.subr.mxu0 0.0
  %974 = vmatpush1.xpose.msra.mxu0 0.0
  %975 = vmatprep.subr.mxu0 0.0
  %976 = vmatpush1.xpose.msra.mxu0 0.0
  %977 = vmatprep.subr.mxu0 0.0
  %978 = vmatpush1.xpose.msra.mxu0 0.0
  %979 = vmatprep.subr.mxu0 0.0
  %980 = vmatpush1.xpose.msra.mxu0 0.0
  %981 = vmatprep.subr.mxu0 0.0
  %982 = vmatpush1.xpose.msra.mxu0 0.0
  %983 = vmatprep.subr.mxu0 0.0
  %984 = vmatpush1.xpose.msra.mxu0 0.0
  %985 = vmatprep.subr.mxu0 0.0
  %986 = vmatpush1.xpose.msra.mxu0 0.0
  %987 = vmatprep.subr.mxu0 0.0
  %988 = vmatpush1.xpose.msra.mxu0 0.0
  %989 = vmatprep.subr.mxu0 0.0
  %990 = vmatpush1.xpose.msra.mxu0 0.0
  %991 = vmatprep.subr.mxu0 0.0
  %992 = vmatpush1.xpose.msra.mxu0 0.0
  %993 = vmatprep.subr.mxu0 0.0
  %994 = vmatpush1.xpose.msra.mxu0 0.0
  %995 = vmatprep.subr.mxu0 0.0
  %996 = vmatpush1.xpose.msra.mxu0 0.0
  %997 = vmatprep.subr.mxu0 0.0
  %998 = vmatpush1.xpose.msra.mxu0 0.0
  %999 = vmatprep.subr.mxu0 0.0
  %1000 = vmatpush1.xpose.msra.mxu0 0.0
  %1001 = vmatprep.subr.mxu0 0.0
  %1002 = vmatpush1.xpose.msra.mxu0 0.0
  %1003 = vmatprep.subr.mxu0 0.0
  %1004 = vmatpush1.xpose.msra.mxu0 0.0
  %1005 = vmatprep.subr.mxu0 0.0
  %1006 = vmatpush1.xpose.msra.mxu0 0.0
  %1007 = vmatprep.subr.mxu0 0.0
  %1008 = vmatpush1.xpose.msra.mxu0 0.0
  %1009 = vmatprep.subr.mxu0 0.0
  %1010 = vmatpush1.xpose.msra.mxu0 0.0
  %1011 = vmatprep.subr.mxu0 0.0
  %1012 = vmatpush1.xpose.msra.mxu0 0.0
  %1013 = vmatprep.subr.mxu0 0.0
  %1014 = vmatpush1.xpose.msra.mxu0 0.0
  %1015 = vmatprep.subr.mxu0 0.0
  %1016 = vmatpush1.xpose.msra.mxu0 0.0
  %1017 = vmatprep.subr.mxu0 0.0
  %1018 = vmatpush1.xpose.msra.mxu0 0.0
  %1019 = vmatprep.subr.mxu0 0.0
  %1020 = vmatpush1.xpose.msra.mxu0 0.0
  %1021 = vmatprep.subr.mxu0 0.0
  %1022 = vmatpush1.xpose.msra.mxu0 0.0
  %1023 = vmatprep.subr.mxu0 0.0
  %1024 = vmatpush1.xpose.msra.mxu0 0.0
  %1025 = vmatprep.subr.mxu0 0.0
  %1026 = vmatpush1.xpose.msra.mxu0 0.0
  %1027 = vmatprep.subr.mxu0 0.0
  %1028 = vmatpush1.xpose.msra.mxu0 0.0
  %1029 = vmatprep.subr.mxu0 0.0
  %1030 = vmatpush1.xpose.msra.mxu0 0.0
  %1031 = vmatprep.subr.mxu0 0.0
  %1032 = vmatpush1.xpose.msra.mxu0 0.0
  %1033 = vmatprep.mubr.f32.mxu0 0.0
  %1034 = vmatmul.mubr.f32.gmra.mrb[0].mxu0 %v965
  %v1035 = vpop.f32.mrb[0].mxu0
  %v1036 = vadd.f32 0.0, %v1035
  %v1037 = vpop.f32.mrb[0].mxu0
  %1038 = vdwg.mxu0
  %v1039 = vmul.f32 %v1036, 0.35355338
  %v1040 = vsel %vm241, %v1039, -inf
  %1041 = vmax.xlane.f32.xlu0 %v1040
  %v1042 = vpop.xlane.xlu0 %1041
  %v1043 = vsub.f32 %v1039, %v1042
  %v1044 = vmul.f32 %v1043, 1.442695
  %v1045 = vpow.pop %v1044
  %v1046 = vsel %vm241, %v1045, 0.0
  %1047 = vadd.xlane.f32.xlu0 %v1046
  %v1048 = vpop.xlane.xlu0 %1047
  %1049 = vrot.lane.b32.xlu0 %v129, 72
  %v1050 = vpop.permute.xlu0 %1049
  %v1053 = vsel %vm241, %v1045, 0
  %1055 = vmatprep.subr.mxu0 0.0
  %1056 = vmatpush1.msra.mxu0 %v1050
  %1057 = vmatprep.subr.mxu0 0.0
  %1058 = vmatpush1.msra.mxu0 0.0
  %1059 = vmatprep.subr.mxu0 0.0
  %1060 = vmatpush1.msra.mxu0 0.0
  %1061 = vmatprep.subr.mxu0 0.0
  %1062 = vmatpush1.msra.mxu0 0.0
  %1063 = vmatprep.subr.mxu0 0.0
  %1064 = vmatpush1.msra.mxu0 0.0
  %1065 = vmatprep.subr.mxu0 0.0
  %1066 = vmatpush1.msra.mxu0 0.0
  %1067 = vmatprep.subr.mxu0 0.0
  %1068 = vmatpush1.msra.mxu0 0.0
  %1069 = vmatprep.subr.mxu0 0.0
  %1070 = vmatpush1.msra.mxu0 0.0
  %1071 = vmatprep.subr.mxu0 0.0
  %1072 = vmatpush1.msra.mxu0 0.0
  %1073 = vmatprep.subr.mxu0 0.0
  %1074 = vmatpush1.msra.mxu0 0.0
  %1075 = vmatprep.subr.mxu0 0.0
  %1076 = vmatpush1.msra.mxu0 0.0
  %1077 = vmatprep.subr.mxu0 0.0
  %1078 = vmatpush1.msra.mxu0 0.0
  %1079 = vmatprep.subr.mxu0 0.0
  %1080 = vmatpush1.msra.mxu0 0.0
  %1081 = vmatprep.subr.mxu0 0.0
  %1082 = vmatpush1.msra.mxu0 0.0
  %1083 = vmatprep.subr.mxu0 0.0
  %1084 = vmatpush1.msra.mxu0 0.0
  %1085 = vmatprep.subr.mxu0 0.0
  %1086 = vmatpush1.msra.mxu0 0.0
  %1087 = vmatprep.subr.mxu0 0.0
  %1088 = vmatpush1.msra.mxu0 0.0
  %1089 = vmatprep.subr.mxu0 0.0
  %1090 = vmatpush1.msra.mxu0 0.0
  %1091 = vmatprep.subr.mxu0 0.0
  %1092 = vmatpush1.msra.mxu0 0.0
  %1093 = vmatprep.subr.mxu0 0.0
  %1094 = vmatpush1.msra.mxu0 0.0
  %1095 = vmatprep.subr.mxu0 0.0
  %1096 = vmatpush1.msra.mxu0 0.0
  %1097 = vmatprep.subr.mxu0 0.0
  %1098 = vmatpush1.msra.mxu0 0.0
  %1099 = vmatprep.subr.mxu0 0.0
  %1100 = vmatpush1.msra.mxu0 0.0
  %1101 = vmatprep.subr.mxu0 0.0
  %1102 = vmatpush1.msra.mxu0 0.0
  %1103 = vmatprep.subr.mxu0 0.0
  %1104 = vmatpush1.msra.mxu0 0.0
  %1105 = vmatprep.subr.mxu0 0.0
  %1106 = vmatpush1.msra.mxu0 0.0
  %1107 = vmatprep.subr.mxu0 0.0
  %1108 = vmatpush1.msra.mxu0 0.0
  %1109 = vmatprep.subr.mxu0 0.0
  %1110 = vmatpush1.msra.mxu0 0.0
  %1111 = vmatprep.subr.mxu0 0.0
  %1112 = vmatpush1.msra.mxu0 0.0
  %1113 = vmatprep.subr.mxu0 0.0
  %1114 = vmatpush1.msra.mxu0 0.0
  %1115 = vmatprep.subr.mxu0 0.0
  %1116 = vmatpush1.msra.mxu0 0.0
  %1117 = vmatprep.subr.mxu0 0.0
  %1118 = vmatpush1.msra.mxu0 0.0
  %1119 = vmatprep.mubr.f32.mxu0 0.0
  %1120 = vmatmul.mubr.f32.gmra.mrb[0].mxu0 %v1053
  %v1121 = vpop.f32.mrb[0].mxu0
  %v1122 = vadd.f32 0.0, %v1121
  %v1123 = vpop.f32.mrb[0].mxu0
  %1124 = vdwg.mxu0
  %v1125 = vrcp.pop %v1048
  %v1126 = vmul.f32 %v1122, %v1125
  %1128 = vrot.lane.b32.xlu0 %v958, 112
  %v1129 = vpop.permute.xlu0 %1128
  %1131 = vrot.lane.b32.xlu0 %v217, 88
  %v1132 = vpop.permute.xlu0 %1131
  %v1133 = vsel %vm241, %v1129, 0
  %v1135 = vsel %vm241, %v1132, 0
  %1137 = vmatprep.subr.mxu0 0.0
  %1138 = vmatpush1.xpose.msra.mxu0 %v1135
  %1139 = vmatprep.subr.mxu0 0.0
  %1140 = vmatpush1.xpose.msra.mxu0 0.0
  %1141 = vmatprep.subr.mxu0 0.0
  %1142 = vmatpush1.xpose.msra.mxu0 0.0
  %1143 = vmatprep.subr.mxu0 0.0
  %1144 = vmatpush1.xpose.msra.mxu0 0.0
  %1145 = vmatprep.subr.mxu0 0.0
  %1146 = vmatpush1.xpose.msra.mxu0 0.0
  %1147 = vmatprep.subr.mxu0 0.0
  %1148 = vmatpush1.xpose.msra.mxu0 0.0
  %1149 = vmatprep.subr.mxu0 0.0
  %1150 = vmatpush1.xpose.msra.mxu0 0.0
  %1151 = vmatprep.subr.mxu0 0.0
  %1152 = vmatpush1.xpose.msra.mxu0 0.0
  %1153 = vmatprep.subr.mxu0 0.0
  %1154 = vmatpush1.xpose.msra.mxu0 0.0
  %1155 = vmatprep.subr.mxu0 0.0
  %1156 = vmatpush1.xpose.msra.mxu0 0.0
  %1157 = vmatprep.subr.mxu0 0.0
  %1158 = vmatpush1.xpose.msra.mxu0 0.0
  %1159 = vmatprep.subr.mxu0 0.0
  %1160 = vmatpush1.xpose.msra.mxu0 0.0
  %1161 = vmatprep.subr.mxu0 0.0
  %1162 = vmatpush1.xpose.msra.mxu0 0.0
  %1163 = vmatprep.subr.mxu0 0.0
  %1164 = vmatpush1.xpose.msra.mxu0 0.0
  %1165 = vmatprep.subr.mxu0 0.0
  %1166 = vmatpush1.xpose.msra.mxu0 0.0
  %1167 = vmatprep.subr.mxu0 0.0
  %1168 = vmatpush1.xpose.msra.mxu0 0.0
  %1169 = vmatprep.subr.mxu0 0.0
  %1170 = vmatpush1.xpose.msra.mxu0 0.0
  %1171 = vmatprep.subr.mxu0 0.0
  %1172 = vmatpush1.xpose.msra.mxu0 0.0
  %1173 = vmatprep.subr.mxu0 0.0
  %1174 = vmatpush1.xpose.msra.mxu0 0.0
  %1175 = vmatprep.subr.mxu0 0.0
  %1176 = vmatpush1.xpose.msra.mxu0 0.0
  %1177 = vmatprep.subr.mxu0 0.0
  %1178 = vmatpush1.xpose.msra.mxu0 0.0
  %1179 = vmatprep.subr.mxu0 0.0
  %1180 = vmatpush1.xpose.msra.mxu0 0.0
  %1181 = vmatprep.subr.mxu0 0.0
  %1182 = vmatpush1.xpose.msra.mxu0 0.0
  %1183 = vmatprep.subr.mxu0 0.0
  %1184 = vmatpush1.xpose.msra.mxu0 0.0
  %1185 = vmatprep.subr.mxu0 0.0
  %1186 = vmatpush1.xpose.msra.mxu0 0.0
  %1187 = vmatprep.subr.mxu0 0.0
  %1188 = vmatpush1.xpose.msra.mxu0 0.0
  %1189 = vmatprep.subr.mxu0 0.0
  %1190 = vmatpush1.xpose.msra.mxu0 0.0
  %1191 = vmatprep.subr.mxu0 0.0
  %1192 = vmatpush1.xpose.msra.mxu0 0.0
  %1193 = vmatprep.subr.mxu0 0.0
  %1194 = vmatpush1.xpose.msra.mxu0 0.0
  %1195 = vmatprep.subr.mxu0 0.0
  %1196 = vmatpush1.xpose.msra.mxu0 0.0
  %1197 = vmatprep.subr.mxu0 0.0
  %1198 = vmatpush1.xpose.msra.mxu0 0.0
  %1199 = vmatprep.subr.mxu0 0.0
  %1200 = vmatpush1.xpose.msra.mxu0 0.0
  %1201 = vmatprep.mubr.f32.mxu0 0.0
  %1202 = vmatmul.mubr.f32.gmra.mrb[0].mxu0 %v1133
  %v1203 = vpop.f32.mrb[0].mxu0
  %v1204 = vadd.f32 0.0, %v1203
  %v1205 = vpop.f32.mrb[0].mxu0
  %1206 = vdwg.mxu0
  %v1207 = vmul.f32 %v1204, 0.35355338
  %v1208 = vsel %vm241, %v1207, -inf
  %1209 = vmax.xlane.f32.xlu0 %v1208
  %v1210 = vpop.xlane.xlu0 %1209
  %v1211 = vsub.f32 %v1207, %v1210
  %v1212 = vmul.f32 %v1211, 1.442695
  %v1213 = vpow.pop %v1212
  %v1214 = vsel %vm241, %v1213, 0.0
  %1215 = vadd.xlane.f32.xlu0 %v1214
  %v1216 = vpop.xlane.xlu0 %1215
  %1217 = vrot.lane.b32.xlu0 %v134, 72
  %v1218 = vpop.permute.xlu0 %1217
  %v1221 = vsel %vm241, %v1213, 0
  %1223 = vmatprep.subr.mxu0 0.0
  %1224 = vmatpush1.msra.mxu0 %v1218
  %1225 = vmatprep.subr.mxu0 0.0
  %1226 = vmatpush1.msra.mxu0 0.0
  %1227 = vmatprep.subr.mxu0 0.0
  %1228 = vmatpush1.msra.mxu0 0.0
  %1229 = vmatprep.subr.mxu0 0.0
  %1230 = vmatpush1.msra.mxu0 0.0
  %1231 = vmatprep.subr.mxu0 0.0
  %1232 = vmatpush1.msra.mxu0 0.0
  %1233 = vmatprep.subr.mxu0 0.0
  %1234 = vmatpush1.msra.mxu0 0.0
  %1235 = vmatprep.subr.mxu0 0.0
  %1236 = vmatpush1.msra.mxu0 0.0
  %1237 = vmatprep.subr.mxu0 0.0
  %1238 = vmatpush1.msra.mxu0 0.0
  %1239 = vmatprep.subr.mxu0 0.0
  %1240 = vmatpush1.msra.mxu0 0.0
  %1241 = vmatprep.subr.mxu0 0.0
  %1242 = vmatpush1.msra.mxu0 0.0
  %1243 = vmatprep.subr.mxu0 0.0
  %1244 = vmatpush1.msra.mxu0 0.0
  %1245 = vmatprep.subr.mxu0 0.0
  %1246 = vmatpush1.msra.mxu0 0.0
  %1247 = vmatprep.subr.mxu0 0.0
  %1248 = vmatpush1.msra.mxu0 0.0
  %1249 = vmatprep.subr.mxu0 0.0
  %1250 = vmatpush1.msra.mxu0 0.0
  %1251 = vmatprep.subr.mxu0 0.0
  %1252 = vmatpush1.msra.mxu0 0.0
  %1253 = vmatprep.subr.mxu0 0.0
  %1254 = vmatpush1.msra.mxu0 0.0
  %1255 = vmatprep.subr.mxu0 0.0
  %1256 = vmatpush1.msra.mxu0 0.0
  %1257 = vmatprep.subr.mxu0 0.0
  %1258 = vmatpush1.msra.mxu0 0.0
  %1259 = vmatprep.subr.mxu0 0.0
  %1260 = vmatpush1.msra.mxu0 0.0
  %1261 = vmatprep.subr.mxu0 0.0
  %1262 = vmatpush1.msra.mxu0 0.0
  %1263 = vmatprep.subr.mxu0 0.0
  %1264 = vmatpush1.msra.mxu0 0.0
  %1265 = vmatprep.subr.mxu0 0.0
  %1266 = vmatpush1.msra.mxu0 0.0
  %1267 = vmatprep.subr.mxu0 0.0
  %1268 = vmatpush1.msra.mxu0 0.0
  %1269 = vmatprep.subr.mxu0 0.0
  %1270 = vmatpush1.msra.mxu0 0.0
  %1271 = vmatprep.subr.mxu0 0.0
  %1272 = vmatpush1.msra.mxu0 0.0
  %1273 = vmatprep.subr.mxu0 0.0
  %1274 = vmatpush1.msra.mxu0 0.0
  %1275 = vmatprep.subr.mxu0 0.0
  %1276 = vmatpush1.msra.mxu0 0.0
  %1277 = vmatprep.subr.mxu0 0.0
  %1278 = vmatpush1.msra.mxu0 0.0
  %1279 = vmatprep.subr.mxu0 0.0
  %1280 = vmatpush1.msra.mxu0 0.0
  %1281 = vmatprep.subr.mxu0 0.0
  %1282 = vmatpush1.msra.mxu0 0.0
  %1283 = vmatprep.subr.mxu0 0.0
  %1284 = vmatpush1.msra.mxu0 0.0
  %1285 = vmatprep.subr.mxu0 0.0
  %1286 = vmatpush1.msra.mxu0 0.0
  %1287 = vmatprep.mubr.f32.mxu0 0.0
  %1288 = vmatmul.mubr.f32.gmra.mrb[0].mxu0 %v1221
  %v1289 = vpop.f32.mrb[0].mxu0
  %v1290 = vadd.f32 0.0, %v1289
  %v1291 = vpop.f32.mrb[0].mxu0
  %1292 = vdwg.mxu0
  %v1293 = vrcp.pop %v1216
  %v1294 = vmul.f32 %v1290, %v1293
  %1295 = vrot.lane.b32.xlu0 %v141, 100
  %v1296 = vpop.permute.xlu0 %1295
  %1297 = vrot.lane.b32.xlu0 %v142, 100
  %v1298 = vpop.permute.xlu0 %1297
  %1301 = vrot.lane.b32.xlu0 %v129, 108
  %v1302 = vpop.permute.xlu0 %1301
  %1303 = vrot.lane.b32.xlu0 %v134, 108
  %v1304 = vpop.permute.xlu0 %1303
  %v1307 = vsel %vm159, %v1296, %v1302
  %v1308 = vsel %vm159, %v1298, %v1304
  %1309 = vrot.lane.b32.xlu0 %v137, 24
  %v1310 = vpop.permute.xlu0 %1309
  %1311 = vrot.lane.b32.xlu0 %v138, 24
  %v1312 = vpop.permute.xlu0 %1311
  %v1315 = vmul.f32 %v129, %v1310
  %v1316 = vmul.f32 %v134, %v1312
  %v1317 = vmul.f32 %v1307, %v139
  %v1318 = vmul.f32 %v1308, %v140
  %1321 = vrot.lane.b32.xlu0 %v1317, 24
  %v1322 = vpop.permute.xlu0 %1321
  %1323 = vrot.lane.b32.xlu0 %v1318, 24
  %v1324 = vpop.permute.xlu0 %1323
  %v1327 = vadd.f32 %v1315, %v1322
  %v1328 = vadd.f32 %v1316, %v1324
  %1330 = vrot.lane.b32.xlu0 %v1327, 104
  %v1331 = vpop.permute.xlu0 %1330
  %v1332 = vsel %vm241, %v1331, 0
  %1334 = vmatprep.subr.mxu0 0.0
  %1335 = vmatpush1.xpose.msra.mxu0 %v967
  %1336 = vmatprep.subr.mxu0 0.0
  %1337 = vmatpush1.xpose.msra.mxu0 0.0
  %1338 = vmatprep.subr.mxu0 0.0
  %1339 = vmatpush1.xpose.msra.mxu0 0.0
  %1340 = vmatprep.subr.mxu0 0.0
  %1341 = vmatpush1.xpose.msra.mxu0 0.0
  %1342 = vmatprep.subr.mxu0 0.0
  %1343 = vmatpush1.xpose.msra.mxu0 0.0
  %1344 = vmatprep.subr.mxu0 0.0
  %1345 = vmatpush1.xpose.msra.mxu0 0.0
  %1346 = vmatprep.subr.mxu0 0.0
  %1347 = vmatpush1.xpose.msra.mxu0 0.0
  %1348 = vmatprep.subr.mxu0 0.0
  %1349 = vmatpush1.xpose.msra.mxu0 0.0
  %1350 = vmatprep.subr.mxu0 0.0
  %1351 = vmatpush1.xpose.msra.mxu0 0.0
  %1352 = vmatprep.subr.mxu0 0.0
  %1353 = vmatpush1.xpose.msra.mxu0 0.0
  %1354 = vmatprep.subr.mxu0 0.0
  %1355 = vmatpush1.xpose.msra.mxu0 0.0
  %1356 = vmatprep.subr.mxu0 0.0
  %1357 = vmatpush1.xpose.msra.mxu0 0.0
  %1358 = vmatprep.subr.mxu0 0.0
  %1359 = vmatpush1.xpose.msra.mxu0 0.0
  %1360 = vmatprep.subr.mxu0 0.0
  %1361 = vmatpush1.xpose.msra.mxu0 0.0
  %1362 = vmatprep.subr.mxu0 0.0
  %1363 = vmatpush1.xpose.msra.mxu0 0.0
  %1364 = vmatprep.subr.mxu0 0.0
  %1365 = vmatpush1.xpose.msra.mxu0 0.0
  %1366 = vmatprep.subr.mxu0 0.0
  %1367 = vmatpush1.xpose.msra.mxu0 0.0
  %1368 = vmatprep.subr.mxu0 0.0
  %1369 = vmatpush1.xpose.msra.mxu0 0.0
  %1370 = vmatprep.subr.mxu0 0.0
  %1371 = vmatpush1.xpose.msra.mxu0 0.0
  %1372 = vmatprep.subr.mxu0 0.0
  %1373 = vmatpush1.xpose.msra.mxu0 0.0
  %1374 = vmatprep.subr.mxu0 0.0
  %1375 = vmatpush1.xpose.msra.mxu0 0.0
  %1376 = vmatprep.subr.mxu0 0.0
  %1377 = vmatpush1.xpose.msra.mxu0 0.0
  %1378 = vmatprep.subr.mxu0 0.0
  %1379 = vmatpush1.xpose.msra.mxu0 0.0
  %1380 = vmatprep.subr.mxu0 0.0
  %1381 = vmatpush1.xpose.msra.mxu0 0.0
  %1382 = vmatprep.subr.mxu0 0.0
  %1383 = vmatpush1.xpose.msra.mxu0 0.0
  %1384 = vmatprep.subr.mxu0 0.0
  %1385 = vmatpush1.xpose.msra.mxu0 0.0
  %1386 = vmatprep.subr.mxu0 0.0
  %1387 = vmatpush1.xpose.msra.mxu0 0.0
  %1388 = vmatprep.subr.mxu0 0.0
  %1389 = vmatpush1.xpose.msra.mxu0 0.0
  %1390 = vmatprep.subr.mxu0 0.0
  %1391 = vmatpush1.xpose.msra.mxu0 0.0
  %1392 = vmatprep.subr.mxu0 0.0
  %1393 = vmatpush1.xpose.msra.mxu0 0.0
  %1394 = vmatprep.subr.mxu0 0.0
  %1395 = vmatpush1.xpose.msra.mxu0 0.0
  %1396 = vmatprep.subr.mxu0 0.0
  %1397 = vmatpush1.xpose.msra.mxu0 0.0
  %1398 = vmatprep.mubr.f32.mxu0 0.0
  %1399 = vmatmul.mubr.f32.gmra.mrb[0].mxu0 %v1332
  %v1400 = vpop.f32.mrb[0].mxu0
  %v1401 = vadd.f32 0.0, %v1400
  %v1402 = vpop.f32.mrb[0].mxu0
  %1403 = vdwg.mxu0
  %v1404 = vmul.f32 %v1401, 0.35355338
  %v1405 = vsel %vm241, %v1404, -inf
  %1406 = vmax.xlane.f32.xlu0 %v1405
  %v1407 = vpop.xlane.xlu0 %1406
  %v1408 = vsub.f32 %v1404, %v1407
  %v1409 = vmul.f32 %v1408, 1.442695
  %v1410 = vpow.pop %v1409
  %v1411 = vsel %vm241, %v1410, 0.0
  %1412 = vadd.xlane.f32.xlu0 %v1411
  %v1413 = vpop.xlane.xlu0 %1412
  %v1415 = vsel %vm241, %v1410, 0
  %1417 = vmatprep.subr.mxu0 0.0
  %1418 = vmatpush1.msra.mxu0 %v1050
  %1419 = vmatprep.subr.mxu0 0.0
  %1420 = vmatpush1.msra.mxu0 0.0
  %1421 = vmatprep.subr.mxu0 0.0
  %1422 = vmatpush1.msra.mxu0 0.0
  %1423 = vmatprep.subr.mxu0 0.0
  %1424 = vmatpush1.msra.mxu0 0.0
  %1425 = vmatprep.subr.mxu0 0.0
  %1426 = vmatpush1.msra.mxu0 0.0
  %1427 = vmatprep.subr.mxu0 0.0
  %1428 = vmatpush1.msra.mxu0 0.0
  %1429 = vmatprep.subr.mxu0 0.0
  %1430 = vmatpush1.msra.mxu0 0.0
  %1431 = vmatprep.subr.mxu0 0.0
  %1432 = vmatpush1.msra.mxu0 0.0
  %1433 = vmatprep.subr.mxu0 0.0
  %1434 = vmatpush1.msra.mxu0 0.0
  %1435 = vmatprep.subr.mxu0 0.0
  %1436 = vmatpush1.msra.mxu0 0.0
  %1437 = vmatprep.subr.mxu0 0.0
  %1438 = vmatpush1.msra.mxu0 0.0
  %1439 = vmatprep.subr.mxu0 0.0
  %1440 = vmatpush1.msra.mxu0 0.0
  %1441 = vmatprep.subr.mxu0 0.0
  %1442 = vmatpush1.msra.mxu0 0.0
  %1443 = vmatprep.subr.mxu0 0.0
  %1444 = vmatpush1.msra.mxu0 0.0
  %1445 = vmatprep.subr.mxu0 0.0
  %1446 = vmatpush1.msra.mxu0 0.0
  %1447 = vmatprep.subr.mxu0 0.0
  %1448 = vmatpush1.msra.mxu0 0.0
  %1449 = vmatprep.subr.mxu0 0.0
  %1450 = vmatpush1.msra.mxu0 0.0
  %1451 = vmatprep.subr.mxu0 0.0
  %1452 = vmatpush1.msra.mxu0 0.0
  %1453 = vmatprep.subr.mxu0 0.0
  %1454 = vmatpush1.msra.mxu0 0.0
  %1455 = vmatprep.subr.mxu0 0.0
  %1456 = vmatpush1.msra.mxu0 0.0
  %1457 = vmatprep.subr.mxu0 0.0
  %1458 = vmatpush1.msra.mxu0 0.0
  %1459 = vmatprep.subr.mxu0 0.0
  %1460 = vmatpush1.msra.mxu0 0.0
  %1461 = vmatprep.subr.mxu0 0.0
  %1462 = vmatpush1.msra.mxu0 0.0
  %1463 = vmatprep.subr.mxu0 0.0
  %1464 = vmatpush1.msra.mxu0 0.0
  %1465 = vmatprep.subr.mxu0 0.0
  %1466 = vmatpush1.msra.mxu0 0.0
  %1467 = vmatprep.subr.mxu0 0.0
  %1468 = vmatpush1.msra.mxu0 0.0
  %1469 = vmatprep.subr.mxu0 0.0
  %1470 = vmatpush1.msra.mxu0 0.0
  %1471 = vmatprep.subr.mxu0 0.0
  %1472 = vmatpush1.msra.mxu0 0.0
  %1473 = vmatprep.subr.mxu0 0.0
  %1474 = vmatpush1.msra.mxu0 0.0
  %1475 = vmatprep.subr.mxu0 0.0
  %1476 = vmatpush1.msra.mxu0 0.0
  %1477 = vmatprep.subr.mxu0 0.0
  %1478 = vmatpush1.msra.mxu0 0.0
  %1479 = vmatprep.subr.mxu0 0.0
  %1480 = vmatpush1.msra.mxu0 0.0
  %1481 = vmatprep.mubr.f32.mxu0 0.0
  %1482 = vmatmul.mubr.f32.gmra.mrb[0].mxu0 %v1415
  %v1483 = vpop.f32.mrb[0].mxu0
  %v1484 = vadd.f32 0.0, %v1483
  %v1485 = vpop.f32.mrb[0].mxu0
  %1486 = vdwg.mxu0
  %v1487 = vrcp.pop %v1413
  %v1488 = vmul.f32 %v1484, %v1487
  %1490 = vrot.lane.b32.xlu0 %v1328, 104
  %v1491 = vpop.permute.xlu0 %1490
  %v1492 = vsel %vm241, %v1491, 0
  %1494 = vmatprep.subr.mxu0 0.0
  %1495 = vmatpush1.xpose.msra.mxu0 %v1135
  %1496 = vmatprep.subr.mxu0 0.0
  %1497 = vmatpush1.xpose.msra.mxu0 0.0
  %1498 = vmatprep.subr.mxu0 0.0
  %1499 = vmatpush1.xpose.msra.mxu0 0.0
  %1500 = vmatprep.subr.mxu0 0.0
  %1501 = vmatpush1.xpose.msra.mxu0 0.0
  %1502 = vmatprep.subr.mxu0 0.0
  %1503 = vmatpush1.xpose.msra.mxu0 0.0
  %1504 = vmatprep.subr.mxu0 0.0
  %1505 = vmatpush1.xpose.msra.mxu0 0.0
  %1506 = vmatprep.subr.mxu0 0.0
  %1507 = vmatpush1.xpose.msra.mxu0 0.0
  %1508 = vmatprep.subr.mxu0 0.0
  %1509 = vmatpush1.xpose.msra.mxu0 0.0
  %1510 = vmatprep.subr.mxu0 0.0
  %1511 = vmatpush1.xpose.msra.mxu0 0.0
  %1512 = vmatprep.subr.mxu0 0.0
  %1513 = vmatpush1.xpose.msra.mxu0 0.0
  %1514 = vmatprep.subr.mxu0 0.0
  %1515 = vmatpush1.xpose.msra.mxu0 0.0
  %1516 = vmatprep.subr.mxu0 0.0
  %1517 = vmatpush1.xpose.msra.mxu0 0.0
  %1518 = vmatprep.subr.mxu0 0.0
  %1519 = vmatpush1.xpose.msra.mxu0 0.0
  %1520 = vmatprep.subr.mxu0 0.0
  %1521 = vmatpush1.xpose.msra.mxu0 0.0
  %1522 = vmatprep.subr.mxu0 0.0
  %1523 = vmatpush1.xpose.msra.mxu0 0.0
  %1524 = vmatprep.subr.mxu0 0.0
  %1525 = vmatpush1.xpose.msra.mxu0 0.0
  %1526 = vmatprep.subr.mxu0 0.0
  %1527 = vmatpush1.xpose.msra.mxu0 0.0
  %1528 = vmatprep.subr.mxu0 0.0
  %1529 = vmatpush1.xpose.msra.mxu0 0.0
  %1530 = vmatprep.subr.mxu0 0.0
  %1531 = vmatpush1.xpose.msra.mxu0 0.0
  %1532 = vmatprep.subr.mxu0 0.0
  %1533 = vmatpush1.xpose.msra.mxu0 0.0
  %1534 = vmatprep.subr.mxu0 0.0
  %1535 = vmatpush1.xpose.msra.mxu0 0.0
  %1536 = vmatprep.subr.mxu0 0.0
  %1537 = vmatpush1.xpose.msra.mxu0 0.0
  %1538 = vmatprep.subr.mxu0 0.0
  %1539 = vmatpush1.xpose.msra.mxu0 0.0
  %1540 = vmatprep.subr.mxu0 0.0
  %1541 = vmatpush1.xpose.msra.mxu0 0.0
  %1542 = vmatprep.subr.mxu0 0.0
  %1543 = vmatpush1.xpose.msra.mxu0 0.0
  %1544 = vmatprep.subr.mxu0 0.0
  %1545 = vmatpush1.xpose.msra.mxu0 0.0
  %1546 = vmatprep.subr.mxu0 0.0
  %1547 = vmatpush1.xpose.msra.mxu0 0.0
  %1548 = vmatprep.subr.mxu0 0.0
  %1549 = vmatpush1.xpose.msra.mxu0 0.0
  %1550 = vmatprep.subr.mxu0 0.0
  %1551 = vmatpush1.xpose.msra.mxu0 0.0
  %1552 = vmatprep.subr.mxu0 0.0
  %1553 = vmatpush1.xpose.msra.mxu0 0.0
  %1554 = vmatprep.subr.mxu0 0.0
  %1555 = vmatpush1.xpose.msra.mxu0 0.0
  %1556 = vmatprep.subr.mxu0 0.0
  %1557 = vmatpush1.xpose.msra.mxu0 0.0
  %1558 = vmatprep.mubr.f32.mxu0 0.0
  %1559 = vmatmul.mubr.f32.gmra.mrb[0].mxu0 %v1492
  %v1560 = vpop.f32.mrb[0].mxu0
  %v1561 = vadd.f32 0.0, %v1560
  %v1562 = vpop.f32.mrb[0].mxu0
  %1563 = vdwg.mxu0
  %v1564 = vmul.f32 %v1561, 0.35355338
  %v1565 = vsel %vm241, %v1564, -inf
  %1566 = vmax.xlane.f32.xlu0 %v1565
  %v1567 = vpop.xlane.xlu0 %1566
  %v1568 = vsub.f32 %v1564, %v1567
  %v1569 = vmul.f32 %v1568, 1.442695
  %v1570 = vpow.pop %v1569
  %v1571 = vsel %vm241, %v1570, 0.0
  %1572 = vadd.xlane.f32.xlu0 %v1571
  %v1573 = vpop.xlane.xlu0 %1572
  %v1575 = vsel %vm241, %v1570, 0
  %1577 = vmatprep.subr.mxu0 0.0
  %1578 = vmatpush1.msra.mxu0 %v1218
  %1579 = vmatprep.subr.mxu0 0.0
  %1580 = vmatpush1.msra.mxu0 0.0
  %1581 = vmatprep.subr.mxu0 0.0
  %1582 = vmatpush1.msra.mxu0 0.0
  %1583 = vmatprep.subr.mxu0 0.0
  %1584 = vmatpush1.msra.mxu0 0.0
  %1585 = vmatprep.subr.mxu0 0.0
  %1586 = vmatpush1.msra.mxu0 0.0
  %1587 = vmatprep.subr.mxu0 0.0
  %1588 = vmatpush1.msra.mxu0 0.0
  %1589 = vmatprep.subr.mxu0 0.0
  %1590 = vmatpush1.msra.mxu0 0.0
  %1591 = vmatprep.subr.mxu0 0.0
  %1592 = vmatpush1.msra.mxu0 0.0
  %1593 = vmatprep.subr.mxu0 0.0
  %1594 = vmatpush1.msra.mxu0 0.0
  %1595 = vmatprep.subr.mxu0 0.0
  %1596 = vmatpush1.msra.mxu0 0.0
  %1597 = vmatprep.subr.mxu0 0.0
  %1598 = vmatpush1.msra.mxu0 0.0
  %1599 = vmatprep.subr.mxu0 0.0
  %1600 = vmatpush1.msra.mxu0 0.0
  %1601 = vmatprep.subr.mxu0 0.0
  %1602 = vmatpush1.msra.mxu0 0.0
  %1603 = vmatprep.subr.mxu0 0.0
  %1604 = vmatpush1.msra.mxu0 0.0
  %1605 = vmatprep.subr.mxu0 0.0
  %1606 = vmatpush1.msra.mxu0 0.0
  %1607 = vmatprep.subr.mxu0 0.0
  %1608 = vmatpush1.msra.mxu0 0.0
  %1609 = vmatprep.subr.mxu0 0.0
  %1610 = vmatpush1.msra.mxu0 0.0
  %1611 = vmatprep.subr.mxu0 0.0
  %1612 = vmatpush1.msra.mxu0 0.0
  %1613 = vmatprep.subr.mxu0 0.0
  %1614 = vmatpush1.msra.mxu0 0.0
  %1615 = vmatprep.subr.mxu0 0.0
  %1616 = vmatpush1.msra.mxu0 0.0
  %1617 = vmatprep.subr.mxu0 0.0
  %1618 = vmatpush1.msra.mxu0 0.0
  %1619 = vmatprep.subr.mxu0 0.0
  %1620 = vmatpush1.msra.mxu0 0.0
  %1621 = vmatprep.subr.mxu0 0.0
  %1622 = vmatpush1.msra.mxu0 0.0
  %1623 = vmatprep.subr.mxu0 0.0
  %1624 = vmatpush1.msra.mxu0 0.0
  %1625 = vmatprep.subr.mxu0 0.0
  %1626 = vmatpush1.msra.mxu0 0.0
  %1627 = vmatprep.subr.mxu0 0.0
  %1628 = vmatpush1.msra.mxu0 0.0
  %1629 = vmatprep.subr.mxu0 0.0
  %1630 = vmatpush1.msra.mxu0 0.0
  %1631 = vmatprep.subr.mxu0 0.0
  %1632 = vmatpush1.msra.mxu0 0.0
  %1633 = vmatprep.subr.mxu0 0.0
  %1634 = vmatpush1.msra.mxu0 0.0
  %1635 = vmatprep.subr.mxu0 0.0
  %1636 = vmatpush1.msra.mxu0 0.0
  %1637 = vmatprep.subr.mxu0 0.0
  %1638 = vmatpush1.msra.mxu0 0.0
  %1639 = vmatprep.subr.mxu0 0.0
  %1640 = vmatpush1.msra.mxu0 0.0
  %1641 = vmatprep.mubr.f32.mxu0 0.0
  %1642 = vmatmul.mubr.f32.gmra.mrb[0].mxu0 %v1575
  %v1643 = vpop.f32.mrb[0].mxu0
  %v1644 = vadd.f32 0.0, %v1643
  %v1645 = vpop.f32.mrb[0].mxu0
  %1646 = vdwg.mxu0
  %v1647 = vrcp.pop %v1573
  %v1648 = vmul.f32 %v1644, %v1647
  %1651 = vrot.lane.b32.xlu0 %v764, 8
  %v1652 = vpop.permute.xlu0 %1651
  %1653 = vrot.lane.b32.xlu0 %v924, 8
  %v1654 = vpop.permute.xlu0 %1653
  %1659 = vrot.lane.b32.xlu0 %v1126, 16
  %v1660 = vpop.permute.xlu0 %1659
  %1661 = vrot.lane.b32.xlu0 %v1294, 16
  %v1662 = vpop.permute.xlu0 %1661
  %1667 = vrot.lane.b32.xlu0 %v1488, 24
  %v1668 = vpop.permute.xlu0 %1667
  %1669 = vrot.lane.b32.xlu0 %v1648, 24
  %v1670 = vpop.permute.xlu0 %1669
  %v1673 = vsel %vm241, %v404, %v1652
  %v1674 = vsel %vm241, %v570, %v1654
  %vm1675 = vcmask 130048
  %v1676 = vsel %vm1675, %v1673, %v1660
  %v1677 = vsel %vm1675, %v1674, %v1662
  %vm1678 = vcmask 195584
  %v1679 = vsel %vm1678, %v1676, %v1668
  %v1680 = vsel %vm1678, %v1677, %v1670
  %v1681 = vld [vmem:[%s3] sm:$0xff]
  %v1682 = vld [vmem:[%s3 + $0x8] sm:$0xff]
  %v1683 = vld [vmem:[%s3 + $0x10] sm:$0xff]
  %v1684 = vld [vmem:[%s3 + $0x18] sm:$0xff]
  %v1686 = vsel %vm27, %v1679, 0
  %v1689 = vsel %vm27, %v1680, 0
  %1691 = vmatprep.subr.mxu0 0.0
  %1692 = vmatpush1.msra.mxu0 %v1681
  %1693 = vmatprep.subr.mxu0 0.0
  %1694 = vmatpush1.msra.mxu0 %v1682
  %1695 = vmatprep.subr.mxu0 0.0
  %1696 = vmatpush1.msra.mxu0 %v1683
  %1697 = vmatprep.subr.mxu0 0.0
  %1698 = vmatpush1.msra.mxu0 %v1684
  %1699 = vmatprep.subr.mxu0 0.0
  %1700 = vmatpush1.msra.mxu0 0.0
  %1701 = vmatprep.subr.mxu0 0.0
  %1702 = vmatpush1.msra.mxu0 0.0
  %1703 = vmatprep.subr.mxu0 0.0
  %1704 = vmatpush1.msra.mxu0 0.0
  %1705 = vmatprep.subr.mxu0 0.0
  %1706 = vmatpush1.msra.mxu0 0.0
  %1707 = vmatprep.subr.mxu0 0.0
  %1708 = vmatpush1.msra.mxu0 0.0
  %1709 = vmatprep.subr.mxu0 0.0
  %1710 = vmatpush1.msra.mxu0 0.0
  %1711 = vmatprep.subr.mxu0 0.0
  %1712 = vmatpush1.msra.mxu0 0.0
  %1713 = vmatprep.subr.mxu0 0.0
  %1714 = vmatpush1.msra.mxu0 0.0
  %1715 = vmatprep.subr.mxu0 0.0
  %1716 = vmatpush1.msra.mxu0 0.0
  %1717 = vmatprep.subr.mxu0 0.0
  %1718 = vmatpush1.msra.mxu0 0.0
  %1719 = vmatprep.subr.mxu0 0.0
  %1720 = vmatpush1.msra.mxu0 0.0
  %1721 = vmatprep.subr.mxu0 0.0
  %1722 = vmatpush1.msra.mxu0 0.0
  %1723 = vmatprep.subr.mxu0 0.0
  %1724 = vmatpush1.msra.mxu0 0.0
  %1725 = vmatprep.subr.mxu0 0.0
  %1726 = vmatpush1.msra.mxu0 0.0
  %1727 = vmatprep.subr.mxu0 0.0
  %1728 = vmatpush1.msra.mxu0 0.0
  %1729 = vmatprep.subr.mxu0 0.0
  %1730 = vmatpush1.msra.mxu0 0.0
  %1731 = vmatprep.subr.mxu0 0.0
  %1732 = vmatpush1.msra.mxu0 0.0
  %1733 = vmatprep.subr.mxu0 0.0
  %1734 = vmatpush1.msra.mxu0 0.0
  %1735 = vmatprep.subr.mxu0 0.0
  %1736 = vmatpush1.msra.mxu0 0.0
  %1737 = vmatprep.subr.mxu0 0.0
  %1738 = vmatpush1.msra.mxu0 0.0
  %1739 = vmatprep.subr.mxu0 0.0
  %1740 = vmatpush1.msra.mxu0 0.0
  %1741 = vmatprep.subr.mxu0 0.0
  %1742 = vmatpush1.msra.mxu0 0.0
  %1743 = vmatprep.subr.mxu0 0.0
  %1744 = vmatpush1.msra.mxu0 0.0
  %1745 = vmatprep.subr.mxu0 0.0
  %1746 = vmatpush1.msra.mxu0 0.0
  %1747 = vmatprep.subr.mxu0 0.0
  %1748 = vmatpush1.msra.mxu0 0.0
  %1749 = vmatprep.subr.mxu0 0.0
  %1750 = vmatpush1.msra.mxu0 0.0
  %1751 = vmatprep.subr.mxu0 0.0
  %1752 = vmatpush1.msra.mxu0 0.0
  %1753 = vmatprep.subr.mxu0 0.0
  %1754 = vmatpush1.msra.mxu0 0.0
  %1755 = vmatprep.mubr.f32.mxu0 0.0
  %1756 = vmatmul.mubr.f32.gmra.mrb[0].mxu0 %v1686
  %v1757 = vpop.f32.mrb[0].mxu0
  %v1758 = vadd.f32 0.0, %v1757
  %v1759 = vpop.f32.mrb[0].mxu0
  %1760 = vmatprep.mubr.f32.mxu0 0.0
  %1761 = vmatmul.mubr.f32.gmra.mrb[0].mxu0 %v1689
  %v1762 = vpop.f32.mrb[0].mxu0
  %v1763 = vadd.f32 0.0, %v1762
  %v1764 = vpop.f32.mrb[0].mxu0
  %1765 = vdwg.mxu0
  %v1766 = vadd.f32 %v23, %v1758
  %v1767 = vadd.f32 %v24, %v1763
  %1768 = vst.msk [vmem:[%s6] sm:$0xff] %vm27, %v1766
  %1769 = vst.msk [vmem:[%s6 + $0x8] sm:$0xff] %vm27, %v1767
  // Predicated region
  $region26: #{mixtral_decoder_layer.2} parent=0 // pred_check
    _
  $region27: #{mixtral_decoder_layer.2} parent=0 // pred_check_branch
    %1771 = sbr.rel (0) target = $region29
  $region28: #{mixtral_decoder_layer.2} parent=0 // pred_region
    _
  $region29: #{mixtral_decoder_layer.2} parent=0 // pred_fallthru
    _
  // Predicated region
  $region30: #{mixtral_decoder_layer.2} parent=0 // pred_check
    _
  $region31: #{mixtral_decoder_layer.2} parent=0 // pred_check_branch
    %1773 = sbr.rel (0) target = $region33
  $region32: #{mixtral_decoder_layer.2} parent=0 // pred_region
    _
  $region33: #{mixtral_decoder_layer.2} parent=0 // pred_fallthru
    _

// kernel: mixtral_decoder_layer.3
$region0: #{mixtral_decoder_layer.3}
  #allocation0 [shape = 'u32[]', space=smem, size = 0x4, offset = 0x4, fixed_abs, tag = 'smem constant byte address 0x4 - core index']
  #allocation1 [shape = 'u32[144,128]{1,0:T(1,128)}', space=vmem, size = 0x12000, scoped, tag = 'internal scratch']
  %s0 = inlined_call_operand.vmem [shape: f32[16,32], index: 0, kind: input, shape index: {}]
  %s1 = inlined_call_operand.vmem [shape: f32[1,32], index: 1, kind: input, shape index: {}]
  %s2 = inlined_call_operand.vmem [shape: f32[32,4], index: 2, kind: input, shape index: {}]
  %s3 = inlined_call_operand.vmem [shape: f32[4,32,64], index: 3, kind: input, shape index: {}]
  %s4 = inlined_call_operand.vmem [shape: f32[4,32,64], index: 4, kind: input, shape index: {}]
  %s5 = inlined_call_operand.vmem [shape: f32[4,64,32], index: 5, kind: input, shape index: {}]
  %s6 = inlined_call_operand.hbm [shape: f32[16,32], index: 6, kind: output, shape index: {0}]
  %s7 = inlined_call_operand.vmem [shape: f32[16,4], index: 7, kind: output, shape index: {1}]
  %8 = xla_tuple %s6, %s7
  %s9 = sld [smem:[#allocation0]]
  $region42: #{mixtral_decoder_layer.3} parent=0
    _
  %s11 = ssub.s32 1, %s9
  %s12 = scalar_select 0, %s11, %s9
  $region1: #{mixtral_decoder_layer.3} parent=0
    #allocation2 [shape = 'u8[8192]{0}', space=vmem, size = 0x2000, scoped, tag = 'output window, operand 0, single buffered']
    #allocation3 [shape = 's32[1]{0}', space=sflag, size = 0x4, scoped, tag = 'scoped memory for mixtral_decoder_layer.3']
    %13 = vsyncpa [#allocation3], 0
    // Predicated region
    $region2: #{mixtral_decoder_layer.3} parent=1 // pred_check
      _
    $region3: #{mixtral_decoder_layer.3} parent=1 // pred_check_branch
      %15 = sbr.rel (0) target = $region5
    $region4: #{mixtral_decoder_layer.3} parent=1 // pred_region
      _
    $region5: #{mixtral_decoder_layer.3} parent=1 // pred_fallthru
      _
    // Predicated region
    $region6: #{mixtral_decoder_layer.3} parent=1 // pred_check
      _
    $region7: #{mixtral_decoder_layer.3} parent=1 // pred_check_branch
      %17 = sbr.rel (0) target = $region9
    $region8: #{mixtral_decoder_layer.3} parent=1 // pred_region
      _
    $region9: #{mixtral_decoder_layer.3} parent=1 // pred_fallthru
      _
    // Predicated region
    $region10: #{mixtral_decoder_layer.3} parent=1 // pred_check
      _
    $region11: #{mixtral_decoder_layer.3} parent=1 // pred_check_branch
      %19 = sbr.rel (0) target = $region13
    $region12: #{mixtral_decoder_layer.3} parent=1 // pred_region
      _
    $region13: #{mixtral_decoder_layer.3} parent=1 // pred_fallthru
      _
    // Predicated region
    $region14: #{mixtral_decoder_layer.3} parent=1 // pred_check
      _
    $region15: #{mixtral_decoder_layer.3} parent=1 // pred_check_branch
      %21 = sbr.rel (0) target = $region17
    $region16: #{mixtral_decoder_layer.3} parent=1 // pred_region
      _
    $region17: #{mixtral_decoder_layer.3} parent=1 // pred_fallthru
      _
    // Predicated region
    $region18: #{mixtral_decoder_layer.3} parent=1 // pred_check
      _
    $region19: #{mixtral_decoder_layer.3} parent=1 // pred_check_branch
      %23 = sbr.rel (0) target = $region21
    $region20: #{mixtral_decoder_layer.3} parent=1 // pred_region
      _
    $region21: #{mixtral_decoder_layer.3} parent=1 // pred_fallthru
      _
    // Predicated region
    $region22: #{mixtral_decoder_layer.3} parent=1 // pred_check
      _
    $region23: #{mixtral_decoder_layer.3} parent=1 // pred_check_branch
      %25 = sbr.rel (0) target = $region25
    $region24: #{mixtral_decoder_layer.3} parent=1 // pred_region
      _
    $region25: #{mixtral_decoder_layer.3} parent=1 // pred_fallthru
      _
    %v26 = vld [vmem:[%s0] sm:$0xff]
    %v27 = vld [vmem:[%s0 + $0x8] sm:$0xff]
    %v28 = vmul.f32 %v26, %v26
    %v29 = vmul.f32 %v27, %v27
    %vm30 = vcmask 261120
    %v31 = vsel %vm30, %v28, 0.0
    %32 = vadd.xlane.f32.xlu0 %v31
    %v33 = vpop.xlane.xlu0 %32
    %v34 = vsel %vm30, %v29, 0.0
    %35 = vadd.xlane.f32.xlu0 %v34
    %v36 = vpop.xlane.xlu0 %35
    %v37 = vrcp.pop 32.0
    %v38 = vmul.f32 %v33, %v37
    %v39 = vmul.f32 %v36, %v37
    %v40 = vld [vmem:[%s1] sm:$0x1]
    %v41 = vadd.f32 %v38, 1e-06
    %v42 = vadd.f32 %v39, 1e-06
    %v43 = vrsqrt.pop %v41
    %v44 = vrsqrt.pop %v42
    %v45 = vmul.f32 %v26, %v43
    %v46 = vmul.f32 %v27, %v44
    %v48 = vlaneseq
    %v49 = vshrl.u32 %v48, 7
    %v50 = vsub.s32 0, %v49
    %v51 = vrot.slane %v40, %v50
    %v53 = vmul.f32 %v51, %v45
    %v54 = vmul.f32 %v51, %v46
    %v55 = vld [vmem:[%s2] sm:$0xff]
    %v56 = vld [vmem:[%s2 + $0x8] sm:$0xff]
    %v57 = vld [vmem:[%s2 + $0x10] sm:$0xff]
    %v58 = vld [vmem:[%s2 + $0x18] sm:$0xff]
    %v60 = vsel %vm30, %v53, 0
    %v63 = vsel %vm30, %v54, 0
    %65 = vmatprep.subr.mxu0 0.0
    %66 = vmatpush1.msra.mxu0 %v55
    %67 = vmatprep.subr.mxu0 0.0
    %68 = vmatpush1.msra.mxu0 %v56
    %69 = vmatprep.subr.mxu0 0.0
    %70 = vmatpush1.msra.mxu0 %v57
    %71 = vmatprep.subr.mxu0 0.0
    %72 = vmatpush1.msra.mxu0 %v58
    %73 = vmatprep.subr.mxu0 0.0
    %74 = vmatpush1.msra.mxu0 0.0
    %75 = vmatprep.subr.mxu0 0.0
    %76 = vmatpush1.msra.mxu0 0.0
    %77 = vmatprep.subr.mxu0 0.0
    %78 = vmatpush1.msra.mxu0 0.0
    %79 = vmatprep.subr.mxu0 0.0
    %80 = vmatpush1.msra.mxu0 0.0
    %81 = vmatprep.subr.mxu0 0.0
    %82 = vmatpush1.msra.mxu0 0.0
    %83 = vmatprep.subr.mxu0 0.0
    %84 = vmatpush1.msra.mxu0 0.0
    %85 = vmatprep.subr.mxu0 0.0
    %86 = vmatpush1.msra.mxu0 0.0
    %87 = vmatprep.subr.mxu0 0.0
    %88 = vmatpush1.msra.mxu0 0.0
    %89 = vmatprep.subr.mxu0 0.0
    %90 = vmatpush1.msra.mxu0 0.0
    %91 = vmatprep.subr.mxu0 0.0
    %92 = vmatpush1.msra.mxu0 0.0
    %93 = vmatprep.subr.mxu0 0.0
    %94 = vmatpush1.msra.mxu0 0.0
    %95 = vmatprep.subr.mxu0 0.0
    %96 = vmatpush1.msra.mxu0 0.0
    %97 = vmatprep.subr.mxu0 0.0
    %98 = vmatpush1.msra.mxu0 0.0
    %99 = vmatprep.subr.mxu0 0.0
    %100 = vmatpush1.msra.mxu0 0.0
    %101 = vmatprep.subr.mxu0 0.0
    %102 = vmatpush1.msra.mxu0 0.0
    %103 = vmatprep.subr.mxu0 0.0
    %104 = vmatpush1.msra.mxu0 0.0
    %105 = vmatprep.subr.mxu0 0.0
    %106 = vmatpush1.msra.mxu0 0.0
    %107 = vmatprep.subr.mxu0 0.0
    %108 = vmatpush1.msra.mxu0 0.0
    %109 = vmatprep.subr.mxu0 0.0
    %110 = vmatpush1.msra.mxu0 0.0
    %111 = vmatprep.subr.mxu0 0.0
    %112 = vmatpush1.msra.mxu0 0.0
    %113 = vmatprep.subr.mxu0 0.0
    %114 = vmatpush1.msra.mxu0 0.0
    %115 = vmatprep.subr.mxu0 0.0
    %116 = vmatpush1.msra.mxu0 0.0
    %117 = vmatprep.subr.mxu0 0.0
    %118 = vmatpush1.msra.mxu0 0.0
    %119 = vmatprep.subr.mxu0 0.0
    %120 = vmatpush1.msra.mxu0 0.0
    %121 = vmatprep.subr.mxu0 0.0
    %122 = vmatpush1.msra.mxu0 0.0
    %123 = vmatprep.subr.mxu0 0.0
    %124 = vmatpush1.msra.mxu0 0.0
    %125 = vmatprep.subr.mxu0 0.0
    %126 = vmatpush1.msra.mxu0 0.0
    %127 = vmatprep.subr.mxu0 0.0
    %128 = vmatpush1.msra.mxu0 0.0
    %129 = vmatprep.mubr.f32.mxu0 0.0
    %130 = vmatmul.mubr.f32.gmra.mrb[0].mxu0 %v60
    %v131 = vpop.f32.mrb[0].mxu0
    %v132 = vadd.f32 0.0, %v131
    %v133 = vpop.f32.mrb[0].mxu0
    %134 = vmatprep.mubr.f32.mxu0 0.0
    %135 = vmatmul.mubr.f32.gmra.mrb[0].mxu0 %v63
    %v136 = vpop.f32.mrb[0].mxu0
    %v137 = vadd.f32 0.0, %v136
    %v138 = vpop.f32.mrb[0].mxu0
    %139 = vdwg.mxu0
    %vm140 = vcmask 31744
    %141 = vst.msk [vmem:[%s7] sm:$0xff] %vm140, %v132
    %142 = vst.msk [vmem:[%s7 + $0x8] sm:$0xff] %vm140, %v137
    %v143 = vsel %vm140, %v132, -inf
    %144 = vmax.xlane.f32.xlu0 %v143
    %v145 = vpop.xlane.xlu0 %144
    %v146 = vsel %vm140, %v137, -inf
    %147 = vmax.xlane.f32.xlu0 %v146
    %v148 = vpop.xlane.xlu0 %147
    %v149 = vsub.f32 %v132, %v145
    %v150 = vsub.f32 %v137, %v148
    %v151 = vmul.f32 %v149, 1.442695
    %v152 = vpow.pop %v151
    %v153 = vmul.f32 %v150, 1.442695
    %v154 = vpow.pop %v153
    %v155 = vsel %vm140, %v152, 0.0
    %156 = vadd.xlane.f32.xlu0 %v155
    %v157 = vpop.xlane.xlu0 %156
    %v158 = vsel %vm140, %v154, 0.0
    %159 = vadd.xlane.f32.xlu0 %v158
    %v160 = vpop.xlane.xlu0 %159
    %v161 = vrcp.pop %v157
    %v162 = vmul.f32 %v152, %v161
    %v163 = vrcp.pop %v160
    %v164 = vmul.f32 %v154, %v163
    %167 = vrot.lane.b32.xlu0 %v162, 1
    %v168 = vpop.permute.xlu0 %167
    %169 = vrot.lane.b32.xlu0 %v164, 1
    %v170 = vpop.permute.xlu0 %169
    %vm173 = vcmp.gt.f32.partialorder %v162, %v168
    %vm174 = vcmp.gt.f32.partialorder %v164, %v170
    %v175 = vsel %vm173, 1, 0
    %v176 = vsel %vm174, 1, 0
    %v177 = vcvt.s32.f32 %v175
    %v178 = vcvt.s32.f32 %v176
    %v179 = vadd.f32 %v177, 0.0
    %v180 = vadd.f32 %v178, 0.0
    %181 = vrot.lane.b32.xlu0 %v162, 2
    %v182 = vpop.permute.xlu0 %181
    %183 = vrot.lane.b32.xlu0 %v164, 2
    %v184 = vpop.permute.xlu0 %183
    %vm187 = vcmp.gt.f32.partialorder %v162, %v182
    %vm188 = vcmp.gt.f32.partialorder %v164, %v184
    %v189 = vsel %vm187, 1, 0
    %v190 = vsel %vm188, 1, 0
    %v191 = vcvt.s32.f32 %v189
    %v192 = vcvt.s32.f32 %v190
    %195 = vrot.lane.b32.xlu0 %v191, 127
    %v196 = vpop.permute.xlu0 %195
    %197 = vrot.lane.b32.xlu0 %v192, 127
    %v198 = vpop.permute.xlu0 %197
    %v201 = vadd.f32 %v179, %v196
    %v202 = vadd.f32 %v180, %v198
    %203 = vrot.lane.b32.xlu0 %v162, 3
    %v204 = vpop.permute.xlu0 %203
    %205 = vrot.lane.b32.xlu0 %v164, 3
    %v206 = vpop.permute.xlu0 %205
    %vm209 = vcmp.gt.f32.partialorder %v162, %v204
    %vm210 = vcmp.gt.f32.partialorder %v164, %v206
    %v211 = vsel %vm209, 1, 0
    %v212 = vsel %vm210, 1, 0
    %v213 = vcvt.s32.f32 %v211
    %v214 = vcvt.s32.f32 %v212
    %217 = vrot.lane.b32.xlu0 %v213, 126
    %v218 = vpop.permute.xlu0 %217
    %219 = vrot.lane.b32.xlu0 %v214, 126
    %v220 = vpop.permute.xlu0 %219
    %v223 = vadd.f32 %v201, %v218
    %v224 = vadd.f32 %v202, %v220
    %vm225 = vcmp.lt.f32.partialorder %v223, 2.0
    %vm226 = vcmp.lt.f32.partialorder %v224, 2.0
    %v227 = vsel %vm225, 1, 0
    %v228 = vsel %vm226, 1, 0
    %v229 = vcvt.s32.f32 %v227
    %v230 = vcvt.s32.f32 %v228
    %231 = vrot.lane.b32.xlu0 %v162, 127
    %v232 = vpop.permute.xlu0 %231
    %233 = vrot.lane.b32.xlu0 %v164, 127
    %v234 = vpop.permute.xlu0 %233
    %vm237 = vcmp.ge.f32.partialorder %v162, %v232
    %vm238 = vcmp.ge.f32.partialorder %v164, %v234
    %v239 = vsel %vm237, 1, 0
    %v240 = vsel %vm238, 1, 0
    %v241 = vcvt.s32.f32 %v239
    %v242 = vcvt.s32.f32 %v240
    %v243 = vadd.f32 %v241, 0.0
    %v244 = vadd.f32 %v242, 0.0
    %247 = vrot.lane.b32.xlu0 %v177, 126
    %v248 = vpop.permute.xlu0 %247
    %249 = vrot.lane.b32.xlu0 %v178, 126
    %v250 = vpop.permute.xlu0 %249
    %v253 = vadd.f32 %v243, %v248
    %v254 = vadd.f32 %v244, %v250
    %255 = vrot.lane.b32.xlu0 %v191, 125
    %v256 = vpop.permute.xlu0 %255
    %257 = vrot.lane.b32.xlu0 %v192, 125
    %v258 = vpop.permute.xlu0 %257
    %v261 = vadd.f32 %v253, %v256
    %v262 = vadd.f32 %v254, %v258
    %vm263 = vcmp.lt.f32.partialorder %v261, 2.0
    %vm264 = vcmp.lt.f32.partialorder %v262, 2.0
    %v265 = vsel %vm263, 1, 0
    %v266 = vsel %vm264, 1, 0
    %v267 = vcvt.s32.f32 %v265
    %v268 = vcvt.s32.f32 %v266
    %269 = vrot.lane.b32.xlu0 %v162, 126
    %v270 = vpop.permute.xlu0 %269
    %271 = vrot.lane.b32.xlu0 %v164, 126
    %v272 = vpop.permute.xlu0 %271
    %vm275 = vcmp.ge.f32.partialorder %v162, %v270
    %vm276 = vcmp.ge.f32.partialorder %v164, %v272
    %v277 = vsel %vm275, 1, 0
    %v278 = vsel %vm276, 1, 0
    %v279 = vcvt.s32.f32 %v277
    %v280 = vcvt.s32.f32 %v278
    %v281 = vadd.f32 %v279, 0.0
    %v282 = vadd.f32 %v280, 0.0
    %285 = vrot.lane.b32.xlu0 %v241, 127
    %v286 = vpop.permute.xlu0 %285
    %287 = vrot.lane.b32.xlu0 %v242, 127
    %v288 = vpop.permute.xlu0 %287
    %v291 = vadd.f32 %v281, %v286
    %v292 = vadd.f32 %v282, %v288
    %293 = vrot.lane.b32.xlu0 %v177, 125
    %v294 = vpop.permute.xlu0 %293
    %295 = vrot.lane.b32.xlu0 %v178, 125
    %v296 = vpop.permute.xlu0 %295
    %v299 = vadd.f32 %v291, %v294
    %v300 = vadd.f32 %v292, %v296
    %vm301 = vcmp.lt.f32.partialorder %v299, 2.0
    %vm302 = vcmp.lt.f32.partialorder %v300, 2.0
    %v303 = vsel %vm301, 1, 0
    %v304 = vsel %vm302, 1, 0
    %v305 = vcvt.s32.f32 %v303
    %v306 = vcvt.s32.f32 %v304
    %307 = vrot.lane.b32.xlu0 %v162, 125
    %v308 = vpop.permute.xlu0 %307
    %309 = vrot.lane.b32.xlu0 %v164, 125
    %v310 = vpop.permute.xlu0 %309
    %vm313 = vcmp.ge.f32.partialorder %v162, %v308
    %vm314 = vcmp.ge.f32.partialorder %v164, %v310
    %v315 = vsel %vm313, 1, 0
    %v316 = vsel %vm314, 1, 0
    %v317 = vcvt.s32.f32 %v315
    %v318 = vcvt.s32.f32 %v316
    %v319 = vadd.f32 %v317, 0.0
    %v320 = vadd.f32 %v318, 0.0
    %323 = vrot.lane.b32.xlu0 %v279, 127
    %v324 = vpop.permute.xlu0 %323
    %325 = vrot.lane.b32.xlu0 %v280, 127
    %v326 = vpop.permute.xlu0 %325
    %v329 = vadd.f32 %v319, %v324
    %v330 = vadd.f32 %v320, %v326
    %331 = vrot.lane.b32.xlu0 %v241, 126
    %v332 = vpop.permute.xlu0 %331
    %333 = vrot.lane.b32.xlu0 %v242, 126
    %v334 = vpop.permute.xlu0 %333
    %v337 = vadd.f32 %v329, %v332
    %v338 = vadd.f32 %v330, %v334
    %vm339 = vcmp.lt.f32.partialorder %v337, 2.0
    %vm340 = vcmp.lt.f32.partialorder %v338, 2.0
    %v341 = vsel %vm339, 1, 0
    %v342 = vsel %vm340, 1, 0
    %v343 = vcvt.s32.f32 %v341
    %v344 = vcvt.s32.f32 %v342
    %347 = vrot.lane.b32.xlu0 %v229, 127
    %v348 = vpop.permute.xlu0 %347
    %349 = vrot.lane.b32.xlu0 %v230, 127
    %v350 = vpop.permute.xlu0 %349
    %355 = vrot.lane.b32.xlu0 %v267, 1
    %v356 = vpop.permute.xlu0 %355
    %357 = vrot.lane.b32.xlu0 %v268, 1
    %v358 = vpop.permute.xlu0 %357
    %363 = vrot.lane.b32.xlu0 %v305, 2
    %v364 = vpop.permute.xlu0 %363
    %365 = vrot.lane.b32.xlu0 %v306, 2
    %v366 = vpop.permute.xlu0 %365
    %371 = vrot.lane.b32.xlu0 %v343, 3
    %v372 = vpop.permute.xlu0 %371
    %373 = vrot.lane.b32.xlu0 %v344, 3
    %v374 = vpop.permute.xlu0 %373
    %vm377 = vcmask 7168
    %v378 = vsel %vm377, %v348, %v356
    %v379 = vsel %vm377, %v350, %v358
    %vm380 = vcmask 15360
    %v381 = vsel %vm380, %v378, %v364
    %v382 = vsel %vm380, %v379, %v366
    %vm383 = vcmask 23552
    %v384 = vsel %vm383, %v381, %v372
    %v385 = vsel %vm383, %v382, %v374
    %v386 = vmul.f32 %v162, %v384
    %v387 = vmul.f32 %v164, %v385
    %v388 = vsel %vm140, %v386, 0.0
    %389 = vadd.xlane.f32.xlu0 %v388
    %v390 = vpop.xlane.xlu0 %389
    %v391 = vsel %vm140, %v387, 0.0
    %392 = vadd.xlane.f32.xlu0 %v391
    %v393 = vpop.xlane.xlu0 %392
    %v394 = vrcp.pop %v390
    %v395 = vmul.f32 %v386, %v394
    %v396 = vrcp.pop %v393
    %v397 = vmul.f32 %v387, %v396
    %v398 = vld [vmem:[%s3] sm:$0xff]
    %v399 = vld [vmem:[%s3 + $0x8] sm:$0xff]
    %v400 = vld [vmem:[%s3 + $0x10] sm:$0xff]
    %v401 = vld [vmem:[%s3 + $0x18] sm:$0xff]
    %402 = vmatprep.subr.mxu0 0.0
    %403 = vmatpush1.msra.mxu0 %v398
    %404 = vmatprep.subr.mxu0 0.0
    %405 = vmatpush1.msra.mxu0 %v399
    %406 = vmatprep.subr.mxu0 0.0
    %407 = vmatpush1.msra.mxu0 %v400
    %408 = vmatprep.subr.mxu0 0.0
    %409 = vmatpush1.msra.mxu0 %v401
    %410 = vmatprep.subr.mxu0 0.0
    %411 = vmatpush1.msra.mxu0 0.0
    %412 = vmatprep.subr.mxu0 0.0
    %413 = vmatpush1.msra.mxu0 0.0
    %414 = vmatprep.subr.mxu0 0.0
    %415 = vmatpush1.msra.mxu0 0.0
    %416 = vmatprep.subr.mxu0 0.0
    %417 = vmatpush1.msra.mxu0 0.0
    %418 = vmatprep.subr.mxu0 0.0
    %419 = vmatpush1.msra.mxu0 0.0
    %420 = vmatprep.subr.mxu0 0.0
    %421 = vmatpush1.msra.mxu0 0.0
    %422 = vmatprep.subr.mxu0 0.0
    %423 = vmatpush1.msra.mxu0 0.0
    %424 = vmatprep.subr.mxu0 0.0
    %425 = vmatpush1.msra.mxu0 0.0
    %426 = vmatprep.subr.mxu0 0.0
    %427 = vmatpush1.msra.mxu0 0.0
    %428 = vmatprep.subr.mxu0 0.0
    %429 = vmatpush1.msra.mxu0 0.0
    %430 = vmatprep.subr.mxu0 0.0
    %431 = vmatpush1.msra.mxu0 0.0
    %432 = vmatprep.subr.mxu0 0.0
    %433 = vmatpush1.msra.mxu0 0.0
    %434 = vmatprep.subr.mxu0 0.0
    %435 = vmatpush1.msra.mxu0 0.0
    %436 = vmatprep.subr.mxu0 0.0
    %437 = vmatpush1.msra.mxu0 0.0
    %438 = vmatprep.subr.mxu0 0.0
    %439 = vmatpush1.msra.mxu0 0.0
    %440 = vmatprep.subr.mxu0 0.0
    %441 = vmatpush1.msra.mxu0 0.0
    %442 = vmatprep.subr.mxu0 0.0
    %443 = vmatpush1.msra.mxu0 0.0
    %444 = vmatprep.subr.mxu0 0.0
    %445 = vmatpush1.msra.mxu0 0.0
    %446 = vmatprep.subr.mxu0 0.0
    %447 = vmatpush1.msra.mxu0 0.0
    %448 = vmatprep.subr.mxu0 0.0
    %449 = vmatpush1.msra.mxu0 0.0
    %450 = vmatprep.subr.mxu0 0.0
    %451 = vmatpush1.msra.mxu0 0.0
    %452 = vmatprep.subr.mxu0 0.0
    %453 = vmatpush1.msra.mxu0 0.0
    %454 = vmatprep.subr.mxu0 0.0
    %455 = vmatpush1.msra.mxu0 0.0
    %456 = vmatprep.subr.mxu0 0.0
    %457 = vmatpush1.msra.mxu0 0.0
    %458 = vmatprep.subr.mxu0 0.0
    %459 = vmatpush1.msra.mxu0 0.0
    %460 = vmatprep.subr.mxu0 0.0
    %461 = vmatpush1.msra.mxu0 0.0
    %462 = vmatprep.subr.mxu0 0.0
    %463 = vmatpush1.msra.mxu0 0.0
    %464 = vmatprep.subr.mxu0 0.0
    %465 = vmatpush1.msra.mxu0 0.0
    %466 = vmatprep.mubr.f32.mxu0 0.0
    %467 = vmatmul.mubr.f32.gmra.mrb[0].mxu0 %v60
    %v468 = vpop.f32.mrb[0].mxu0
    %v469 = vadd.f32 0.0, %v468
    %v470 = vpop.f32.mrb[0].mxu0
    %471 = vmatprep.mubr.f32.mxu0 0.0
    %472 = vmatmul.mubr.f32.gmra.mrb[0].mxu0 %v63
    %v473 = vpop.f32.mrb[0].mxu0
    %v474 = vadd.f32 0.0, %v473
    %v475 = vpop.f32.mrb[0].mxu0
    %476 = vdwg.mxu0
    %v477 = vld [vmem:[%s4] sm:$0xff]
    %v478 = vld [vmem:[%s4 + $0x8] sm:$0xff]
    %v479 = vld [vmem:[%s4 + $0x10] sm:$0xff]
    %v480 = vld [vmem:[%s4 + $0x18] sm:$0xff]
    %481 = vmatprep.subr.mxu0 0.0
    %482 = vmatpush1.msra.mxu0 %v477
    %483 = vmatprep.subr.mxu0 0.0
    %484 = vmatpush1.msra.mxu0 %v478
    %485 = vmatprep.subr.mxu0 0.0
    %486 = vmatpush1.msra.mxu0 %v479
    %487 = vmatprep.subr.mxu0 0.0
    %488 = vmatpush1.msra.mxu0 %v480
    %489 = vmatprep.subr.mxu0 0.0
    %490 = vmatpush1.msra.mxu0 0.0
    %491 = vmatprep.subr.mxu0 0.0
    %492 = vmatpush1.msra.mxu0 0.0
    %493 = vmatprep.subr.mxu0 0.0
    %494 = vmatpush1.msra.mxu0 0.0
    %495 = vmatprep.subr.mxu0 0.0
    %496 = vmatpush1.msra.mxu0 0.0
    %497 = vmatprep.subr.mxu0 0.0
    %498 = vmatpush1.msra.mxu0 0.0
    %499 = vmatprep.subr.mxu0 0.0
    %500 = vmatpush1.msra.mxu0 0.0
    %501 = vmatprep.subr.mxu0 0.0
    %502 = vmatpush1.msra.mxu0 0.0
    %503 = vmatprep.subr.mxu0 0.0
    %504 = vmatpush1.msra.mxu0 0.0
    %505 = vmatprep.subr.mxu0 0.0
    %506 = vmatpush1.msra.mxu0 0.0
    %507 = vmatprep.subr.mxu0 0.0
    %508 = vmatpush1.msra.mxu0 0.0
    %509 = vmatprep.subr.mxu0 0.0
    %510 = vmatpush1.msra.mxu0 0.0
    %511 = vmatprep.subr.mxu0 0.0
    %512 = vmatpush1.msra.mxu0 0.0
    %513 = vmatprep.subr.mxu0 0.0
    %514 = vmatpush1.msra.mxu0 0.0
    %515 = vmatprep.subr.mxu0 0.0
    %516 = vmatpush1.msra.mxu0 0.0
    %517 = vmatprep.subr.mxu0 0.0
    %518 = vmatpush1.msra.mxu0 0.0
    %519 = vmatprep.subr.mxu0 0.0
    %520 = vmatpush1.msra.mxu0 0.0
    %521 = vmatprep.subr.mxu0 0.0
    %522 = vmatpush1.msra.mxu0 0.0
    %523 = vmatprep.subr.mxu0 0.0
    %524 = vmatpush1.msra.mxu0 0.0
    %525 = vmatprep.subr.mxu0 0.0
    %526 = vmatpush1.msra.mxu0 0.0
    %527 = vmatprep.subr.mxu0 0.0
    %528 = vmatpush1.msra.mxu0 0.0
    %529 = vmatprep.subr.mxu0 0.0
    %530 = vmatpush1.msra.mxu0 0.0
    %531 = vmatprep.subr.mxu0 0.0
    %532 = vmatpush1.msra.mxu0 0.0
    %533 = vmatprep.subr.mxu0 0.0
    %534 = vmatpush1.msra.mxu0 0.0
    %535 = vmatprep.subr.mxu0 0.0
    %536 = vmatpush1.msra.mxu0 0.0
    %537 = vmatprep.subr.mxu0 0.0
    %538 = vmatpush1.msra.mxu0 0.0
    %539 = vmatprep.subr.mxu0 0.0
    %540 = vmatpush1.msra.mxu0 0.0
    %541 = vmatprep.subr.mxu0 0.0
    %542 = vmatpush1.msra.mxu0 0.0
    %543 = vmatprep.subr.mxu0 0.0
    %544 = vmatpush1.msra.mxu0 0.0
    %545 = vmatprep.mubr.f32.mxu0 0.0
    %546 = vmatmul.mubr.f32.gmra.mrb[0].mxu0 %v60
    %v547 = vpop.f32.mrb[0].mxu0
    %v548 = vadd.f32 0.0, %v547
    %v549 = vpop.f32.mrb[0].mxu0
    %550 = vmatprep.mubr.f32.mxu0 0.0
    %551 = vmatmul.mubr.f32.gmra.mrb[0].mxu0 %v63
    %v552 = vpop.f32.mrb[0].mxu0
    %v553 = vadd.f32 0.0, %v552
    %v554 = vpop.f32.mrb[0].mxu0
    %555 = vdwg.mxu0
    %v556 = vxor.u32 %v469, 2147483648
    %v557 = vxor.u32 %v474, 2147483648
    %v558 = vmul.f32 %v556, 1.442695
    %v559 = vpow.pop %v558
    %v560 = vmul.f32 %v557, 1.442695
    %v561 = vpow.pop %v560
    %v562 = vadd.f32 %v559, 1.0
    %v563 = vadd.f32 %v561, 1.0
    %v564 = vrcp.pop %v562
    %v565 = vmul.f32 1.0, %v564
    %v566 = vrcp.pop %v563
    %v567 = vmul.f32 1.0, %v566
    %v568 = vmul.f32 %v469, %v565
    %v569 = vmul.f32 %v474, %v567
    %v570 = vmul.f32 %v568, %v548
    %v571 = vmul.f32 %v569, %v553
    %v572 = vld [vmem:[%s5] sm:$0xff]
    %v573 = vld [vmem:[%s5 + $0x8] sm:$0xff]
    %v574 = vld [vmem:[%s5 + $0x10] sm:$0xff]
    %v575 = vld [vmem:[%s5 + $0x18] sm:$0xff]
    %v576 = vld [vmem:[%s5 + $0x20] sm:$0xff]
    %v577 = vld [vmem:[%s5 + $0x28] sm:$0xff]
    %v578 = vld [vmem:[%s5 + $0x30] sm:$0xff]
    %v579 = vld [vmem:[%s5 + $0x38] sm:$0xff]
    %vm580 = vcmask 523264
    %v582 = vsel %vm580, %v570, 0
    %v585 = vsel %vm580, %v571, 0
    %587 = vmatprep.subr.mxu0 0.0
    %588 = vmatpush1.msra.mxu0 %v572
    %589 = vmatprep.subr.mxu0 0.0
    %590 = vmatpush1.msra.mxu0 %v573
    %591 = vmatprep.subr.mxu0 0.0
    %592 = vmatpush1.msra.mxu0 %v574
    %593 = vmatprep.subr.mxu0 0.0
    %594 = vmatpush1.msra.mxu0 %v575
    %595 = vmatprep.subr.mxu0 0.0
    %596 = vmatpush1.msra.mxu0 %v576
    %597 = vmatprep.subr.mxu0 0.0
    %598 = vmatpush1.msra.mxu0 %v577
    %599 = vmatprep.subr.mxu0 0.0
    %600 = vmatpush1.msra.mxu0 %v578
    %601 = vmatprep.subr.mxu0 0.0
    %602 = vmatpush1.msra.mxu0 %v579
    %603 = vmatprep.subr.mxu0 0.0
    %604 = vmatpush1.msra.mxu0 0.0
    %605 = vmatprep.subr.mxu0 0.0
    %606 = vmatpush1.msra.mxu0 0.0
    %607 = vmatprep.subr.mxu0 0.0
    %608 = vmatpush1.msra.mxu0 0.0
    %609 = vmatprep.subr.mxu0 0.0
    %610 = vmatpush1.msra.mxu0 0.0
    %611 = vmatprep.subr.mxu0 0.0
    %612 = vmatpush1.msra.mxu0 0.0
    %613 = vmatprep.subr.mxu0 0.0
    %614 = vmatpush1.msra.mxu0 0.0
    %615 = vmatprep.subr.mxu0 0.0
    %616 = vmatpush1.msra.mxu0 0.0
    %617 = vmatprep.subr.mxu0 0.0
    %618 = vmatpush1.msra.mxu0 0.0
    %619 = vmatprep.subr.mxu0 0.0
    %620 = vmatpush1.msra.mxu0 0.0
    %621 = vmatprep.subr.mxu0 0.0
    %622 = vmatpush1.msra.mxu0 0.0
    %623 = vmatprep.subr.mxu0 0.0
    %624 = vmatpush1.msra.mxu0 0.0
    %625 = vmatprep.subr.mxu0 0.0
    %626 = vmatpush1.msra.mxu0 0.0
    %627 = vmatprep.subr.mxu0 0.0
    %628 = vmatpush1.msra.mxu0 0.0
    %629 = vmatprep.subr.mxu0 0.0
    %630 = vmatpush1.msra.mxu0 0.0
    %631 = vmatprep.subr.mxu0 0.0
    %632 = vmatpush1.msra.mxu0 0.0
    %633 = vmatprep.subr.mxu0 0.0
    %634 = vmatpush1.msra.mxu0 0.0
    %635 = vmatprep.subr.mxu0 0.0
    %636 = vmatpush1.msra.mxu0 0.0
    %637 = vmatprep.subr.mxu0 0.0
    %638 = vmatpush1.msra.mxu0 0.0
    %639 = vmatprep.subr.mxu0 0.0
    %640 = vmatpush1.msra.mxu0 0.0
    %641 = vmatprep.subr.mxu0 0.0
    %642 = vmatpush1.msra.mxu0 0.0
    %643 = vmatprep.subr.mxu0 0.0
    %644 = vmatpush1.msra.mxu0 0.0
    %645 = vmatprep.subr.mxu0 0.0
    %646 = vmatpush1.msra.mxu0 0.0
    %647 = vmatprep.subr.mxu0 0.0
    %648 = vmatpush1.msra.mxu0 0.0
    %649 = vmatprep.subr.mxu0 0.0
    %650 = vmatpush1.msra.mxu0 0.0
    %651 = vmatprep.mubr.f32.mxu0 0.0
    %652 = vmatmul.mubr.f32.gmra.mrb[0].mxu0 %v582
    %v653 = vpop.f32.mrb[0].mxu0
    %v654 = vadd.f32 0.0, %v653
    %v655 = vpop.f32.mrb[0].mxu0
    %656 = vmatprep.mubr.f32.mxu0 0.0
    %657 = vmatmul.mubr.f32.gmra.mrb[0].mxu0 %v585
    %v658 = vpop.f32.mrb[0].mxu0
    %v659 = vadd.f32 0.0, %v658
    %v660 = vpop.f32.mrb[0].mxu0
    %661 = vdwg.mxu0
    %663 = vset.pattern.permute.xlu0 0
    %664 = vperm.xlu0 %663, %v395
    %v665 = vpop.permute.xlu0 %664
    %668 = vset.pattern.permute.xlu0 0
    %669 = vperm.xlu0 %668, %v397
    %v670 = vpop.permute.xlu0 %669
    %v672 = vmul.f32 %v665, %v654
    %v673 = vmul.f32 %v670, %v659
    %s674 = scalar_lea.vmem %s3, 32
    %v675 = vld [vmem:[%s674] sm:$0xff]
    %v676 = vld [vmem:[%s674 + $0x8] sm:$0xff]
    %v677 = vld [vmem:[%s674 + $0x10] sm:$0xff]
    %v678 = vld [vmem:[%s674 + $0x18] sm:$0xff]
    %679 = vmatprep.subr.mxu0 0.0
    %680 = vmatpush1.msra.mxu0 %v675
    %681 = vmatprep.subr.mxu0 0.0
    %682 = vmatpush1.msra.mxu0 %v676
    %683 = vmatprep.subr.mxu0 0.0
    %684 = vmatpush1.msra.mxu0 %v677
    %685 = vmatprep.subr.mxu0 0.0
    %686 = vmatpush1.msra.mxu0 %v678
    %687 = vmatprep.subr.mxu0 0.0
    %688 = vmatpush1.msra.mxu0 0.0
    %689 = vmatprep.subr.mxu0 0.0
    %690 = vmatpush1.msra.mxu0 0.0
    %691 = vmatprep.subr.mxu0 0.0
    %692 = vmatpush1.msra.mxu0 0.0
    %693 = vmatprep.subr.mxu0 0.0
    %694 = vmatpush1.msra.mxu0 0.0
    %695 = vmatprep.subr.mxu0 0.0
    %696 = vmatpush1.msra.mxu0 0.0
    %697 = vmatprep.subr.mxu0 0.0
    %698 = vmatpush1.msra.mxu0 0.0
    %699 = vmatprep.subr.mxu0 0.0
    %700 = vmatpush1.msra.mxu0 0.0
    %701 = vmatprep.subr.mxu0 0.0
    %702 = vmatpush1.msra.mxu0 0.0
    %703 = vmatprep.subr.mxu0 0.0
    %704 = vmatpush1.msra.mxu0 0.0
    %705 = vmatprep.subr.mxu0 0.0
    %706 = vmatpush1.msra.mxu0 0.0
    %707 = vmatprep.subr.mxu0 0.0
    %708 = vmatpush1.msra.mxu0 0.0
    %709 = vmatprep.subr.mxu0 0.0
    %710 = vmatpush1.msra.mxu0 0.0
    %711 = vmatprep.subr.mxu0 0.0
    %712 = vmatpush1.msra.mxu0 0.0
    %713 = vmatprep.subr.mxu0 0.0
    %714 = vmatpush1.msra.mxu0 0.0
    %715 = vmatprep.subr.mxu0 0.0
    %716 = vmatpush1.msra.mxu0 0.0
    %717 = vmatprep.subr.mxu0 0.0
    %718 = vmatpush1.msra.mxu0 0.0
    %719 = vmatprep.subr.mxu0 0.0
    %720 = vmatpush1.msra.mxu0 0.0
    %721 = vmatprep.subr.mxu0 0.0
    %722 = vmatpush1.msra.mxu0 0.0
    %723 = vmatprep.subr.mxu0 0.0
    %724 = vmatpush1.msra.mxu0 0.0
    %725 = vmatprep.subr.mxu0 0.0
    %726 = vmatpush1.msra.mxu0 0.0
    %727 = vmatprep.subr.mxu0 0.0
    %728 = vmatpush1.msra.mxu0 0.0
    %729 = vmatprep.subr.mxu0 0.0
    %730 = vmatpush1.msra.mxu0 0.0
    %731 = vmatprep.subr.mxu0 0.0
    %732 = vmatpush1.msra.mxu0 0.0
    %733 = vmatprep.subr.mxu0 0.0
    %734 = vmatpush1.msra.mxu0 0.0
    %735 = vmatprep.subr.mxu0 0.0
    %736 = vmatpush1.msra.mxu0 0.0
    %737 = vmatprep.subr.mxu0 0.0
    %738 = vmatpush1.msra.mxu0 0.0
    %739 = vmatprep.subr.mxu0 0.0
    %740 = vmatpush1.msra.mxu0 0.0
    %741 = vmatprep.subr.mxu0 0.0
    %742 = vmatpush1.msra.mxu0 0.0
    %743 = vmatprep.mubr.f32.mxu0 0.0
    %744 = vmatmul.mubr.f32.gmra.mrb[0].mxu0 %v60
    %v745 = vpop.f32.mrb[0].mxu0
    %v746 = vadd.f32 0.0, %v745
    %v747 = vpop.f32.mrb[0].mxu0
    %748 = vmatprep.mubr.f32.mxu0 0.0
    %749 = vmatmul.mubr.f32.gmra.mrb[0].mxu0 %v63
    %v750 = vpop.f32.mrb[0].mxu0
    %v751 = vadd.f32 0.0, %v750
    %v752 = vpop.f32.mrb[0].mxu0
    %753 = vdwg.mxu0
    %s754 = scalar_lea.vmem %s4, 32
    %v755 = vld [vmem:[%s754] sm:$0xff]
    %v756 = vld [vmem:[%s754 + $0x8] sm:$0xff]
    %v757 = vld [vmem:[%s754 + $0x10] sm:$0xff]
    %v758 = vld [vmem:[%s754 + $0x18] sm:$0xff]
    %759 = vmatprep.subr.mxu0 0.0
    %760 = vmatpush1.msra.mxu0 %v755
    %761 = vmatprep.subr.mxu0 0.0
    %762 = vmatpush1.msra.mxu0 %v756
    %763 = vmatprep.subr.mxu0 0.0
    %764 = vmatpush1.msra.mxu0 %v757
    %765 = vmatprep.subr.mxu0 0.0
    %766 = vmatpush1.msra.mxu0 %v758
    %767 = vmatprep.subr.mxu0 0.0
    %768 = vmatpush1.msra.mxu0 0.0
    %769 = vmatprep.subr.mxu0 0.0
    %770 = vmatpush1.msra.mxu0 0.0
    %771 = vmatprep.subr.mxu0 0.0
    %772 = vmatpush1.msra.mxu0 0.0
    %773 = vmatprep.subr.mxu0 0.0
    %774 = vmatpush1.msra.mxu0 0.0
    %775 = vmatprep.subr.mxu0 0.0
    %776 = vmatpush1.msra.mxu0 0.0
    %777 = vmatprep.subr.mxu0 0.0
    %778 = vmatpush1.msra.mxu0 0.0
    %779 = vmatprep.subr.mxu0 0.0
    %780 = vmatpush1.msra.mxu0 0.0
    %781 = vmatprep.subr.mxu0 0.0
    %782 = vmatpush1.msra.mxu0 0.0
    %783 = vmatprep.subr.mxu0 0.0
    %784 = vmatpush1.msra.mxu0 0.0
    %785 = vmatprep.subr.mxu0 0.0
    %786 = vmatpush1.msra.mxu0 0.0
    %787 = vmatprep.subr.mxu0 0.0
    %788 = vmatpush1.msra.mxu0 0.0
    %789 = vmatprep.subr.mxu0 0.0
    %790 = vmatpush1.msra.mxu0 0.0
    %791 = vmatprep.subr.mxu0 0.0
    %792 = vmatpush1.msra.mxu0 0.0
    %793 = vmatprep.subr.mxu0 0.0
    %794 = vmatpush1.msra.mxu0 0.0
    %795 = vmatprep.subr.mxu0 0.0
    %796 = vmatpush1.msra.mxu0 0.0
    %797 = vmatprep.subr.mxu0 0.0
    %798 = vmatpush1.msra.mxu0 0.0
    %799 = vmatprep.subr.mxu0 0.0
    %800 = vmatpush1.msra.mxu0 0.0
    %801 = vmatprep.subr.mxu0 0.0
    %802 = vmatpush1.msra.mxu0 0.0
    %803 = vmatprep.subr.mxu0 0.0
    %804 = vmatpush1.msra.mxu0 0.0
    %805 = vmatprep.subr.mxu0 0.0
    %806 = vmatpush1.msra.mxu0 0.0
    %807 = vmatprep.subr.mxu0 0.0
    %808 = vmatpush1.msra.mxu0 0.0
    %809 = vmatprep.subr.mxu0 0.0
    %810 = vmatpush1.msra.mxu0 0.0
    %811 = vmatprep.subr.mxu0 0.0
    %812 = vmatpush1.msra.mxu0 0.0
    %813 = vmatprep.subr.mxu0 0.0
    %814 = vmatpush1.msra.mxu0 0.0
    %815 = vmatprep.subr.mxu0 0.0
    %816 = vmatpush1.msra.mxu0 0.0
    %817 = vmatprep.subr.mxu0 0.0
    %818 = vmatpush1.msra.mxu0 0.0
    %819 = vmatprep.subr.mxu0 0.0
    %820 = vmatpush1.msra.mxu0 0.0
    %821 = vmatprep.subr.mxu0 0.0
    %822 = vmatpush1.msra.mxu0 0.0
    %823 = vmatprep.mubr.f32.mxu0 0.0
    %824 = vmatmul.mubr.f32.gmra.mrb[0].mxu0 %v60
    %v825 = vpop.f32.mrb[0].mxu0
    %v826 = vadd.f32 0.0, %v825
    %v827 = vpop.f32.mrb[0].mxu0
    %828 = vmatprep.mubr.f32.mxu0 0.0
    %829 = vmatmul.mubr.f32.gmra.mrb[0].mxu0 %v63
    %v830 = vpop.f32.mrb[0].mxu0
    %v831 = vadd.f32 0.0, %v830
    %v832 = vpop.f32.mrb[0].mxu0
    %833 = vdwg.mxu0
    %v834 = vxor.u32 %v746, 2147483648
    %v835 = vxor.u32 %v751, 2147483648
    %v836 = vmul.f32 %v834, 1.442695
    %v837 = vpow.pop %v836
    %v838 = vmul.f32 %v835, 1.442695
    %v839 = vpow.pop %v838
    %v840 = vadd.f32 %v837, 1.0
    %v841 = vadd.f32 %v839, 1.0
    %v842 = vrcp.pop %v840
    %v843 = vmul.f32 1.0, %v842
    %v844 = vrcp.pop %v841
    %v845 = vmul.f32 1.0, %v844
    %v846 = vmul.f32 %v746, %v843
    %v847 = vmul.f32 %v751, %v845
    %v848 = vmul.f32 %v846, %v826
    %v849 = vmul.f32 %v847, %v831
    %s850 = scalar_lea.vmem %s5, 64
    %v851 = vld [vmem:[%s850] sm:$0xff]
    %v852 = vld [vmem:[%s850 + $0x8] sm:$0xff]
    %v853 = vld [vmem:[%s850 + $0x10] sm:$0xff]
    %v854 = vld [vmem:[%s850 + $0x18] sm:$0xff]
    %v855 = vld [vmem:[%s850 + $0x20] sm:$0xff]
    %v856 = vld [vmem:[%s850 + $0x28] sm:$0xff]
    %v857 = vld [vmem:[%s850 + $0x30] sm:$0xff]
    %v858 = vld [vmem:[%s850 + $0x38] sm:$0xff]
    %v860 = vsel %vm580, %v848, 0
    %v863 = vsel %vm580, %v849, 0
    %865 = vmatprep.subr.mxu0 0.0
    %866 = vmatpush1.msra.mxu0 %v851
    %867 = vmatprep.subr.mxu0 0.0
    %868 = vmatpush1.msra.mxu0 %v852
    %869 = vmatprep.subr.mxu0 0.0
    %870 = vmatpush1.msra.mxu0 %v853
    %871 = vmatprep.subr.mxu0 0.0
    %872 = vmatpush1.msra.mxu0 %v854
    %873 = vmatprep.subr.mxu0 0.0
    %874 = vmatpush1.msra.mxu0 %v855
    %875 = vmatprep.subr.mxu0 0.0
    %876 = vmatpush1.msra.mxu0 %v856
    %877 = vmatprep.subr.mxu0 0.0
    %878 = vmatpush1.msra.mxu0 %v857
    %879 = vmatprep.subr.mxu0 0.0
    %880 = vmatpush1.msra.mxu0 %v858
    %881 = vmatprep.subr.mxu0 0.0
    %882 = vmatpush1.msra.mxu0 0.0
    %883 = vmatprep.subr.mxu0 0.0
    %884 = vmatpush1.msra.mxu0 0.0
    %885 = vmatprep.subr.mxu0 0.0
    %886 = vmatpush1.msra.mxu0 0.0
    %887 = vmatprep.subr.mxu0 0.0
    %888 = vmatpush1.msra.mxu0 0.0
    %889 = vmatprep.subr.mxu0 0.0
    %890 = vmatpush1.msra.mxu0 0.0
    %891 = vmatprep.subr.mxu0 0.0
    %892 = vmatpush1.msra.mxu0 0.0
    %893 = vmatprep.subr.mxu0 0.0
    %894 = vmatpush1.msra.mxu0 0.0
    %895 = vmatprep.subr.mxu0 0.0
    %896 = vmatpush1.msra.mxu0 0.0
    %897 = vmatprep.subr.mxu0 0.0
    %898 = vmatpush1.msra.mxu0 0.0
    %899 = vmatprep.subr.mxu0 0.0
    %900 = vmatpush1.msra.mxu0 0.0
    %901 = vmatprep.subr.mxu0 0.0
    %902 = vmatpush1.msra.mxu0 0.0
    %903 = vmatprep.subr.mxu0 0.0
    %904 = vmatpush1.msra.mxu0 0.0
    %905 = vmatprep.subr.mxu0 0.0
    %906 = vmatpush1.msra.mxu0 0.0
    %907 = vmatprep.subr.mxu0 0.0
    %908 = vmatpush1.msra.mxu0 0.0
    %909 = vmatprep.subr.mxu0 0.0
    %910 = vmatpush1.msra.mxu0 0.0
    %911 = vmatprep.subr.mxu0 0.0
    %912 = vmatpush1.msra.mxu0 0.0
    %913 = vmatprep.subr.mxu0 0.0
    %914 = vmatpush1.msra.mxu0 0.0
    %915 = vmatprep.subr.mxu0 0.0
    %916 = vmatpush1.msra.mxu0 0.0
    %917 = vmatprep.subr.mxu0 0.0
    %918 = vmatpush1.msra.mxu0 0.0
    %919 = vmatprep.subr.mxu0 0.0
    %920 = vmatpush1.msra.mxu0 0.0
    %921 = vmatprep.subr.mxu0 0.0
    %922 = vmatpush1.msra.mxu0 0.0
    %923 = vmatprep.subr.mxu0 0.0
    %924 = vmatpush1.msra.mxu0 0.0
    %925 = vmatprep.subr.mxu0 0.0
    %926 = vmatpush1.msra.mxu0 0.0
    %927 = vmatprep.subr.mxu0 0.0
    %928 = vmatpush1.msra.mxu0 0.0
    %929 = vmatprep.mubr.f32.mxu0 0.0
    %930 = vmatmul.mubr.f32.gmra.mrb[0].mxu0 %v860
    %v931 = vpop.f32.mrb[0].mxu0
    %v932 = vadd.f32 0.0, %v931
    %v933 = vpop.f32.mrb[0].mxu0
    %934 = vmatprep.mubr.f32.mxu0 0.0
    %935 = vmatmul.mubr.f32.gmra.mrb[0].mxu0 %v863
    %v936 = vpop.f32.mrb[0].mxu0
    %v937 = vadd.f32 0.0, %v936
    %v938 = vpop.f32.mrb[0].mxu0
    %939 = vdwg.mxu0
    %940 = vset.pattern.permute.xlu0 1
    %941 = vperm.xlu0 %940, %v395
    %v942 = vpop.permute.xlu0 %941
    %944 = vset.pattern.permute.xlu0 1
    %945 = vperm.xlu0 %944, %v397
    %v946 = vpop.permute.xlu0 %945
    %v948 = vmul.f32 %v942, %v932
    %v949 = vmul.f32 %v946, %v937
    %v950 = vadd.f32 %v672, %v948
    %v951 = vadd.f32 %v673, %v949
    %s952 = scalar_lea.vmem %s3, 64
    %v953 = vld [vmem:[%s952] sm:$0xff]
    %v954 = vld [vmem:[%s952 + $0x8] sm:$0xff]
    %v955 = vld [vmem:[%s952 + $0x10] sm:$0xff]
    %v956 = vld [vmem:[%s952 + $0x18] sm:$0xff]
    %957 = vmatprep.subr.mxu0 0.0
    %958 = vmatpush1.msra.mxu0 %v953
    %959 = vmatprep.subr.mxu0 0.0
    %960 = vmatpush1.msra.mxu0 %v954
    %961 = vmatprep.subr.mxu0 0.0
    %962 = vmatpush1.msra.mxu0 %v955
    %963 = vmatprep.subr.mxu0 0.0
    %964 = vmatpush1.msra.mxu0 %v956
    %965 = vmatprep.subr.mxu0 0.0
    %966 = vmatpush1.msra.mxu0 0.0
    %967 = vmatprep.subr.mxu0 0.0
    %968 = vmatpush1.msra.mxu0 0.0
    %969 = vmatprep.subr.mxu0 0.0
    %970 = vmatpush1.msra.mxu0 0.0
    %971 = vmatprep.subr.mxu0 0.0
    %972 = vmatpush1.msra.mxu0 0.0
    %973 = vmatprep.subr.mxu0 0.0
    %974 = vmatpush1.msra.mxu0 0.0
    %975 = vmatprep.subr.mxu0 0.0
    %976 = vmatpush1.msra.mxu0 0.0
    %977 = vmatprep.subr.mxu0 0.0
    %978 = vmatpush1.msra.mxu0 0.0
    %979 = vmatprep.subr.mxu0 0.0
    %980 = vmatpush1.msra.mxu0 0.0
    %981 = vmatprep.subr.mxu0 0.0
    %982 = vmatpush1.msra.mxu0 0.0
    %983 = vmatprep.subr.mxu0 0.0
    %984 = vmatpush1.msra.mxu0 0.0
    %985 = vmatprep.subr.mxu0 0.0
    %986 = vmatpush1.msra.mxu0 0.0
    %987 = vmatprep.subr.mxu0 0.0
    %988 = vmatpush1.msra.mxu0 0.0
    %989 = vmatprep.subr.mxu0 0.0
    %990 = vmatpush1.msra.mxu0 0.0
    %991 = vmatprep.subr.mxu0 0.0
    %992 = vmatpush1.msra.mxu0 0.0
    %993 = vmatprep.subr.mxu0 0.0
    %994 = vmatpush1.msra.mxu0 0.0
    %995 = vmatprep.subr.mxu0 0.0
    %996 = vmatpush1.msra.mxu0 0.0
    %997 = vmatprep.subr.mxu0 0.0
    %998 = vmatpush1.msra.mxu0 0.0
    %999 = vmatprep.subr.mxu0 0.0
    %1000 = vmatpush1.msra.mxu0 0.0
    %1001 = vmatprep.subr.mxu0 0.0
    %1002 = vmatpush1.msra.mxu0 0.0
    %1003 = vmatprep.subr.mxu0 0.0
    %1004 = vmatpush1.msra.mxu0 0.0
    %1005 = vmatprep.subr.mxu0 0.0
    %1006 = vmatpush1.msra.mxu0 0.0
    %1007 = vmatprep.subr.mxu0 0.0
    %1008 = vmatpush1.msra.mxu0 0.0
    %1009 = vmatprep.subr.mxu0 0.0
    %1010 = vmatpush1.msra.mxu0 0.0
    %1011 = vmatprep.subr.mxu0 0.0
    %1012 = vmatpush1.msra.mxu0 0.0
    %1013 = vmatprep.subr.mxu0 0.0
    %1014 = vmatpush1.msra.mxu0 0.0
    %1015 = vmatprep.subr.mxu0 0.0
    %1016 = vmatpush1.msra.mxu0 0.0
    %1017 = vmatprep.subr.mxu0 0.0
    %1018 = vmatpush1.msra.mxu0 0.0
    %1019 = vmatprep.subr.mxu0 0.0
    %1020 = vmatpush1.msra.mxu0 0.0
    %1021 = vmatprep.mubr.f32.mxu0 0.0
    %1022 = vmatmul.mubr.f32.gmra.mrb[0].mxu0 %v60
    %v1023 = vpop.f32.mrb[0].mxu0
    %v1024 = vadd.f32 0.0, %v1023
    %v1025 = vpop.f32.mrb[0].mxu0
    %1026 = vmatprep.mubr.f32.mxu0 0.0
    %1027 = vmatmul.mubr.f32.gmra.mrb[0].mxu0 %v63
    %v1028 = vpop.f32.mrb[0].mxu0
    %v1029 = vadd.f32 0.0, %v1028
    %v1030 = vpop.f32.mrb[0].mxu0
    %1031 = vdwg.mxu0
    %s1032 = scalar_lea.vmem %s4, 64
    %v1033 = vld [vmem:[%s1032] sm:$0xff]
    %v1034 = vld [vmem:[%s1032 + $0x8] sm:$0xff]
    %v1035 = vld [vmem:[%s1032 + $0x10] sm:$0xff]
    %v1036 = vld [vmem:[%s1032 + $0x18] sm:$0xff]
    %1037 = vmatprep.subr.mxu0 0.0
    %1038 = vmatpush1.msra.mxu0 %v1033
    %1039 = vmatprep.subr.mxu0 0.0
    %1040 = vmatpush1.msra.mxu0 %v1034
    %1041 = vmatprep.subr.mxu0 0.0
    %1042 = vmatpush1.msra.mxu0 %v1035
    %1043 = vmatprep.subr.mxu0 0.0
    %1044 = vmatpush1.msra.mxu0 %v1036
    %1045 = vmatprep.subr.mxu0 0.0
    %1046 = vmatpush1.msra.mxu0 0.0
    %1047 = vmatprep.subr.mxu0 0.0
    %1048 = vmatpush1.msra.mxu0 0.0
    %1049 = vmatprep.subr.mxu0 0.0
    %1050 = vmatpush1.msra.mxu0 0.0
    %1051 = vmatprep.subr.mxu0 0.0
    %1052 = vmatpush1.msra.mxu0 0.0
    %1053 = vmatprep.subr.mxu0 0.0
    %1054 = vmatpush1.msra.mxu0 0.0
    %1055 = vmatprep.subr.mxu0 0.0
    %1056 = vmatpush1.msra.mxu0 0.0
    %1057 = vmatprep.subr.mxu0 0.0
    %1058 = vmatpush1.msra.mxu0 0.0
    %1059 = vmatprep.subr.mxu0 0.0
    %1060 = vmatpush1.msra.mxu0 0.0
    %1061 = vmatprep.subr.mxu0 0.0
    %1062 = vmatpush1.msra.mxu0 0.0
    %1063 = vmatprep.subr.mxu0 0.0
    %1064 = vmatpush1.msra.mxu0 0.0
    %1065 = vmatprep.subr.mxu0 0.0
    %1066 = vmatpush1.msra.mxu0 0.0
    %1067 = vmatprep.subr.mxu0 0.0
    %1068 = vmatpush1.msra.mxu0 0.0
    %1069 = vmatprep.subr.mxu0 0.0
    %1070 = vmatpush1.msra.mxu0 0.0
    %1071 = vmatprep.subr.mxu0 0.0
    %1072 = vmatpush1.msra.mxu0 0.0
    %1073 = vmatprep.subr.mxu0 0.0
    %1074 = vmatpush1.msra.mxu0 0.0
    %1075 = vmatprep.subr.mxu0 0.0
    %1076 = vmatpush1.msra.mxu0 0.0
    %1077 = vmatprep.subr.mxu0 0.0
    %1078 = vmatpush1.msra.mxu0 0.0
    %1079 = vmatprep.subr.mxu0 0.0
    %1080 = vmatpush1.msra.mxu0 0.0
    %1081 = vmatprep.subr.mxu0 0.0
    %1082 = vmatpush1.msra.mxu0 0.0
    %1083 = vmatprep.subr.mxu0 0.0
    %1084 = vmatpush1.msra.mxu0 0.0
    %1085 = vmatprep.subr.mxu0 0.0
    %1086 = vmatpush1.msra.mxu0 0.0
    %1087 = vmatprep.subr.mxu0 0.0
    %1088 = vmatpush1.msra.mxu0 0.0
    %1089 = vmatprep.subr.mxu0 0.0
    %1090 = vmatpush1.msra.mxu0 0.0
    %1091 = vmatprep.subr.mxu0 0.0
    %1092 = vmatpush1.msra.mxu0 0.0
    %1093 = vmatprep.subr.mxu0 0.0
    %1094 = vmatpush1.msra.mxu0 0.0
    %1095 = vmatprep.subr.mxu0 0.0
    %1096 = vmatpush1.msra.mxu0 0.0
    %1097 = vmatprep.subr.mxu0 0.0
    %1098 = vmatpush1.msra.mxu0 0.0
    %1099 = vmatprep.subr.mxu0 0.0
    %1100 = vmatpush1.msra.mxu0 0.0
    %1101 = vmatprep.mubr.f32.mxu0 0.0
    %1102 = vmatmul.mubr.f32.gmra.mrb[0].mxu0 %v60
    %v1103 = vpop.f32.mrb[0].mxu0
    %v1104 = vadd.f32 0.0, %v1103
    %v1105 = vpop.f32.mrb[0].mxu0
    %1106 = vmatprep.mubr.f32.mxu0 0.0
    %1107 = vmatmul.mubr.f32.gmra.mrb[0].mxu0 %v63
    %v1108 = vpop.f32.mrb[0].mxu0
    %v1109 = vadd.f32 0.0, %v1108
    %v1110 = vpop.f32.mrb[0].mxu0
    %1111 = vdwg.mxu0
    %v1112 = vxor.u32 %v1024, 2147483648
    %v1113 = vxor.u32 %v1029, 2147483648
    %v1114 = vmul.f32 %v1112, 1.442695
    %v1115 = vpow.pop %v1114
    %v1116 = vmul.f32 %v1113, 1.442695
    %v1117 = vpow.pop %v1116
    %v1118 = vadd.f32 %v1115, 1.0
    %v1119 = vadd.f32 %v1117, 1.0
    %v1120 = vrcp.pop %v1118
    %v1121 = vmul.f32 1.0, %v1120
    %v1122 = vrcp.pop %v1119
    %v1123 = vmul.f32 1.0, %v1122
    %v1124 = vmul.f32 %v1024, %v1121
    %v1125 = vmul.f32 %v1029, %v1123
    %v1126 = vmul.f32 %v1124, %v1104
    %v1127 = vmul.f32 %v1125, %v1109
    %s1128 = scalar_lea.vmem %s5, 128
    %v1129 = vld [vmem:[%s1128] sm:$0xff]
    %v1130 = vld [vmem:[%s1128 + $0x8] sm:$0xff]
    %v1131 = vld [vmem:[%s1128 + $0x10] sm:$0xff]
    %v1132 = vld [vmem:[%s1128 + $0x18] sm:$0xff]
    %v1133 = vld [vmem:[%s1128 + $0x20] sm:$0xff]
    %v1134 = vld [vmem:[%s1128 + $0x28] sm:$0xff]
    %v1135 = vld [vmem:[%s1128 + $0x30] sm:$0xff]
    %v1136 = vld [vmem:[%s1128 + $0x38] sm:$0xff]
    %v1138 = vsel %vm580, %v1126, 0
    %v1141 = vsel %vm580, %v1127, 0
    %1143 = vmatprep.subr.mxu0 0.0
    %1144 = vmatpush1.msra.mxu0 %v1129
    %1145 = vmatprep.subr.mxu0 0.0
    %1146 = vmatpush1.msra.mxu0 %v1130
    %1147 = vmatprep.subr.mxu0 0.0
    %1148 = vmatpush1.msra.mxu0 %v1131
    %1149 = vmatprep.subr.mxu0 0.0
    %1150 = vmatpush1.msra.mxu0 %v1132
    %1151 = vmatprep.subr.mxu0 0.0
    %1152 = vmatpush1.msra.mxu0 %v1133
    %1153 = vmatprep.subr.mxu0 0.0
    %1154 = vmatpush1.msra.mxu0 %v1134
    %1155 = vmatprep.subr.mxu0 0.0
    %1156 = vmatpush1.msra.mxu0 %v1135
    %1157 = vmatprep.subr.mxu0 0.0
    %1158 = vmatpush1.msra.mxu0 %v1136
    %1159 = vmatprep.subr.mxu0 0.0
    %1160 = vmatpush1.msra.mxu0 0.0
    %1161 = vmatprep.subr.mxu0 0.0
    %1162 = vmatpush1.msra.mxu0 0.0
    %1163 = vmatprep.subr.mxu0 0.0
    %1164 = vmatpush1.msra.mxu0 0.0
    %1165 = vmatprep.subr.mxu0 0.0
    %1166 = vmatpush1.msra.mxu0 0.0
    %1167 = vmatprep.subr.mxu0 0.0
    %1168 = vmatpush1.msra.mxu0 0.0
    %1169 = vmatprep.subr.mxu0 0.0
    %1170 = vmatpush1.msra.mxu0 0.0
    %1171 = vmatprep.subr.mxu0 0.0
    %1172 = vmatpush1.msra.mxu0 0.0
    %1173 = vmatprep.subr.mxu0 0.0
    %1174 = vmatpush1.msra.mxu0 0.0
    %1175 = vmatprep.subr.mxu0 0.0
    %1176 = vmatpush1.msra.mxu0 0.0
    %1177 = vmatprep.subr.mxu0 0.0
    %1178 = vmatpush1.msra.mxu0 0.0
    %1179 = vmatprep.subr.mxu0 0.0
    %1180 = vmatpush1.msra.mxu0 0.0
    %1181 = vmatprep.subr.mxu0 0.0
    %1182 = vmatpush1.msra.mxu0 0.0
    %1183 = vmatprep.subr.mxu0 0.0
    %1184 = vmatpush1.msra.mxu0 0.0
    %1185 = vmatprep.subr.mxu0 0.0
    %1186 = vmatpush1.msra.mxu0 0.0
    %1187 = vmatprep.subr.mxu0 0.0
    %1188 = vmatpush1.msra.mxu0 0.0
    %1189 = vmatprep.subr.mxu0 0.0
    %1190 = vmatpush1.msra.mxu0 0.0
    %1191 = vmatprep.subr.mxu0 0.0
    %1192 = vmatpush1.msra.mxu0 0.0
    %1193 = vmatprep.subr.mxu0 0.0
    %1194 = vmatpush1.msra.mxu0 0.0
    %1195 = vmatprep.subr.mxu0 0.0
    %1196 = vmatpush1.msra.mxu0 0.0
    %1197 = vmatprep.subr.mxu0 0.0
    %1198 = vmatpush1.msra.mxu0 0.0
    %1199 = vmatprep.subr.mxu0 0.0
    %1200 = vmatpush1.msra.mxu0 0.0
    %1201 = vmatprep.subr.mxu0 0.0
    %1202 = vmatpush1.msra.mxu0 0.0
    %1203 = vmatprep.subr.mxu0 0.0
    %1204 = vmatpush1.msra.mxu0 0.0
    %1205 = vmatprep.subr.mxu0 0.0
    %1206 = vmatpush1.msra.mxu0 0.0
    %1207 = vmatprep.mubr.f32.mxu0 0.0
    %1208 = vmatmul.mubr.f32.gmra.mrb[0].mxu0 %v1138
    %v1209 = vpop.f32.mrb[0].mxu0
    %v1210 = vadd.f32 0.0, %v1209
    %v1211 = vpop.f32.mrb[0].mxu0
    %1212 = vmatprep.mubr.f32.mxu0 0.0
    %1213 = vmatmul.mubr.f32.gmra.mrb[0].mxu0 %v1141
    %v1214 = vpop.f32.mrb[0].mxu0
    %v1215 = vadd.f32 0.0, %v1214
    %v1216 = vpop.f32.mrb[0].mxu0
    %1217 = vdwg.mxu0
    %1218 = vset.pattern.permute.xlu0 2
    %1219 = vperm.xlu0 %1218, %v395
    %v1220 = vpop.permute.xlu0 %1219
    %1222 = vset.pattern.permute.xlu0 2
    %1223 = vperm.xlu0 %1222, %v397
    %v1224 = vpop.permute.xlu0 %1223
    %v1226 = vmul.f32 %v1220, %v1210
    %v1227 = vmul.f32 %v1224, %v1215
    %v1228 = vadd.f32 %v950, %v1226
    %v1229 = vadd.f32 %v951, %v1227
    %s1230 = scalar_lea.vmem %s3, 96
    %v1231 = vld [vmem:[%s1230] sm:$0xff]
    %v1232 = vld [vmem:[%s1230 + $0x8] sm:$0xff]
    %v1233 = vld [vmem:[%s1230 + $0x10] sm:$0xff]
    %v1234 = vld [vmem:[%s1230 + $0x18] sm:$0xff]
    %1235 = vmatprep.subr.mxu0 0.0
    %1236 = vmatpush1.msra.mxu0 %v1231
    %1237 = vmatprep.subr.mxu0 0.0
    %1238 = vmatpush1.msra.mxu0 %v1232
    %1239 = vmatprep.subr.mxu0 0.0
    %1240 = vmatpush1.msra.mxu0 %v1233
    %1241 = vmatprep.subr.mxu0 0.0
    %1242 = vmatpush1.msra.mxu0 %v1234
    %1243 = vmatprep.subr.mxu0 0.0
    %1244 = vmatpush1.msra.mxu0 0.0
    %1245 = vmatprep.subr.mxu0 0.0
    %1246 = vmatpush1.msra.mxu0 0.0
    %1247 = vmatprep.subr.mxu0 0.0
    %1248 = vmatpush1.msra.mxu0 0.0
    %1249 = vmatprep.subr.mxu0 0.0
    %1250 = vmatpush1.msra.mxu0 0.0
    %1251 = vmatprep.subr.mxu0 0.0
    %1252 = vmatpush1.msra.mxu0 0.0
    %1253 = vmatprep.subr.mxu0 0.0
    %1254 = vmatpush1.msra.mxu0 0.0
    %1255 = vmatprep.subr.mxu0 0.0
    %1256 = vmatpush1.msra.mxu0 0.0
    %1257 = vmatprep.subr.mxu0 0.0
    %1258 = vmatpush1.msra.mxu0 0.0
    %1259 = vmatprep.subr.mxu0 0.0
    %1260 = vmatpush1.msra.mxu0 0.0
    %1261 = vmatprep.subr.mxu0 0.0
    %1262 = vmatpush1.msra.mxu0 0.0
    %1263 = vmatprep.subr.mxu0 0.0
    %1264 = vmatpush1.msra.mxu0 0.0
    %1265 = vmatprep.subr.mxu0 0.0
    %1266 = vmatpush1.msra.mxu0 0.0
    %1267 = vmatprep.subr.mxu0 0.0
    %1268 = vmatpush1.msra.mxu0 0.0
    %1269 = vmatprep.subr.mxu0 0.0
    %1270 = vmatpush1.msra.mxu0 0.0
    %1271 = vmatprep.subr.mxu0 0.0
    %1272 = vmatpush1.msra.mxu0 0.0
    %1273 = vmatprep.subr.mxu0 0.0
    %1274 = vmatpush1.msra.mxu0 0.0
    %1275 = vmatprep.subr.mxu0 0.0
    %1276 = vmatpush1.msra.mxu0 0.0
    %1277 = vmatprep.subr.mxu0 0.0
    %1278 = vmatpush1.msra.mxu0 0.0
    %1279 = vmatprep.subr.mxu0 0.0
    %1280 = vmatpush1.msra.mxu0 0.0
    %1281 = vmatprep.subr.mxu0 0.0
    %1282 = vmatpush1.msra.mxu0 0.0
    %1283 = vmatprep.subr.mxu0 0.0
    %1284 = vmatpush1.msra.mxu0 0.0
    %1285 = vmatprep.subr.mxu0 0.0
    %1286 = vmatpush1.msra.mxu0 0.0
    %1287 = vmatprep.subr.mxu0 0.0
    %1288 = vmatpush1.msra.mxu0 0.0
    %1289 = vmatprep.subr.mxu0 0.0
    %1290 = vmatpush1.msra.mxu0 0.0
    %1291 = vmatprep.subr.mxu0 0.0
    %1292 = vmatpush1.msra.mxu0 0.0
    %1293 = vmatprep.subr.mxu0 0.0
    %1294 = vmatpush1.msra.mxu0 0.0
    %1295 = vmatprep.subr.mxu0 0.0
    %1296 = vmatpush1.msra.mxu0 0.0
    %1297 = vmatprep.subr.mxu0 0.0
    %1298 = vmatpush1.msra.mxu0 0.0
    %1299 = vmatprep.mubr.f32.mxu0 0.0
    %1300 = vmatmul.mubr.f32.gmra.mrb[0].mxu0 %v60
    %v1301 = vpop.f32.mrb[0].mxu0
    %v1302 = vadd.f32 0.0, %v1301
    %v1303 = vpop.f32.mrb[0].mxu0
    %1304 = vmatprep.mubr.f32.mxu0 0.0
    %1305 = vmatmul.mubr.f32.gmra.mrb[0].mxu0 %v63
    %v1306 = vpop.f32.mrb[0].mxu0
    %v1307 = vadd.f32 0.0, %v1306
    %v1308 = vpop.f32.mrb[0].mxu0
    %1309 = vdwg.mxu0
    %s1310 = scalar_lea.vmem %s4, 96
    %v1311 = vld [vmem:[%s1310] sm:$0xff]
    %v1312 = vld [vmem:[%s1310 + $0x8] sm:$0xff]
    %v1313 = vld [vmem:[%s1310 + $0x10] sm:$0xff]
    %v1314 = vld [vmem:[%s1310 + $0x18] sm:$0xff]
    %1315 = vmatprep.subr.mxu0 0.0
    %1316 = vmatpush1.msra.mxu0 %v1311
    %1317 = vmatprep.subr.mxu0 0.0
    %1318 = vmatpush1.msra.mxu0 %v1312
    %1319 = vmatprep.subr.mxu0 0.0
    %1320 = vmatpush1.msra.mxu0 %v1313
    %1321 = vmatprep.subr.mxu0 0.0
    %1322 = vmatpush1.msra.mxu0 %v1314
    %1323 = vmatprep.subr.mxu0 0.0
    %1324 = vmatpush1.msra.mxu0 0.0
    %1325 = vmatprep.subr.mxu0 0.0
    %1326 = vmatpush1.msra.mxu0 0.0
    %1327 = vmatprep.subr.mxu0 0.0
    %1328 = vmatpush1.msra.mxu0 0.0
    %1329 = vmatprep.subr.mxu0 0.0
    %1330 = vmatpush1.msra.mxu0 0.0
    %1331 = vmatprep.subr.mxu0 0.0
    %1332 = vmatpush1.msra.mxu0 0.0
    %1333 = vmatprep.subr.mxu0 0.0
    %1334 = vmatpush1.msra.mxu0 0.0
    %1335 = vmatprep.subr.mxu0 0.0
    %1336 = vmatpush1.msra.mxu0 0.0
    %1337 = vmatprep.subr.mxu0 0.0
    %1338 = vmatpush1.msra.mxu0 0.0
    %1339 = vmatprep.subr.mxu0 0.0
    %1340 = vmatpush1.msra.mxu0 0.0
    %1341 = vmatprep.subr.mxu0 0.0
    %1342 = vmatpush1.msra.mxu0 0.0
    %1343 = vmatprep.subr.mxu0 0.0
    %1344 = vmatpush1.msra.mxu0 0.0
    %1345 = vmatprep.subr.mxu0 0.0
    %1346 = vmatpush1.msra.mxu0 0.0
    %1347 = vmatprep.subr.mxu0 0.0
    %1348 = vmatpush1.msra.mxu0 0.0
    %1349 = vmatprep.subr.mxu0 0.0
    %1350 = vmatpush1.msra.mxu0 0.0
    %1351 = vmatprep.subr.mxu0 0.0
    %1352 = vmatpush1.msra.mxu0 0.0
    %1353 = vmatprep.subr.mxu0 0.0
    %1354 = vmatpush1.msra.mxu0 0.0
    %1355 = vmatprep.subr.mxu0 0.0
    %1356 = vmatpush1.msra.mxu0 0.0
    %1357 = vmatprep.subr.mxu0 0.0
    %1358 = vmatpush1.msra.mxu0 0.0
    %1359 = vmatprep.subr.mxu0 0.0
    %1360 = vmatpush1.msra.mxu0 0.0
    %1361 = vmatprep.subr.mxu0 0.0
    %1362 = vmatpush1.msra.mxu0 0.0
    %1363 = vmatprep.subr.mxu0 0.0
    %1364 = vmatpush1.msra.mxu0 0.0
    %1365 = vmatprep.subr.mxu0 0.0
    %1366 = vmatpush1.msra.mxu0 0.0
    %1367 = vmatprep.subr.mxu0 0.0
    %1368 = vmatpush1.msra.mxu0 0.0
    %1369 = vmatprep.subr.mxu0 0.0
    %1370 = vmatpush1.msra.mxu0 0.0
    %1371 = vmatprep.subr.mxu0 0.0
    %1372 = vmatpush1.msra.mxu0 0.0
    %1373 = vmatprep.subr.mxu0 0.0
    %1374 = vmatpush1.msra.mxu0 0.0
    %1375 = vmatprep.subr.mxu0 0.0
    %1376 = vmatpush1.msra.mxu0 0.0
    %1377 = vmatprep.subr.mxu0 0.0
    %1378 = vmatpush1.msra.mxu0 0.0
    %1379 = vmatprep.mubr.f32.mxu0 0.0
    %1380 = vmatmul.mubr.f32.gmra.mrb[0].mxu0 %v60
    %v1381 = vpop.f32.mrb[0].mxu0
    %v1382 = vadd.f32 0.0, %v1381
    %v1383 = vpop.f32.mrb[0].mxu0
    %1384 = vmatprep.mubr.f32.mxu0 0.0
    %1385 = vmatmul.mubr.f32.gmra.mrb[0].mxu0 %v63
    %v1386 = vpop.f32.mrb[0].mxu0
    %v1387 = vadd.f32 0.0, %v1386
    %v1388 = vpop.f32.mrb[0].mxu0
    %1389 = vdwg.mxu0
    %v1390 = vxor.u32 %v1302, 2147483648
    %v1391 = vxor.u32 %v1307, 2147483648
    %v1392 = vmul.f32 %v1390, 1.442695
    %v1393 = vpow.pop %v1392
    %v1394 = vmul.f32 %v1391, 1.442695
    %v1395 = vpow.pop %v1394
    %v1396 = vadd.f32 %v1393, 1.0
    %v1397 = vadd.f32 %v1395, 1.0
    %v1398 = vrcp.pop %v1396
    %v1399 = vmul.f32 1.0, %v1398
    %v1400 = vrcp.pop %v1397
    %v1401 = vmul.f32 1.0, %v1400
    %v1402 = vmul.f32 %v1302, %v1399
    %v1403 = vmul.f32 %v1307, %v1401
    %v1404 = vmul.f32 %v1402, %v1382
    %v1405 = vmul.f32 %v1403, %v1387
    %s1406 = scalar_lea.vmem %s5, 192
    %v1407 = vld [vmem:[%s1406] sm:$0xff]
    %v1408 = vld [vmem:[%s1406 + $0x8] sm:$0xff]
    %v1409 = vld [vmem:[%s1406 + $0x10] sm:$0xff]
    %v1410 = vld [vmem:[%s1406 + $0x18] sm:$0xff]
    %v1411 = vld [vmem:[%s1406 + $0x20] sm:$0xff]
    %v1412 = vld [vmem:[%s1406 + $0x28] sm:$0xff]
    %v1413 = vld [vmem:[%s1406 + $0x30] sm:$0xff]
    %v1414 = vld [vmem:[%s1406 + $0x38] sm:$0xff]
    %v1416 = vsel %vm580, %v1404, 0
    %v1419 = vsel %vm580, %v1405, 0
    %1421 = vmatprep.subr.mxu0 0.0
    %1422 = vmatpush1.msra.mxu0 %v1407
    %1423 = vmatprep.subr.mxu0 0.0
    %1424 = vmatpush1.msra.mxu0 %v1408
    %1425 = vmatprep.subr.mxu0 0.0
    %1426 = vmatpush1.msra.mxu0 %v1409
    %1427 = vmatprep.subr.mxu0 0.0
    %1428 = vmatpush1.msra.mxu0 %v1410
    %1429 = vmatprep.subr.mxu0 0.0
    %1430 = vmatpush1.msra.mxu0 %v1411
    %1431 = vmatprep.subr.mxu0 0.0
    %1432 = vmatpush1.msra.mxu0 %v1412
    %1433 = vmatprep.subr.mxu0 0.0
    %1434 = vmatpush1.msra.mxu0 %v1413
    %1435 = vmatprep.subr.mxu0 0.0
    %1436 = vmatpush1.msra.mxu0 %v1414
    %1437 = vmatprep.subr.mxu0 0.0
    %1438 = vmatpush1.msra.mxu0 0.0
    %1439 = vmatprep.subr.mxu0 0.0
    %1440 = vmatpush1.msra.mxu0 0.0
    %1441 = vmatprep.subr.mxu0 0.0
    %1442 = vmatpush1.msra.mxu0 0.0
    %1443 = vmatprep.subr.mxu0 0.0
    %1444 = vmatpush1.msra.mxu0 0.0
    %1445 = vmatprep.subr.mxu0 0.0
    %1446 = vmatpush1.msra.mxu0 0.0
    %1447 = vmatprep.subr.mxu0 0.0
    %1448 = vmatpush1.msra.mxu0 0.0
    %1449 = vmatprep.subr.mxu0 0.0
    %1450 = vmatpush1.msra.mxu0 0.0
    %1451 = vmatprep.subr.mxu0 0.0
    %1452 = vmatpush1.msra.mxu0 0.0
    %1453 = vmatprep.subr.mxu0 0.0
    %1454 = vmatpush1.msra.mxu0 0.0
    %1455 = vmatprep.subr.mxu0 0.0
    %1456 = vmatpush1.msra.mxu0 0.0
    %1457 = vmatprep.subr.mxu0 0.0
    %1458 = vmatpush1.msra.mxu0 0.0
    %1459 = vmatprep.subr.mxu0 0.0
    %1460 = vmatpush1.msra.mxu0 0.0
    %1461 = vmatprep.subr.mxu0 0.0
    %1462 = vmatpush1.msra.mxu0 0.0
    %1463 = vmatprep.subr.mxu0 0.0
    %1464 = vmatpush1.msra.mxu0 0.0
    %1465 = vmatprep.subr.mxu0 0.0
    %1466 = vmatpush1.msra.mxu0 0.0
    %1467 = vmatprep.subr.mxu0 0.0
    %1468 = vmatpush1.msra.mxu0 0.0
    %1469 = vmatprep.subr.mxu0 0.0
    %1470 = vmatpush1.msra.mxu0 0.0
    %1471 = vmatprep.subr.mxu0 0.0
    %1472 = vmatpush1.msra.mxu0 0.0
    %1473 = vmatprep.subr.mxu0 0.0
    %1474 = vmatpush1.msra.mxu0 0.0
    %1475 = vmatprep.subr.mxu0 0.0
    %1476 = vmatpush1.msra.mxu0 0.0
    %1477 = vmatprep.subr.mxu0 0.0
    %1478 = vmatpush1.msra.mxu0 0.0
    %1479 = vmatprep.subr.mxu0 0.0
    %1480 = vmatpush1.msra.mxu0 0.0
    %1481 = vmatprep.subr.mxu0 0.0
    %1482 = vmatpush1.msra.mxu0 0.0
    %1483 = vmatprep.subr.mxu0 0.0
    %1484 = vmatpush1.msra.mxu0 0.0
    %1485 = vmatprep.mubr.f32.mxu0 0.0
    %1486 = vmatmul.mubr.f32.gmra.mrb[0].mxu0 %v1416
    %v1487 = vpop.f32.mrb[0].mxu0
    %v1488 = vadd.f32 0.0, %v1487
    %v1489 = vpop.f32.mrb[0].mxu0
    %1490 = vmatprep.mubr.f32.mxu0 0.0
    %1491 = vmatmul.mubr.f32.gmra.mrb[0].mxu0 %v1419
    %v1492 = vpop.f32.mrb[0].mxu0
    %v1493 = vadd.f32 0.0, %v1492
    %v1494 = vpop.f32.mrb[0].mxu0
    %1495 = vdwg.mxu0
    %1496 = vset.pattern.permute.xlu0 3
    %1497 = vperm.xlu0 %1496, %v395
    %v1498 = vpop.permute.xlu0 %1497
    %1500 = vset.pattern.permute.xlu0 3
    %1501 = vperm.xlu0 %1500, %v397
    %v1502 = vpop.permute.xlu0 %1501
    %v1504 = vmul.f32 %v1498, %v1488
    %v1505 = vmul.f32 %v1502, %v1493
    %v1506 = vadd.f32 %v1228, %v1504
    %v1507 = vadd.f32 %v1229, %v1505
    %v1508 = vadd.f32 %v26, %v1506
    %v1509 = vadd.f32 %v27, %v1507
    %1510 = vst.msk [vmem:[#allocation2] sm:$0xff] %vm30, %v1508
    %1511 = vst.msk [vmem:[#allocation2 + $0x8] sm:$0xff] %vm30, %v1509
    // Predicated region
    $region26: #{mixtral_decoder_layer.3} parent=1 // pred_check
      _
    $region27: #{mixtral_decoder_layer.3} parent=1 // pred_check_branch
      %1513 = sbr.rel (0) target = $region29
    $region28: #{mixtral_decoder_layer.3} parent=1 // pred_region
      %s1515 = ssub.s32 256, 256
      %1516 = vsyncadd [#allocation3], %s1515
      %s1517 = sshll.u32 [#allocation2], 4
      %s1518 = int_to_ptr.vmem [resolvable:$true] %s1517
      %1523 = dma.vmem_to_hbm [thread:$0]  %s1518, 256, %s6, [#allocation3], 128, 128, 8
    $region29: #{mixtral_decoder_layer.3} parent=1 // pred_fallthru
      _
    // Predicated region
    $region30: #{mixtral_decoder_layer.3} parent=1 // pred_check
      _
    $region31: #{mixtral_decoder_layer.3} parent=1 // pred_check_branch
      %1525 = sbr.rel (0) target = $region33
    $region32: #{mixtral_decoder_layer.3} parent=1 // pred_region
      _
    $region33: #{mixtral_decoder_layer.3} parent=1 // pred_fallthru
      _
    // Predicated region
    $region34: #{mixtral_decoder_layer.3} parent=1 // pred_check
      _
    $region35: #{mixtral_decoder_layer.3} parent=1 // pred_check_branch
      %1527 = sbr.rel (0) target = $region37
    $region36: #{mixtral_decoder_layer.3} parent=1 // pred_region
      %1528 = dma.done [#allocation3], 256
    $region37: #{mixtral_decoder_layer.3} parent=1 // pred_fallthru
      _
    // Predicated region
    $region38: #{mixtral_decoder_layer.3} parent=1 // pred_check
      _
    $region39: #{mixtral_decoder_layer.3} parent=1 // pred_check_branch
      %1530 = sbr.rel (0) target = $region41
    $region40: #{mixtral_decoder_layer.3} parent=1 // pred_region
      _
    $region41: #{mixtral_decoder_layer.3} parent=1 // pred_fallthru
      _
    %1531 = vsyncpa [#allocation3], 1

</llo_original>
